<compile_context>
chip_gen: v6e
topology: v6e:2x2x1
jax: 0.10.0
libtpu: 0.0.40
codegen_flags: <defaults>
</compile_context>

<pallas_src>
import functools

import jax
import jax.numpy as jnp
from jax import lax
from jax.experimental import pallas as pl
from jax.experimental.pallas import tpu as pltpu

KS = 7
PAD = KS // 2  # 3


def _round_up(x, m):
    return (x + m - 1) // m * m


def _cbam_kernel(x_ref, w1_ref, w2_ref, wconv_ref, mask_ref,
                 feat_ref, pooled_ref, *, w, base0, off, lp):
    # x_ref      : VMEM (Bb, C, HW)   batch block of features, lane-dense
    # w1_ref     : VMEM (Ch, C)       channel-MLP layer-1 weight
    # w2_ref     : VMEM (C, Ch)       channel-MLP layer-2 weight
    # wconv_ref  : VMEM (2, KS*KS)    7x7 spatial conv weight, layout [ci, ky*KS+kx]
    # mask_ref   : VMEM (KS, HW)      per-kx horizontal halo masks (0/1 f32)
    # feat_ref   : VMEM (Bb, C, HW)   CBAM output features
    # pooled_ref : VMEM (Bb, C, 1)    AdaptiveAvgPool2d(1) output
    bb, c_dim, hw = x_ref.shape

    w1 = w1_ref[...]                                          # (Ch, C)
    w2 = w2_ref[...]                                          # (C, Ch)
    wconv = wconv_ref[...]                                    # (2, KS*KS)

    for bi in range(bb):
        x = x_ref[bi].astype(jnp.float32)                     # (C, HW)

        # ------------- Channel attention (MXU) -------------
        avg_c = jnp.sum(x, axis=1, keepdims=True) * (1.0 / hw)    # (C, 1)
        max_c = jnp.max(x, axis=1, keepdims=True)                 # (C, 1)
        v2 = jnp.concatenate([avg_c, max_c], axis=1)              # (C, 2)
        h = jnp.maximum(
            jnp.dot(w1, v2, preferred_element_type=jnp.float32,
                    precision=jax.lax.Precision.HIGHEST), 0.0)    # (Ch, 2)
        o = jnp.dot(w2, h, preferred_element_type=jnp.float32,
                    precision=jax.lax.Precision.HIGHEST)          # (C, 2)
        ca = jax.nn.sigmoid(o[:, 0:1] + o[:, 1:2])                # (C, 1)

        # ------------- Spatial attention maps -------------
        # x1 = x*ca is NOT kept live; only its channel reductions are.
        xca = x * ca                                              # (C, HW)
        avg_s = jnp.sum(xca, axis=0, keepdims=True) * (1.0 / c_dim)  # (1, HW)
        max_s = jnp.max(xca, axis=0, keepdims=True)                  # (1, HW)
        maps = jnp.concatenate([avg_s, max_s], axis=0)               # (2, HW)

        # Zero-padded, flattened, row-padded map built in values (no scratch).
        # Layout: value(r', c') lives at index off + r'*W + c'; tap (ky, kx)
        # for output i reads index base0 + ky*W + kx + i.  off is lane-aligned.
        p = jnp.concatenate(
            [jnp.zeros((2, off), jnp.float32),
             maps,
             jnp.zeros((2, lp - off - hw), jnp.float32)], axis=1)    # (2, LP)

        # ------------- 7x7 conv, 2 in-ch fused into sublanes -------------
        acc0 = jnp.zeros((2, hw), jnp.float32)
        acc1 = jnp.zeros((2, hw), jnp.float32)
        for kx in range(KS):
            col = None
            for ky in range(KS):
                wt = wconv[:, ky * KS + kx:ky * KS + kx + 1]         # (2, 1)
                b0 = base0 + ky * w + kx
                tap = wt * p[:, b0:b0 + hw]                          # (2, HW)
                col = tap if col is None else col + tap
            if kx != PAD:                      # left/right halo columns only
                col = col * mask_ref[kx:kx + 1, :]                   # (1, HW)
            if kx % 2 == 0:
                acc0 = acc0 + col
            else:
                acc1 = acc1 + col
        acc = acc0 + acc1                                            # (2, HW)
        sa = jax.nn.sigmoid(acc[0:1, :] + acc[1:2, :])               # (1, HW)

        # ------------- feats + AdaptiveAvgPool2d(1) -------------
        feats = (x * ca) * sa                                        # (C, HW)
        feat_ref[bi] = feats.astype(feat_ref.dtype)
        pooled_ref[bi] = (jnp.sum(feats, axis=1, keepdims=True)
                          * (1.0 / hw)).astype(pooled_ref.dtype)


def cbam_head(x, w_conv, w_ca1, w_ca2, w_fc, b_fc, *, batch_block=1):
    """CBAM + avg-pool (Pallas kernel) + fc (XLA matmul) on backbone features.

    x      : (B, C, H, W) f32 features
    w_conv : (1, 2, KS, KS) spatial-attention conv weight (no bias)
    w_ca1  : (C//ratio, C) channel-MLP layer 1 (1x1 conv, no bias)
    w_ca2  : (C, C//ratio) channel-MLP layer 2 (1x1 conv, no bias)
    w_fc   : (NC, C) fc weight, b_fc : (NC,) fc bias
    Returns (logits (B, NC), features (B, C, H, W)).
    """
    B, C, H, W = x.shape
    HW = H * W
    hidden = w_ca1.shape[0]
    assert B % batch_block == 0

    # Front sentinel chosen so the interior map starts at a lane-aligned offset.
    S = _round_up(PAD * W + PAD, 128) - PAD * W           # >= PAD
    off = S + PAD * W                                     # multiple of 128
    base0 = S - PAD
    LP = _round_up(off + HW + PAD * W + PAD, 128)

    # Lane-dense views / weight layouts prepared outside the kernel (free).
    x_flat = x.reshape(B, C, HW)
    w1 = w_ca1.reshape(hidden, C).astype(jnp.float32)              # (Ch, C)
    w2 = w_ca2.reshape(C, hidden).astype(jnp.float32)              # (C, Ch)
    wconv = w_conv.reshape(2, KS * KS).astype(jnp.float32)         # (2, 49)

    # Horizontal halo masks (one per kx column), built host/XLA-side.
    xcol = jnp.arange(HW, dtype=jnp.int32) % W
    halo_mask = jnp.stack(
        [((xcol >= PAD - kx) & (xcol < W + PAD - kx)).astype(jnp.float32)
         for kx in range(KS)], axis=0)                             # (KS, HW)

    kernel = functools.partial(_cbam_kernel, w=W, base0=base0, off=off, lp=LP)

    feat_flat, pooled = pl.pallas_call(
        kernel,
        out_shape=(
            jax.ShapeDtypeStruct((B, C, HW), x.dtype),
            jax.ShapeDtypeStruct((B, C, 1), jnp.float32),
        ),
        grid=(B // batch_block,),
        in_specs=[
            pl.BlockSpec((batch_block, C, HW), lambda i: (i, 0, 0)),   # x
            pl.BlockSpec((hidden, C), lambda i: (0, 0)),               # w1
            pl.BlockSpec((C, hidden), lambda i: (0, 0)),               # w2
            pl.BlockSpec((2, KS * KS), lambda i: (0, 0)),              # conv w
            pl.BlockSpec((KS, HW), lambda i: (0, 0)),                  # halo mask
        ],
        out_specs=(
            pl.BlockSpec((batch_block, C, HW), lambda i: (i, 0, 0)),   # feats
            pl.BlockSpec((batch_block, C, 1), lambda i: (i, 0, 0)),    # pooled
        ),
        compiler_params=pltpu.CompilerParams(
            dimension_semantics=("parallel",),   # v7x: shard batch over 2 TCs
            # At real B4 sizes (C=1792) also set vmem_limit_bytes and tile C.
        ),
    )(x_flat, w1, w2, wconv, halo_mask)

    # Classifier head: one batched MXU matmul in XLA (outside the kernel).
    logits = pooled.reshape(B, C) @ w_fc.T + b_fc
    return logits, feat_flat.reshape(B, C, H, W)


def cbam_head_ref(x, w_conv, w_ca1, w_ca2, w_fc, b_fc):
    """Pure-JAX reference matching the PyTorch CBAM + pool + fc forward."""
    avg = jnp.mean(x, axis=(2, 3))                                 # (B, C)
    mx = jnp.max(x, axis=(2, 3))                                   # (B, C)

    def mlp(v):
        return jnp.maximum(v @ w_ca1.T, 0.0) @ w_ca2.T

    ca = jax.nn.sigmoid(mlp(avg) + mlp(mx))[:, :, None, None]
    x1 = x * ca
    avg_s = jnp.mean(x1, axis=1, keepdims=True)
    max_s = jnp.max(x1, axis=1, keepdims=True)
    cat = jnp.concatenate([avg_s, max_s], axis=1)                  # (B, 2, H, W)
    y = lax.conv_general_dilated(
        cat, w_conv, window_strides=(1, 1),
        padding=((PAD, PAD), (PAD, PAD)),
        dimension_numbers=("NCHW", "OIHW", "NCHW"))
    sa = jax.nn.sigmoid(y)
    feats = x1 * sa
    pooled = jnp.mean(feats, axis=(2, 3))
    logits = pooled @ w_fc.T + b_fc
    return logits, feats


if __name__ == "__main__":
    B, C, H, W = 4, 32, 16, 16
    ratio = 16
    hidden = C // ratio
    NC = 5

    key = jax.random.PRNGKey(0)
    kx_, kconv, k1, k2, kfc, kb = jax.random.split(key, 6)

    x = jax.random.normal(kx_, (B, C, H, W), dtype=jnp.float32)

    def uinit(k, shape, fan_in):
        bound = 1.0 / (float(fan_in) ** 0.5)
        return jax.random.uniform(k, shape, dtype=jnp.float32,
                                  minval=-bound, maxval=bound)

    w_conv = uinit(kconv, (1, 2, KS, KS), 2 * KS * KS)   # spatial-attn conv
    w_ca1 = uinit(k1, (hidden, C), C)                     # channel-attn MLP
    w_ca2 = uinit(k2, (C, hidden), hidden)
    w_fc = uinit(kfc, (NC, C), C)                         # classifier head
    b_fc = uinit(kb, (NC,), C)

    logits, feats = cbam_head(x, w_conv, w_ca1, w_ca2, w_fc, b_fc,
                              batch_block=2)
    logits = jax.block_until_ready(logits)
    feats = jax.block_until_ready(feats)

    logits_ref, feats_ref = cbam_head_ref(x, w_conv, w_ca1, w_ca2, w_fc, b_fc)

    assert logits.shape == (B, NC), logits.shape
    assert feats.shape == (B, C, H, W), feats.shape
    assert jnp.allclose(feats, feats_ref, rtol=1e-4, atol=1e-4), float(
        jnp.max(jnp.abs(feats - feats_ref)))
    assert jnp.allclose(logits, logits_ref, rtol=1e-4, atol=1e-4), float(
        jnp.max(jnp.abs(logits - logits_ref)))

    print("KERNEL_OK")
</pallas_src>

<mosaic_0001>
module attributes {stable_mosaic.version = 11 : i64} {
  func.func @_cbam_kernel(%arg0: i32, %arg1: memref<2x32x256xf32, #tpu.memory_space<vmem>>, %arg2: memref<2x32xf32, #tpu.memory_space<vmem>>, %arg3: memref<32x2xf32, #tpu.memory_space<vmem>>, %arg4: memref<2x49xf32, #tpu.memory_space<vmem>>, %arg5: memref<7x256xf32, #tpu.memory_space<vmem>>, %arg6: memref<2x32x256xf32, #tpu.memory_space<vmem>>, %arg7: memref<2x32x1xf32, #tpu.memory_space<vmem>>) attributes {dimension_semantics = [#tpu.dimension_semantics<parallel>], iteration_bounds = array<i64: 2>, scalar_prefetch = 0 : i64, scratch_operands = 0 : i64, tpu.core_type = #tpu.core_type<tc>, window_params = [{transform_indices = @transform_0, window_bounds = array<i64: 2, 32, 256>}, {pipeline_mode = #tpu.pipeline_mode<synchronous>, transform_indices = @transform_1, window_bounds = array<i64: 2, 32>}, {pipeline_mode = #tpu.pipeline_mode<synchronous>, transform_indices = @transform_2, window_bounds = array<i64: 32, 2>}, {pipeline_mode = #tpu.pipeline_mode<synchronous>, transform_indices = @transform_3, window_bounds = array<i64: 2, 49>}, {pipeline_mode = #tpu.pipeline_mode<synchronous>, transform_indices = @transform_4, window_bounds = array<i64: 7, 256>}, {transform_indices = @transform_5, window_bounds = array<i64: 2, 32, 256>}, {transform_indices = @transform_6, window_bounds = array<i64: 2, 32, 1>}]} {
    %c0 = arith.constant 0 : index
    %c0_0 = arith.constant 0 : index
    %0 = vector.load %arg2[%c0, %c0_0] : memref<2x32xf32, #tpu.memory_space<vmem>>, vector<2x32xf32>
    %c0_1 = arith.constant 0 : index
    %c0_2 = arith.constant 0 : index
    %1 = vector.load %arg3[%c0_1, %c0_2] : memref<32x2xf32, #tpu.memory_space<vmem>>, vector<32x2xf32>
    %c0_3 = arith.constant 0 : index
    %c0_4 = arith.constant 0 : index
    %2 = vector.load %arg4[%c0_3, %c0_4] : memref<2x49xf32, #tpu.memory_space<vmem>>, vector<2x49xf32>
    %c0_5 = arith.constant 0 : index
    %c0_6 = arith.constant 0 : index
    %c0_7 = arith.constant 0 : index
    %3 = vector.load %arg1[%c0_5, %c0_6, %c0_7] : memref<2x32x256xf32, #tpu.memory_space<vmem>>, vector<1x32x256xf32>
    %4 = vector.shape_cast %3 : vector<1x32x256xf32> to vector<32x256xf32>
    %cst = arith.constant dense<0.000000e+00> : vector<32xf32>
    %5 = vector.multi_reduction <add>, %4, %cst [1] : vector<32x256xf32> to vector<32xf32>
    %6 = vector.shape_cast %5 : vector<32xf32> to vector<32x1xf32>
    %cst_8 = arith.constant 3.906250e-03 : f32
    %7 = vector.broadcast %cst_8 : f32 to vector<32x1xf32>
    %8 = arith.mulf %6, %7 : vector<32x1xf32>
    %cst_9 = arith.constant dense<0xFF800000> : vector<32xf32>
    %9 = vector.multi_reduction <maximumf>, %4, %cst_9 [1] : vector<32x256xf32> to vector<32xf32>
    %10 = vector.shape_cast %9 : vector<32xf32> to vector<32x1xf32>
    %11 = tpu.concatenate %8, %10 in 1 : vector<32x1xf32>, vector<32x1xf32> -> vector<32x2xf32>
    %cst_10 = arith.constant dense<0.000000e+00> : vector<2x2xf32>
    %12 = tpu.matmul %0, %11, %cst_10 {dimension_numbers = #tpu.dot_dimension_numbers<[1], [0], [0], [1], [0, 0, 1, 1], [], []>, precision = #tpu.contract_precision<fp32>} : vector<2x32xf32>, vector<32x2xf32>, vector<2x2xf32> -> vector<2x2xf32>
    %cst_11 = arith.constant 0.000000e+00 : f32
    %13 = vector.broadcast %cst_11 : f32 to vector<2x2xf32>
    %14 = arith.maximumf %12, %13 : vector<2x2xf32>
    %cst_12 = arith.constant dense<0.000000e+00> : vector<32x2xf32>
    %15 = tpu.matmul %1, %14, %cst_12 {dimension_numbers = #tpu.dot_dimension_numbers<[1], [0], [0], [1], [0, 0, 1, 1], [], []>, precision = #tpu.contract_precision<fp32>} : vector<32x2xf32>, vector<2x2xf32>, vector<32x2xf32> -> vector<32x2xf32>
    %16 = vector.extract_strided_slice %15 {offsets = [0, 0], sizes = [32, 1], strides = [1, 1]} : vector<32x2xf32> to vector<32x1xf32>
    %17 = vector.extract_strided_slice %15 {offsets = [0, 1], sizes = [32, 1], strides = [1, 1]} : vector<32x2xf32> to vector<32x1xf32>
    %18 = arith.addf %16, %17 : vector<32x1xf32>
    %19 = arith.negf %18 : vector<32x1xf32>
    %20 = math.exp %19 : vector<32x1xf32>
    %cst_13 = arith.constant 1.000000e+00 : f32
    %21 = vector.broadcast %cst_13 : f32 to vector<32x1xf32>
    %22 = arith.addf %21, %20 : vector<32x1xf32>
    %23 = arith.divf %21, %22 : vector<32x1xf32>
    %24 = vector.broadcast %23 : vector<32x1xf32> to vector<32x256xf32>
    %25 = arith.mulf %4, %24 : vector<32x256xf32>
    %cst_14 = arith.constant dense<0.000000e+00> : vector<256xf32>
    %26 = vector.multi_reduction <add>, %25, %cst_14 [0] : vector<32x256xf32> to vector<256xf32>
    %27 = vector.shape_cast %26 : vector<256xf32> to vector<1x256xf32>
    %cst_15 = arith.constant 3.125000e-02 : f32
    %28 = vector.broadcast %cst_15 : f32 to vector<1x256xf32>
    %29 = arith.mulf %27, %28 : vector<1x256xf32>
    %cst_16 = arith.constant dense<0xFF800000> : vector<256xf32>
    %30 = vector.multi_reduction <maximumf>, %25, %cst_16 [0] : vector<32x256xf32> to vector<256xf32>
    %31 = vector.shape_cast %30 : vector<256xf32> to vector<1x256xf32>
    %32 = tpu.concatenate %29, %31 in 0 : vector<1x256xf32>, vector<1x256xf32> -> vector<2x256xf32>
    %cst_17 = arith.constant 0.000000e+00 : f32
    %33 = vector.broadcast %cst_17 : f32 to vector<2x128xf32>
    %cst_18 = arith.constant 0.000000e+00 : f32
    %34 = vector.broadcast %cst_18 : f32 to vector<2x128xf32>
    %35 = tpu.concatenate %33, %32, %34 in 1 : vector<2x128xf32>, vector<2x256xf32>, vector<2x128xf32> -> vector<2x512xf32>
    %cst_19 = arith.constant 0.000000e+00 : f32
    %36 = vector.broadcast %cst_19 : f32 to vector<2x256xf32>
    %cst_20 = arith.constant 0.000000e+00 : f32
    %37 = vector.broadcast %cst_20 : f32 to vector<2x256xf32>
    %38 = vector.extract_strided_slice %2 {offsets = [0, 0], sizes = [2, 1], strides = [1, 1]} : vector<2x49xf32> to vector<2x1xf32>
    %39 = vector.extract_strided_slice %35 {offsets = [0, 77], sizes = [2, 256], strides = [1, 1]} : vector<2x512xf32> to vector<2x256xf32>
    %40 = vector.broadcast %38 : vector<2x1xf32> to vector<2x256xf32>
    %41 = arith.mulf %40, %39 : vector<2x256xf32>
    %42 = vector.extract_strided_slice %2 {offsets = [0, 7], sizes = [2, 1], strides = [1, 1]} : vector<2x49xf32> to vector<2x1xf32>
    %43 = vector.extract_strided_slice %35 {offsets = [0, 93], sizes = [2, 256], strides = [1, 1]} : vector<2x512xf32> to vector<2x256xf32>
    %44 = vector.broadcast %42 : vector<2x1xf32> to vector<2x256xf32>
    %45 = arith.mulf %44, %43 : vector<2x256xf32>
    %46 = arith.addf %41, %45 : vector<2x256xf32>
    %47 = vector.extract_strided_slice %2 {offsets = [0, 14], sizes = [2, 1], strides = [1, 1]} : vector<2x49xf32> to vector<2x1xf32>
    %48 = vector.extract_strided_slice %35 {offsets = [0, 109], sizes = [2, 256], strides = [1, 1]} : vector<2x512xf32> to vector<2x256xf32>
    %49 = vector.broadcast %47 : vector<2x1xf32> to vector<2x256xf32>
    %50 = arith.mulf %49, %48 : vector<2x256xf32>
    %51 = arith.addf %46, %50 : vector<2x256xf32>
    %52 = vector.extract_strided_slice %2 {offsets = [0, 21], sizes = [2, 1], strides = [1, 1]} : vector<2x49xf32> to vector<2x1xf32>
    %53 = vector.extract_strided_slice %35 {offsets = [0, 125], sizes = [2, 256], strides = [1, 1]} : vector<2x512xf32> to vector<2x256xf32>
    %54 = vector.broadcast %52 : vector<2x1xf32> to vector<2x256xf32>
    %55 = arith.mulf %54, %53 : vector<2x256xf32>
    %56 = arith.addf %51, %55 : vector<2x256xf32>
    %57 = vector.extract_strided_slice %2 {offsets = [0, 28], sizes = [2, 1], strides = [1, 1]} : vector<2x49xf32> to vector<2x1xf32>
    %58 = vector.extract_strided_slice %35 {offsets = [0, 141], sizes = [2, 256], strides = [1, 1]} : vector<2x512xf32> to vector<2x256xf32>
    %59 = vector.broadcast %57 : vector<2x1xf32> to vector<2x256xf32>
    %60 = arith.mulf %59, %58 : vector<2x256xf32>
    %61 = arith.addf %56, %60 : vector<2x256xf32>
    %62 = vector.extract_strided_slice %2 {offsets = [0, 35], sizes = [2, 1], strides = [1, 1]} : vector<2x49xf32> to vector<2x1xf32>
    %63 = vector.extract_strided_slice %35 {offsets = [0, 157], sizes = [2, 256], strides = [1, 1]} : vector<2x512xf32> to vector<2x256xf32>
    %64 = vector.broadcast %62 : vector<2x1xf32> to vector<2x256xf32>
    %65 = arith.mulf %64, %63 : vector<2x256xf32>
    %66 = arith.addf %61, %65 : vector<2x256xf32>
    %67 = vector.extract_strided_slice %2 {offsets = [0, 42], sizes = [2, 1], strides = [1, 1]} : vector<2x49xf32> to vector<2x1xf32>
    %68 = vector.extract_strided_slice %35 {offsets = [0, 173], sizes = [2, 256], strides = [1, 1]} : vector<2x512xf32> to vector<2x256xf32>
    %69 = vector.broadcast %67 : vector<2x1xf32> to vector<2x256xf32>
    %70 = arith.mulf %69, %68 : vector<2x256xf32>
    %71 = arith.addf %66, %70 : vector<2x256xf32>
    %c0_21 = arith.constant 0 : index
    %c0_22 = arith.constant 0 : index
    %72 = vector.load %arg5[%c0_21, %c0_22] : memref<7x256xf32, #tpu.memory_space<vmem>>, vector<1x256xf32>
    %73 = vector.broadcast %72 : vector<1x256xf32> to vector<2x256xf32>
    %74 = arith.mulf %71, %73 : vector<2x256xf32>
    %75 = arith.addf %36, %74 : vector<2x256xf32>
    %76 = vector.extract_strided_slice %2 {offsets = [0, 1], sizes = [2, 1], strides = [1, 1]} : vector<2x49xf32> to vector<2x1xf32>
    %77 = vector.extract_strided_slice %35 {offsets = [0, 78], sizes = [2, 256], strides = [1, 1]} : vector<2x512xf32> to vector<2x256xf32>
    %78 = vector.broadcast %76 : vector<2x1xf32> to vector<2x256xf32>
    %79 = arith.mulf %78, %77 : vector<2x256xf32>
    %80 = vector.extract_strided_slice %2 {offsets = [0, 8], sizes = [2, 1], strides = [1, 1]} : vector<2x49xf32> to vector<2x1xf32>
    %81 = vector.extract_strided_slice %35 {offsets = [0, 94], sizes = [2, 256], strides = [1, 1]} : vector<2x512xf32> to vector<2x256xf32>
    %82 = vector.broadcast %80 : vector<2x1xf32> to vector<2x256xf32>
    %83 = arith.mulf %82, %81 : vector<2x256xf32>
    %84 = arith.addf %79, %83 : vector<2x256xf32>
    %85 = vector.extract_strided_slice %2 {offsets = [0, 15], sizes = [2, 1], strides = [1, 1]} : vector<2x49xf32> to vector<2x1xf32>
    %86 = vector.extract_strided_slice %35 {offsets = [0, 110], sizes = [2, 256], strides = [1, 1]} : vector<2x512xf32> to vector<2x256xf32>
    %87 = vector.broadcast %85 : vector<2x1xf32> to vector<2x256xf32>
    %88 = arith.mulf %87, %86 : vector<2x256xf32>
    %89 = arith.addf %84, %88 : vector<2x256xf32>
    %90 = vector.extract_strided_slice %2 {offsets = [0, 22], sizes = [2, 1], strides = [1, 1]} : vector<2x49xf32> to vector<2x1xf32>
    %91 = vector.extract_strided_slice %35 {offsets = [0, 126], sizes = [2, 256], strides = [1, 1]} : vector<2x512xf32> to vector<2x256xf32>
    %92 = vector.broadcast %90 : vector<2x1xf32> to vector<2x256xf32>
    %93 = arith.mulf %92, %91 : vector<2x256xf32>
    %94 = arith.addf %89, %93 : vector<2x256xf32>
    %95 = vector.extract_strided_slice %2 {offsets = [0, 29], sizes = [2, 1], strides = [1, 1]} : vector<2x49xf32> to vector<2x1xf32>
    %96 = vector.extract_strided_slice %35 {offsets = [0, 142], sizes = [2, 256], strides = [1, 1]} : vector<2x512xf32> to vector<2x256xf32>
    %97 = vector.broadcast %95 : vector<2x1xf32> to vector<2x256xf32>
    %98 = arith.mulf %97, %96 : vector<2x256xf32>
    %99 = arith.addf %94, %98 : vector<2x256xf32>
    %100 = vector.extract_strided_slice %2 {offsets = [0, 36], sizes = [2, 1], strides = [1, 1]} : vector<2x49xf32> to vector<2x1xf32>
    %101 = vector.extract_strided_slice %35 {offsets = [0, 158], sizes = [2, 256], strides = [1, 1]} : vector<2x512xf32> to vector<2x256xf32>
    %102 = vector.broadcast %100 : vector<2x1xf32> to vector<2x256xf32>
    %103 = arith.mulf %102, %101 : vector<2x256xf32>
    %104 = arith.addf %99, %103 : vector<2x256xf32>
    %105 = vector.extract_strided_slice %2 {offsets = [0, 43], sizes = [2, 1], strides = [1, 1]} : vector<2x49xf32> to vector<2x1xf32>
    %106 = vector.extract_strided_slice %35 {offsets = [0, 174], sizes = [2, 256], strides = [1, 1]} : vector<2x512xf32> to vector<2x256xf32>
    %107 = vector.broadcast %105 : vector<2x1xf32> to vector<2x256xf32>
    %108 = arith.mulf %107, %106 : vector<2x256xf32>
    %109 = arith.addf %104, %108 : vector<2x256xf32>
    %c1 = arith.constant 1 : index
    %c0_23 = arith.constant 0 : index
    %110 = vector.load %arg5[%c1, %c0_23] : memref<7x256xf32, #tpu.memory_space<vmem>>, vector<1x256xf32>
    %111 = vector.broadcast %110 : vector<1x256xf32> to vector<2x256xf32>
    %112 = arith.mulf %109, %111 : vector<2x256xf32>
    %113 = arith.addf %37, %112 : vector<2x256xf32>
    %114 = vector.extract_strided_slice %2 {offsets = [0, 2], sizes = [2, 1], strides = [1, 1]} : vector<2x49xf32> to vector<2x1xf32>
    %115 = vector.extract_strided_slice %35 {offsets = [0, 79], sizes = [2, 256], strides = [1, 1]} : vector<2x512xf32> to vector<2x256xf32>
    %116 = vector.broadcast %114 : vector<2x1xf32> to vector<2x256xf32>
    %117 = arith.mulf %116, %115 : vector<2x256xf32>
    %118 = vector.extract_strided_slice %2 {offsets = [0, 9], sizes = [2, 1], strides = [1, 1]} : vector<2x49xf32> to vector<2x1xf32>
    %119 = vector.extract_strided_slice %35 {offsets = [0, 95], sizes = [2, 256], strides = [1, 1]} : vector<2x512xf32> to vector<2x256xf32>
    %120 = vector.broadcast %118 : vector<2x1xf32> to vector<2x256xf32>
    %121 = arith.mulf %120, %119 : vector<2x256xf32>
    %122 = arith.addf %117, %121 : vector<2x256xf32>
    %123 = vector.extract_strided_slice %2 {offsets = [0, 16], sizes = [2, 1], strides = [1, 1]} : vector<2x49xf32> to vector<2x1xf32>
    %124 = vector.extract_strided_slice %35 {offsets = [0, 111], sizes = [2, 256], strides = [1, 1]} : vector<2x512xf32> to vector<2x256xf32>
    %125 = vector.broadcast %123 : vector<2x1xf32> to vector<2x256xf32>
    %126 = arith.mulf %125, %124 : vector<2x256xf32>
    %127 = arith.addf %122, %126 : vector<2x256xf32>
    %128 = vector.extract_strided_slice %2 {offsets = [0, 23], sizes = [2, 1], strides = [1, 1]} : vector<2x49xf32> to vector<2x1xf32>
    %129 = vector.extract_strided_slice %35 {offsets = [0, 127], sizes = [2, 256], strides = [1, 1]} : vector<2x512xf32> to vector<2x256xf32>
    %130 = vector.broadcast %128 : vector<2x1xf32> to vector<2x256xf32>
    %131 = arith.mulf %130, %129 : vector<2x256xf32>
    %132 = arith.addf %127, %131 : vector<2x256xf32>
    %133 = vector.extract_strided_slice %2 {offsets = [0, 30], sizes = [2, 1], strides = [1, 1]} : vector<2x49xf32> to vector<2x1xf32>
    %134 = vector.extract_strided_slice %35 {offsets = [0, 143], sizes = [2, 256], strides = [1, 1]} : vector<2x512xf32> to vector<2x256xf32>
    %135 = vector.broadcast %133 : vector<2x1xf32> to vector<2x256xf32>
    %136 = arith.mulf %135, %134 : vector<2x256xf32>
    %137 = arith.addf %132, %136 : vector<2x256xf32>
    %138 = vector.extract_strided_slice %2 {offsets = [0, 37], sizes = [2, 1], strides = [1, 1]} : vector<2x49xf32> to vector<2x1xf32>
    %139 = vector.extract_strided_slice %35 {offsets = [0, 159], sizes = [2, 256], strides = [1, 1]} : vector<2x512xf32> to vector<2x256xf32>
    %140 = vector.broadcast %138 : vector<2x1xf32> to vector<2x256xf32>
    %141 = arith.mulf %140, %139 : vector<2x256xf32>
    %142 = arith.addf %137, %141 : vector<2x256xf32>
    %143 = vector.extract_strided_slice %2 {offsets = [0, 44], sizes = [2, 1], strides = [1, 1]} : vector<2x49xf32> to vector<2x1xf32>
    %144 = vector.extract_strided_slice %35 {offsets = [0, 175], sizes = [2, 256], strides = [1, 1]} : vector<2x512xf32> to vector<2x256xf32>
    %145 = vector.broadcast %143 : vector<2x1xf32> to vector<2x256xf32>
    %146 = arith.mulf %145, %144 : vector<2x256xf32>
    %147 = arith.addf %142, %146 : vector<2x256xf32>
    %c2 = arith.constant 2 : index
    %c0_24 = arith.constant 0 : index
    %148 = vector.load %arg5[%c2, %c0_24] : memref<7x256xf32, #tpu.memory_space<vmem>>, vector<1x256xf32>
    %149 = vector.broadcast %148 : vector<1x256xf32> to vector<2x256xf32>
    %150 = arith.mulf %147, %149 : vector<2x256xf32>
    %151 = arith.addf %75, %150 : vector<2x256xf32>
    %152 = vector.extract_strided_slice %2 {offsets = [0, 3], sizes = [2, 1], strides = [1, 1]} : vector<2x49xf32> to vector<2x1xf32>
    %153 = vector.extract_strided_slice %35 {offsets = [0, 80], sizes = [2, 256], strides = [1, 1]} : vector<2x512xf32> to vector<2x256xf32>
    %154 = vector.broadcast %152 : vector<2x1xf32> to vector<2x256xf32>
    %155 = arith.mulf %154, %153 : vector<2x256xf32>
    %156 = vector.extract_strided_slice %2 {offsets = [0, 10], sizes = [2, 1], strides = [1, 1]} : vector<2x49xf32> to vector<2x1xf32>
    %157 = vector.extract_strided_slice %35 {offsets = [0, 96], sizes = [2, 256], strides = [1, 1]} : vector<2x512xf32> to vector<2x256xf32>
    %158 = vector.broadcast %156 : vector<2x1xf32> to vector<2x256xf32>
    %159 = arith.mulf %158, %157 : vector<2x256xf32>
    %160 = arith.addf %155, %159 : vector<2x256xf32>
    %161 = vector.extract_strided_slice %2 {offsets = [0, 17], sizes = [2, 1], strides = [1, 1]} : vector<2x49xf32> to vector<2x1xf32>
    %162 = vector.extract_strided_slice %35 {offsets = [0, 112], sizes = [2, 256], strides = [1, 1]} : vector<2x512xf32> to vector<2x256xf32>
    %163 = vector.broadcast %161 : vector<2x1xf32> to vector<2x256xf32>
    %164 = arith.mulf %163, %162 : vector<2x256xf32>
    %165 = arith.addf %160, %164 : vector<2x256xf32>
    %166 = vector.extract_strided_slice %2 {offsets = [0, 24], sizes = [2, 1], strides = [1, 1]} : vector<2x49xf32> to vector<2x1xf32>
    %167 = vector.extract_strided_slice %35 {offsets = [0, 128], sizes = [2, 256], strides = [1, 1]} : vector<2x512xf32> to vector<2x256xf32>
    %168 = vector.broadcast %166 : vector<2x1xf32> to vector<2x256xf32>
    %169 = arith.mulf %168, %167 : vector<2x256xf32>
    %170 = arith.addf %165, %169 : vector<2x256xf32>
    %171 = vector.extract_strided_slice %2 {offsets = [0, 31], sizes = [2, 1], strides = [1, 1]} : vector<2x49xf32> to vector<2x1xf32>
    %172 = vector.extract_strided_slice %35 {offsets = [0, 144], sizes = [2, 256], strides = [1, 1]} : vector<2x512xf32> to vector<2x256xf32>
    %173 = vector.broadcast %171 : vector<2x1xf32> to vector<2x256xf32>
    %174 = arith.mulf %173, %172 : vector<2x256xf32>
    %175 = arith.addf %170, %174 : vector<2x256xf32>
    %176 = vector.extract_strided_slice %2 {offsets = [0, 38], sizes = [2, 1], strides = [1, 1]} : vector<2x49xf32> to vector<2x1xf32>
    %177 = vector.extract_strided_slice %35 {offsets = [0, 160], sizes = [2, 256], strides = [1, 1]} : vector<2x512xf32> to vector<2x256xf32>
    %178 = vector.broadcast %176 : vector<2x1xf32> to vector<2x256xf32>
    %179 = arith.mulf %178, %177 : vector<2x256xf32>
    %180 = arith.addf %175, %179 : vector<2x256xf32>
    %181 = vector.extract_strided_slice %2 {offsets = [0, 45], sizes = [2, 1], strides = [1, 1]} : vector<2x49xf32> to vector<2x1xf32>
    %182 = vector.extract_strided_slice %35 {offsets = [0, 176], sizes = [2, 256], strides = [1, 1]} : vector<2x512xf32> to vector<2x256xf32>
    %183 = vector.broadcast %181 : vector<2x1xf32> to vector<2x256xf32>
    %184 = arith.mulf %183, %182 : vector<2x256xf32>
    %185 = arith.addf %180, %184 : vector<2x256xf32>
    %186 = arith.addf %113, %185 : vector<2x256xf32>
    %187 = vector.extract_strided_slice %2 {offsets = [0, 4], sizes = [2, 1], strides = [1, 1]} : vector<2x49xf32> to vector<2x1xf32>
    %188 = vector.extract_strided_slice %35 {offsets = [0, 81], sizes = [2, 256], strides = [1, 1]} : vector<2x512xf32> to vector<2x256xf32>
    %189 = vector.broadcast %187 : vector<2x1xf32> to vector<2x256xf32>
    %190 = arith.mulf %189, %188 : vector<2x256xf32>
    %191 = vector.extract_strided_slice %2 {offsets = [0, 11], sizes = [2, 1], strides = [1, 1]} : vector<2x49xf32> to vector<2x1xf32>
    %192 = vector.extract_strided_slice %35 {offsets = [0, 97], sizes = [2, 256], strides = [1, 1]} : vector<2x512xf32> to vector<2x256xf32>
    %193 = vector.broadcast %191 : vector<2x1xf32> to vector<2x256xf32>
    %194 = arith.mulf %193, %192 : vector<2x256xf32>
    %195 = arith.addf %190, %194 : vector<2x256xf32>
    %196 = vector.extract_strided_slice %2 {offsets = [0, 18], sizes = [2, 1], strides = [1, 1]} : vector<2x49xf32> to vector<2x1xf32>
    %197 = vector.extract_strided_slice %35 {offsets = [0, 113], sizes = [2, 256], strides = [1, 1]} : vector<2x512xf32> to vector<2x256xf32>
    %198 = vector.broadcast %196 : vector<2x1xf32> to vector<2x256xf32>
    %199 = arith.mulf %198, %197 : vector<2x256xf32>
    %200 = arith.addf %195, %199 : vector<2x256xf32>
    %201 = vector.extract_strided_slice %2 {offsets = [0, 25], sizes = [2, 1], strides = [1, 1]} : vector<2x49xf32> to vector<2x1xf32>
    %202 = vector.extract_strided_slice %35 {offsets = [0, 129], sizes = [2, 256], strides = [1, 1]} : vector<2x512xf32> to vector<2x256xf32>
    %203 = vector.broadcast %201 : vector<2x1xf32> to vector<2x256xf32>
    %204 = arith.mulf %203, %202 : vector<2x256xf32>
    %205 = arith.addf %200, %204 : vector<2x256xf32>
    %206 = vector.extract_strided_slice %2 {offsets = [0, 32], sizes = [2, 1], strides = [1, 1]} : vector<2x49xf32> to vector<2x1xf32>
    %207 = vector.extract_strided_slice %35 {offsets = [0, 145], sizes = [2, 256], strides = [1, 1]} : vector<2x512xf32> to vector<2x256xf32>
    %208 = vector.broadcast %206 : vector<2x1xf32> to vector<2x256xf32>
    %209 = arith.mulf %208, %207 : vector<2x256xf32>
    %210 = arith.addf %205, %209 : vector<2x256xf32>
    %211 = vector.extract_strided_slice %2 {offsets = [0, 39], sizes = [2, 1], strides = [1, 1]} : vector<2x49xf32> to vector<2x1xf32>
    %212 = vector.extract_strided_slice %35 {offsets = [0, 161], sizes = [2, 256], strides = [1, 1]} : vector<2x512xf32> to vector<2x256xf32>
    %213 = vector.broadcast %211 : vector<2x1xf32> to vector<2x256xf32>
    %214 = arith.mulf %213, %212 : vector<2x256xf32>
    %215 = arith.addf %210, %214 : vector<2x256xf32>
    %216 = vector.extract_strided_slice %2 {offsets = [0, 46], sizes = [2, 1], strides = [1, 1]} : vector<2x49xf32> to vector<2x1xf32>
    %217 = vector.extract_strided_slice %35 {offsets = [0, 177], sizes = [2, 256], strides = [1, 1]} : vector<2x512xf32> to vector<2x256xf32>
    %218 = vector.broadcast %216 : vector<2x1xf32> to vector<2x256xf32>
    %219 = arith.mulf %218, %217 : vector<2x256xf32>
    %220 = arith.addf %215, %219 : vector<2x256xf32>
    %c4 = arith.constant 4 : index
    %c0_25 = arith.constant 0 : index
    %221 = vector.load %arg5[%c4, %c0_25] : memref<7x256xf32, #tpu.memory_space<vmem>>, vector<1x256xf32>
    %222 = vector.broadcast %221 : vector<1x256xf32> to vector<2x256xf32>
    %223 = arith.mulf %220, %222 : vector<2x256xf32>
    %224 = arith.addf %151, %223 : vector<2x256xf32>
    %225 = vector.extract_strided_slice %2 {offsets = [0, 5], sizes = [2, 1], strides = [1, 1]} : vector<2x49xf32> to vector<2x1xf32>
    %226 = vector.extract_strided_slice %35 {offsets = [0, 82], sizes = [2, 256], strides = [1, 1]} : vector<2x512xf32> to vector<2x256xf32>
    %227 = vector.broadcast %225 : vector<2x1xf32> to vector<2x256xf32>
    %228 = arith.mulf %227, %226 : vector<2x256xf32>
    %229 = vector.extract_strided_slice %2 {offsets = [0, 12], sizes = [2, 1], strides = [1, 1]} : vector<2x49xf32> to vector<2x1xf32>
    %230 = vector.extract_strided_slice %35 {offsets = [0, 98], sizes = [2, 256], strides = [1, 1]} : vector<2x512xf32> to vector<2x256xf32>
    %231 = vector.broadcast %229 : vector<2x1xf32> to vector<2x256xf32>
    %232 = arith.mulf %231, %230 : vector<2x256xf32>
    %233 = arith.addf %228, %232 : vector<2x256xf32>
    %234 = vector.extract_strided_slice %2 {offsets = [0, 19], sizes = [2, 1], strides = [1, 1]} : vector<2x49xf32> to vector<2x1xf32>
    %235 = vector.extract_strided_slice %35 {offsets = [0, 114], sizes = [2, 256], strides = [1, 1]} : vector<2x512xf32> to vector<2x256xf32>
    %236 = vector.broadcast %234 : vector<2x1xf32> to vector<2x256xf32>
    %237 = arith.mulf %236, %235 : vector<2x256xf32>
    %238 = arith.addf %233, %237 : vector<2x256xf32>
    %239 = vector.extract_strided_slice %2 {offsets = [0, 26], sizes = [2, 1], strides = [1, 1]} : vector<2x49xf32> to vector<2x1xf32>
    %240 = vector.extract_strided_slice %35 {offsets = [0, 130], sizes = [2, 256], strides = [1, 1]} : vector<2x512xf32> to vector<2x256xf32>
    %241 = vector.broadcast %239 : vector<2x1xf32> to vector<2x256xf32>
    %242 = arith.mulf %241, %240 : vector<2x256xf32>
    %243 = arith.addf %238, %242 : vector<2x256xf32>
    %244 = vector.extract_strided_slice %2 {offsets = [0, 33], sizes = [2, 1], strides = [1, 1]} : vector<2x49xf32> to vector<2x1xf32>
    %245 = vector.extract_strided_slice %35 {offsets = [0, 146], sizes = [2, 256], strides = [1, 1]} : vector<2x512xf32> to vector<2x256xf32>
    %246 = vector.broadcast %244 : vector<2x1xf32> to vector<2x256xf32>
    %247 = arith.mulf %246, %245 : vector<2x256xf32>
    %248 = arith.addf %243, %247 : vector<2x256xf32>
    %249 = vector.extract_strided_slice %2 {offsets = [0, 40], sizes = [2, 1], strides = [1, 1]} : vector<2x49xf32> to vector<2x1xf32>
    %250 = vector.extract_strided_slice %35 {offsets = [0, 162], sizes = [2, 256], strides = [1, 1]} : vector<2x512xf32> to vector<2x256xf32>
    %251 = vector.broadcast %249 : vector<2x1xf32> to vector<2x256xf32>
    %252 = arith.mulf %251, %250 : vector<2x256xf32>
    %253 = arith.addf %248, %252 : vector<2x256xf32>
    %254 = vector.extract_strided_slice %2 {offsets = [0, 47], sizes = [2, 1], strides = [1, 1]} : vector<2x49xf32> to vector<2x1xf32>
    %255 = vector.extract_strided_slice %35 {offsets = [0, 178], sizes = [2, 256], strides = [1, 1]} : vector<2x512xf32> to vector<2x256xf32>
    %256 = vector.broadcast %254 : vector<2x1xf32> to vector<2x256xf32>
    %257 = arith.mulf %256, %255 : vector<2x256xf32>
    %258 = arith.addf %253, %257 : vector<2x256xf32>
    %c5 = arith.constant 5 : index
    %c0_26 = arith.constant 0 : index
    %259 = vector.load %arg5[%c5, %c0_26] : memref<7x256xf32, #tpu.memory_space<vmem>>, vector<1x256xf32>
    %260 = vector.broadcast %259 : vector<1x256xf32> to vector<2x256xf32>
    %261 = arith.mulf %258, %260 : vector<2x256xf32>
    %262 = arith.addf %186, %261 : vector<2x256xf32>
    %263 = vector.extract_strided_slice %2 {offsets = [0, 6], sizes = [2, 1], strides = [1, 1]} : vector<2x49xf32> to vector<2x1xf32>
    %264 = vector.extract_strided_slice %35 {offsets = [0, 83], sizes = [2, 256], strides = [1, 1]} : vector<2x512xf32> to vector<2x256xf32>
    %265 = vector.broadcast %263 : vector<2x1xf32> to vector<2x256xf32>
    %266 = arith.mulf %265, %264 : vector<2x256xf32>
    %267 = vector.extract_strided_slice %2 {offsets = [0, 13], sizes = [2, 1], strides = [1, 1]} : vector<2x49xf32> to vector<2x1xf32>
    %268 = vector.extract_strided_slice %35 {offsets = [0, 99], sizes = [2, 256], strides = [1, 1]} : vector<2x512xf32> to vector<2x256xf32>
    %269 = vector.broadcast %267 : vector<2x1xf32> to vector<2x256xf32>
    %270 = arith.mulf %269, %268 : vector<2x256xf32>
    %271 = arith.addf %266, %270 : vector<2x256xf32>
    %272 = vector.extract_strided_slice %2 {offsets = [0, 20], sizes = [2, 1], strides = [1, 1]} : vector<2x49xf32> to vector<2x1xf32>
    %273 = vector.extract_strided_slice %35 {offsets = [0, 115], sizes = [2, 256], strides = [1, 1]} : vector<2x512xf32> to vector<2x256xf32>
    %274 = vector.broadcast %272 : vector<2x1xf32> to vector<2x256xf32>
    %275 = arith.mulf %274, %273 : vector<2x256xf32>
    %276 = arith.addf %271, %275 : vector<2x256xf32>
    %277 = vector.extract_strided_slice %2 {offsets = [0, 27], sizes = [2, 1], strides = [1, 1]} : vector<2x49xf32> to vector<2x1xf32>
    %278 = vector.extract_strided_slice %35 {offsets = [0, 131], sizes = [2, 256], strides = [1, 1]} : vector<2x512xf32> to vector<2x256xf32>
    %279 = vector.broadcast %277 : vector<2x1xf32> to vector<2x256xf32>
    %280 = arith.mulf %279, %278 : vector<2x256xf32>
    %281 = arith.addf %276, %280 : vector<2x256xf32>
    %282 = vector.extract_strided_slice %2 {offsets = [0, 34], sizes = [2, 1], strides = [1, 1]} : vector<2x49xf32> to vector<2x1xf32>
    %283 = vector.extract_strided_slice %35 {offsets = [0, 147], sizes = [2, 256], strides = [1, 1]} : vector<2x512xf32> to vector<2x256xf32>
    %284 = vector.broadcast %282 : vector<2x1xf32> to vector<2x256xf32>
    %285 = arith.mulf %284, %283 : vector<2x256xf32>
    %286 = arith.addf %281, %285 : vector<2x256xf32>
    %287 = vector.extract_strided_slice %2 {offsets = [0, 41], sizes = [2, 1], strides = [1, 1]} : vector<2x49xf32> to vector<2x1xf32>
    %288 = vector.extract_strided_slice %35 {offsets = [0, 163], sizes = [2, 256], strides = [1, 1]} : vector<2x512xf32> to vector<2x256xf32>
    %289 = vector.broadcast %287 : vector<2x1xf32> to vector<2x256xf32>
    %290 = arith.mulf %289, %288 : vector<2x256xf32>
    %291 = arith.addf %286, %290 : vector<2x256xf32>
    %292 = vector.extract_strided_slice %2 {offsets = [0, 48], sizes = [2, 1], strides = [1, 1]} : vector<2x49xf32> to vector<2x1xf32>
    %293 = vector.extract_strided_slice %35 {offsets = [0, 179], sizes = [2, 256], strides = [1, 1]} : vector<2x512xf32> to vector<2x256xf32>
    %294 = vector.broadcast %292 : vector<2x1xf32> to vector<2x256xf32>
    %295 = arith.mulf %294, %293 : vector<2x256xf32>
    %296 = arith.addf %291, %295 : vector<2x256xf32>
    %c6 = arith.constant 6 : index
    %c0_27 = arith.constant 0 : index
    %297 = vector.load %arg5[%c6, %c0_27] : memref<7x256xf32, #tpu.memory_space<vmem>>, vector<1x256xf32>
    %298 = vector.broadcast %297 : vector<1x256xf32> to vector<2x256xf32>
    %299 = arith.mulf %296, %298 : vector<2x256xf32>
    %300 = arith.addf %224, %299 : vector<2x256xf32>
    %301 = arith.addf %300, %262 : vector<2x256xf32>
    %302 = vector.extract_strided_slice %301 {offsets = [0, 0], sizes = [1, 256], strides = [1, 1]} : vector<2x256xf32> to vector<1x256xf32>
    %303 = vector.extract_strided_slice %301 {offsets = [1, 0], sizes = [1, 256], strides = [1, 1]} : vector<2x256xf32> to vector<1x256xf32>
    %304 = arith.addf %302, %303 : vector<1x256xf32>
    %305 = arith.negf %304 : vector<1x256xf32>
    %306 = math.exp %305 : vector<1x256xf32>
    %cst_28 = arith.constant 1.000000e+00 : f32
    %307 = vector.broadcast %cst_28 : f32 to vector<1x256xf32>
    %308 = arith.addf %307, %306 : vector<1x256xf32>
    %309 = arith.divf %307, %308 : vector<1x256xf32>
    %310 = vector.broadcast %23 : vector<32x1xf32> to vector<32x256xf32>
    %311 = arith.mulf %4, %310 : vector<32x256xf32>
    %312 = vector.broadcast %309 : vector<1x256xf32> to vector<32x256xf32>
    %313 = arith.mulf %311, %312 : vector<32x256xf32>
    %c0_29 = arith.constant 0 : index
    %c0_30 = arith.constant 0 : index
    %c0_31 = arith.constant 0 : index
    %314 = vector.load %arg6[%c0_29, %c0_30, %c0_31] : memref<2x32x256xf32, #tpu.memory_space<vmem>>, vector<1x32x256xf32>
    %315 = vector.shape_cast %314 : vector<1x32x256xf32> to vector<32x256xf32>
    %316 = vector.shape_cast %313 : vector<32x256xf32> to vector<1x32x256xf32>
    tpu.vector_store %arg6[%c0_29, %c0_30, %c0_31], %316 {strides = array<i32>} : memref<2x32x256xf32, #tpu.memory_space<vmem>>, vector<1x32x256xf32>,
    %cst_32 = arith.constant dense<0.000000e+00> : vector<32xf32>
    %317 = vector.multi_reduction <add>, %313, %cst_32 [1] : vector<32x256xf32> to vector<32xf32>
    %318 = vector.shape_cast %317 : vector<32xf32> to vector<32x1xf32>
    %cst_33 = arith.constant 3.906250e-03 : f32
    %319 = vector.broadcast %cst_33 : f32 to vector<32x1xf32>
    %320 = arith.mulf %318, %319 : vector<32x1xf32>
    %c0_34 = arith.constant 0 : index
    %c0_35 = arith.constant 0 : index
    %c0_36 = arith.constant 0 : index
    %321 = vector.load %arg7[%c0_34, %c0_35, %c0_36] : memref<2x32x1xf32, #tpu.memory_space<vmem>>, vector<1x32x1xf32>
    %322 = vector.shape_cast %321 : vector<1x32x1xf32> to vector<32x1xf32>
    %323 = vector.shape_cast %320 : vector<32x1xf32> to vector<1x32x1xf32>
    tpu.vector_store %arg7[%c0_34, %c0_35, %c0_36], %323 {strides = array<i32>} : memref<2x32x1xf32, #tpu.memory_space<vmem>>, vector<1x32x1xf32>,
    %c1_37 = arith.constant 1 : index
    %c0_38 = arith.constant 0 : index
    %c0_39 = arith.constant 0 : index
    %324 = vector.load %arg1[%c1_37, %c0_38, %c0_39] : memref<2x32x256xf32, #tpu.memory_space<vmem>>, vector<1x32x256xf32>
    %325 = vector.shape_cast %324 : vector<1x32x256xf32> to vector<32x256xf32>
    %cst_40 = arith.constant dense<0.000000e+00> : vector<32xf32>
    %326 = vector.multi_reduction <add>, %325, %cst_40 [1] : vector<32x256xf32> to vector<32xf32>
    %327 = vector.shape_cast %326 : vector<32xf32> to vector<32x1xf32>
    %cst_41 = arith.constant 3.906250e-03 : f32
    %328 = vector.broadcast %cst_41 : f32 to vector<32x1xf32>
    %329 = arith.mulf %327, %328 : vector<32x1xf32>
    %cst_42 = arith.constant dense<0xFF800000> : vector<32xf32>
    %330 = vector.multi_reduction <maximumf>, %325, %cst_42 [1] : vector<32x256xf32> to vector<32xf32>
    %331 = vector.shape_cast %330 : vector<32xf32> to vector<32x1xf32>
    %332 = tpu.concatenate %329, %331 in 1 : vector<32x1xf32>, vector<32x1xf32> -> vector<32x2xf32>
    %cst_43 = arith.constant dense<0.000000e+00> : vector<2x2xf32>
    %333 = tpu.matmul %0, %332, %cst_43 {dimension_numbers = #tpu.dot_dimension_numbers<[1], [0], [0], [1], [0, 0, 1, 1], [], []>, precision = #tpu.contract_precision<fp32>} : vector<2x32xf32>, vector<32x2xf32>, vector<2x2xf32> -> vector<2x2xf32>
    %cst_44 = arith.constant 0.000000e+00 : f32
    %334 = vector.broadcast %cst_44 : f32 to vector<2x2xf32>
    %335 = arith.maximumf %333, %334 : vector<2x2xf32>
    %cst_45 = arith.constant dense<0.000000e+00> : vector<32x2xf32>
    %336 = tpu.matmul %1, %335, %cst_45 {dimension_numbers = #tpu.dot_dimension_numbers<[1], [0], [0], [1], [0, 0, 1, 1], [], []>, precision = #tpu.contract_precision<fp32>} : vector<32x2xf32>, vector<2x2xf32>, vector<32x2xf32> -> vector<32x2xf32>
    %337 = vector.extract_strided_slice %336 {offsets = [0, 0], sizes = [32, 1], strides = [1, 1]} : vector<32x2xf32> to vector<32x1xf32>
    %338 = vector.extract_strided_slice %336 {offsets = [0, 1], sizes = [32, 1], strides = [1, 1]} : vector<32x2xf32> to vector<32x1xf32>
    %339 = arith.addf %337, %338 : vector<32x1xf32>
    %340 = arith.negf %339 : vector<32x1xf32>
    %341 = math.exp %340 : vector<32x1xf32>
    %cst_46 = arith.constant 1.000000e+00 : f32
    %342 = vector.broadcast %cst_46 : f32 to vector<32x1xf32>
    %343 = arith.addf %342, %341 : vector<32x1xf32>
    %344 = arith.divf %342, %343 : vector<32x1xf32>
    %345 = vector.broadcast %344 : vector<32x1xf32> to vector<32x256xf32>
    %346 = arith.mulf %325, %345 : vector<32x256xf32>
    %cst_47 = arith.constant dense<0.000000e+00> : vector<256xf32>
    %347 = vector.multi_reduction <add>, %346, %cst_47 [0] : vector<32x256xf32> to vector<256xf32>
    %348 = vector.shape_cast %347 : vector<256xf32> to vector<1x256xf32>
    %cst_48 = arith.constant 3.125000e-02 : f32
    %349 = vector.broadcast %cst_48 : f32 to vector<1x256xf32>
    %350 = arith.mulf %348, %349 : vector<1x256xf32>
    %cst_49 = arith.constant dense<0xFF800000> : vector<256xf32>
    %351 = vector.multi_reduction <maximumf>, %346, %cst_49 [0] : vector<32x256xf32> to vector<256xf32>
    %352 = vector.shape_cast %351 : vector<256xf32> to vector<1x256xf32>
    %353 = tpu.concatenate %350, %352 in 0 : vector<1x256xf32>, vector<1x256xf32> -> vector<2x256xf32>
    %cst_50 = arith.constant 0.000000e+00 : f32
    %354 = vector.broadcast %cst_50 : f32 to vector<2x128xf32>
    %cst_51 = arith.constant 0.000000e+00 : f32
    %355 = vector.broadcast %cst_51 : f32 to vector<2x128xf32>
    %356 = tpu.concatenate %354, %353, %355 in 1 : vector<2x128xf32>, vector<2x256xf32>, vector<2x128xf32> -> vector<2x512xf32>
    %cst_52 = arith.constant 0.000000e+00 : f32
    %357 = vector.broadcast %cst_52 : f32 to vector<2x256xf32>
    %cst_53 = arith.constant 0.000000e+00 : f32
    %358 = vector.broadcast %cst_53 : f32 to vector<2x256xf32>
    %359 = vector.extract_strided_slice %2 {offsets = [0, 0], sizes = [2, 1], strides = [1, 1]} : vector<2x49xf32> to vector<2x1xf32>
    %360 = vector.extract_strided_slice %356 {offsets = [0, 77], sizes = [2, 256], strides = [1, 1]} : vector<2x512xf32> to vector<2x256xf32>
    %361 = vector.broadcast %359 : vector<2x1xf32> to vector<2x256xf32>
    %362 = arith.mulf %361, %360 : vector<2x256xf32>
    %363 = vector.extract_strided_slice %2 {offsets = [0, 7], sizes = [2, 1], strides = [1, 1]} : vector<2x49xf32> to vector<2x1xf32>
    %364 = vector.extract_strided_slice %356 {offsets = [0, 93], sizes = [2, 256], strides = [1, 1]} : vector<2x512xf32> to vector<2x256xf32>
    %365 = vector.broadcast %363 : vector<2x1xf32> to vector<2x256xf32>
    %366 = arith.mulf %365, %364 : vector<2x256xf32>
    %367 = arith.addf %362, %366 : vector<2x256xf32>
    %368 = vector.extract_strided_slice %2 {offsets = [0, 14], sizes = [2, 1], strides = [1, 1]} : vector<2x49xf32> to vector<2x1xf32>
    %369 = vector.extract_strided_slice %356 {offsets = [0, 109], sizes = [2, 256], strides = [1, 1]} : vector<2x512xf32> to vector<2x256xf32>
    %370 = vector.broadcast %368 : vector<2x1xf32> to vector<2x256xf32>
    %371 = arith.mulf %370, %369 : vector<2x256xf32>
    %372 = arith.addf %367, %371 : vector<2x256xf32>
    %373 = vector.extract_strided_slice %2 {offsets = [0, 21], sizes = [2, 1], strides = [1, 1]} : vector<2x49xf32> to vector<2x1xf32>
    %374 = vector.extract_strided_slice %356 {offsets = [0, 125], sizes = [2, 256], strides = [1, 1]} : vector<2x512xf32> to vector<2x256xf32>
    %375 = vector.broadcast %373 : vector<2x1xf32> to vector<2x256xf32>
    %376 = arith.mulf %375, %374 : vector<2x256xf32>
    %377 = arith.addf %372, %376 : vector<2x256xf32>
    %378 = vector.extract_strided_slice %2 {offsets = [0, 28], sizes = [2, 1], strides = [1, 1]} : vector<2x49xf32> to vector<2x1xf32>
    %379 = vector.extract_strided_slice %356 {offsets = [0, 141], sizes = [2, 256], strides = [1, 1]} : vector<2x512xf32> to vector<2x256xf32>
    %380 = vector.broadcast %378 : vector<2x1xf32> to vector<2x256xf32>
    %381 = arith.mulf %380, %379 : vector<2x256xf32>
    %382 = arith.addf %377, %381 : vector<2x256xf32>
    %383 = vector.extract_strided_slice %2 {offsets = [0, 35], sizes = [2, 1], strides = [1, 1]} : vector<2x49xf32> to vector<2x1xf32>
    %384 = vector.extract_strided_slice %356 {offsets = [0, 157], sizes = [2, 256], strides = [1, 1]} : vector<2x512xf32> to vector<2x256xf32>
    %385 = vector.broadcast %383 : vector<2x1xf32> to vector<2x256xf32>
    %386 = arith.mulf %385, %384 : vector<2x256xf32>
    %387 = arith.addf %382, %386 : vector<2x256xf32>
    %388 = vector.extract_strided_slice %2 {offsets = [0, 42], sizes = [2, 1], strides = [1, 1]} : vector<2x49xf32> to vector<2x1xf32>
    %389 = vector.extract_strided_slice %356 {offsets = [0, 173], sizes = [2, 256], strides = [1, 1]} : vector<2x512xf32> to vector<2x256xf32>
    %390 = vector.broadcast %388 : vector<2x1xf32> to vector<2x256xf32>
    %391 = arith.mulf %390, %389 : vector<2x256xf32>
    %392 = arith.addf %387, %391 : vector<2x256xf32>
    %c0_54 = arith.constant 0 : index
    %c0_55 = arith.constant 0 : index
    %393 = vector.load %arg5[%c0_54, %c0_55] : memref<7x256xf32, #tpu.memory_space<vmem>>, vector<1x256xf32>
    %394 = vector.broadcast %393 : vector<1x256xf32> to vector<2x256xf32>
    %395 = arith.mulf %392, %394 : vector<2x256xf32>
    %396 = arith.addf %357, %395 : vector<2x256xf32>
    %397 = vector.extract_strided_slice %2 {offsets = [0, 1], sizes = [2, 1], strides = [1, 1]} : vector<2x49xf32> to vector<2x1xf32>
    %398 = vector.extract_strided_slice %356 {offsets = [0, 78], sizes = [2, 256], strides = [1, 1]} : vector<2x512xf32> to vector<2x256xf32>
    %399 = vector.broadcast %397 : vector<2x1xf32> to vector<2x256xf32>
    %400 = arith.mulf %399, %398 : vector<2x256xf32>
    %401 = vector.extract_strided_slice %2 {offsets = [0, 8], sizes = [2, 1], strides = [1, 1]} : vector<2x49xf32> to vector<2x1xf32>
    %402 = vector.extract_strided_slice %356 {offsets = [0, 94], sizes = [2, 256], strides = [1, 1]} : vector<2x512xf32> to vector<2x256xf32>
    %403 = vector.broadcast %401 : vector<2x1xf32> to vector<2x256xf32>
    %404 = arith.mulf %403, %402 : vector<2x256xf32>
    %405 = arith.addf %400, %404 : vector<2x256xf32>
    %406 = vector.extract_strided_slice %2 {offsets = [0, 15], sizes = [2, 1], strides = [1, 1]} : vector<2x49xf32> to vector<2x1xf32>
    %407 = vector.extract_strided_slice %356 {offsets = [0, 110], sizes = [2, 256], strides = [1, 1]} : vector<2x512xf32> to vector<2x256xf32>
    %408 = vector.broadcast %406 : vector<2x1xf32> to vector<2x256xf32>
    %409 = arith.mulf %408, %407 : vector<2x256xf32>
    %410 = arith.addf %405, %409 : vector<2x256xf32>
    %411 = vector.extract_strided_slice %2 {offsets = [0, 22], sizes = [2, 1], strides = [1, 1]} : vector<2x49xf32> to vector<2x1xf32>
    %412 = vector.extract_strided_slice %356 {offsets = [0, 126], sizes = [2, 256], strides = [1, 1]} : vector<2x512xf32> to vector<2x256xf32>
    %413 = vector.broadcast %411 : vector<2x1xf32> to vector<2x256xf32>
    %414 = arith.mulf %413, %412 : vector<2x256xf32>
    %415 = arith.addf %410, %414 : vector<2x256xf32>
    %416 = vector.extract_strided_slice %2 {offsets = [0, 29], sizes = [2, 1], strides = [1, 1]} : vector<2x49xf32> to vector<2x1xf32>
    %417 = vector.extract_strided_slice %356 {offsets = [0, 142], sizes = [2, 256], strides = [1, 1]} : vector<2x512xf32> to vector<2x256xf32>
    %418 = vector.broadcast %416 : vector<2x1xf32> to vector<2x256xf32>
    %419 = arith.mulf %418, %417 : vector<2x256xf32>
    %420 = arith.addf %415, %419 : vector<2x256xf32>
    %421 = vector.extract_strided_slice %2 {offsets = [0, 36], sizes = [2, 1], strides = [1, 1]} : vector<2x49xf32> to vector<2x1xf32>
    %422 = vector.extract_strided_slice %356 {offsets = [0, 158], sizes = [2, 256], strides = [1, 1]} : vector<2x512xf32> to vector<2x256xf32>
    %423 = vector.broadcast %421 : vector<2x1xf32> to vector<2x256xf32>
    %424 = arith.mulf %423, %422 : vector<2x256xf32>
    %425 = arith.addf %420, %424 : vector<2x256xf32>
    %426 = vector.extract_strided_slice %2 {offsets = [0, 43], sizes = [2, 1], strides = [1, 1]} : vector<2x49xf32> to vector<2x1xf32>
    %427 = vector.extract_strided_slice %356 {offsets = [0, 174], sizes = [2, 256], strides = [1, 1]} : vector<2x512xf32> to vector<2x256xf32>
    %428 = vector.broadcast %426 : vector<2x1xf32> to vector<2x256xf32>
    %429 = arith.mulf %428, %427 : vector<2x256xf32>
    %430 = arith.addf %425, %429 : vector<2x256xf32>
    %c1_56 = arith.constant 1 : index
    %c0_57 = arith.constant 0 : index
    %431 = vector.load %arg5[%c1_56, %c0_57] : memref<7x256xf32, #tpu.memory_space<vmem>>, vector<1x256xf32>
    %432 = vector.broadcast %431 : vector<1x256xf32> to vector<2x256xf32>
    %433 = arith.mulf %430, %432 : vector<2x256xf32>
    %434 = arith.addf %358, %433 : vector<2x256xf32>
    %435 = vector.extract_strided_slice %2 {offsets = [0, 2], sizes = [2, 1], strides = [1, 1]} : vector<2x49xf32> to vector<2x1xf32>
    %436 = vector.extract_strided_slice %356 {offsets = [0, 79], sizes = [2, 256], strides = [1, 1]} : vector<2x512xf32> to vector<2x256xf32>
    %437 = vector.broadcast %435 : vector<2x1xf32> to vector<2x256xf32>
    %438 = arith.mulf %437, %436 : vector<2x256xf32>
    %439 = vector.extract_strided_slice %2 {offsets = [0, 9], sizes = [2, 1], strides = [1, 1]} : vector<2x49xf32> to vector<2x1xf32>
    %440 = vector.extract_strided_slice %356 {offsets = [0, 95], sizes = [2, 256], strides = [1, 1]} : vector<2x512xf32> to vector<2x256xf32>
    %441 = vector.broadcast %439 : vector<2x1xf32> to vector<2x256xf32>
    %442 = arith.mulf %441, %440 : vector<2x256xf32>
    %443 = arith.addf %438, %442 : vector<2x256xf32>
    %444 = vector.extract_strided_slice %2 {offsets = [0, 16], sizes = [2, 1], strides = [1, 1]} : vector<2x49xf32> to vector<2x1xf32>
    %445 = vector.extract_strided_slice %356 {offsets = [0, 111], sizes = [2, 256], strides = [1, 1]} : vector<2x512xf32> to vector<2x256xf32>
    %446 = vector.broadcast %444 : vector<2x1xf32> to vector<2x256xf32>
    %447 = arith.mulf %446, %445 : vector<2x256xf32>
    %448 = arith.addf %443, %447 : vector<2x256xf32>
    %449 = vector.extract_strided_slice %2 {offsets = [0, 23], sizes = [2, 1], strides = [1, 1]} : vector<2x49xf32> to vector<2x1xf32>
    %450 = vector.extract_strided_slice %356 {offsets = [0, 127], sizes = [2, 256], strides = [1, 1]} : vector<2x512xf32> to vector<2x256xf32>
    %451 = vector.broadcast %449 : vector<2x1xf32> to vector<2x256xf32>
    %452 = arith.mulf %451, %450 : vector<2x256xf32>
    %453 = arith.addf %448, %452 : vector<2x256xf32>
    %454 = vector.extract_strided_slice %2 {offsets = [0, 30], sizes = [2, 1], strides = [1, 1]} : vector<2x49xf32> to vector<2x1xf32>
    %455 = vector.extract_strided_slice %356 {offsets = [0, 143], sizes = [2, 256], strides = [1, 1]} : vector<2x512xf32> to vector<2x256xf32>
    %456 = vector.broadcast %454 : vector<2x1xf32> to vector<2x256xf32>
    %457 = arith.mulf %456, %455 : vector<2x256xf32>
    %458 = arith.addf %453, %457 : vector<2x256xf32>
    %459 = vector.extract_strided_slice %2 {offsets = [0, 37], sizes = [2, 1], strides = [1, 1]} : vector<2x49xf32> to vector<2x1xf32>
    %460 = vector.extract_strided_slice %356 {offsets = [0, 159], sizes = [2, 256], strides = [1, 1]} : vector<2x512xf32> to vector<2x256xf32>
    %461 = vector.broadcast %459 : vector<2x1xf32> to vector<2x256xf32>
    %462 = arith.mulf %461, %460 : vector<2x256xf32>
    %463 = arith.addf %458, %462 : vector<2x256xf32>
    %464 = vector.extract_strided_slice %2 {offsets = [0, 44], sizes = [2, 1], strides = [1, 1]} : vector<2x49xf32> to vector<2x1xf32>
    %465 = vector.extract_strided_slice %356 {offsets = [0, 175], sizes = [2, 256], strides = [1, 1]} : vector<2x512xf32> to vector<2x256xf32>
    %466 = vector.broadcast %464 : vector<2x1xf32> to vector<2x256xf32>
    %467 = arith.mulf %466, %465 : vector<2x256xf32>
    %468 = arith.addf %463, %467 : vector<2x256xf32>
    %c2_58 = arith.constant 2 : index
    %c0_59 = arith.constant 0 : index
    %469 = vector.load %arg5[%c2_58, %c0_59] : memref<7x256xf32, #tpu.memory_space<vmem>>, vector<1x256xf32>
    %470 = vector.broadcast %469 : vector<1x256xf32> to vector<2x256xf32>
    %471 = arith.mulf %468, %470 : vector<2x256xf32>
    %472 = arith.addf %396, %471 : vector<2x256xf32>
    %473 = vector.extract_strided_slice %2 {offsets = [0, 3], sizes = [2, 1], strides = [1, 1]} : vector<2x49xf32> to vector<2x1xf32>
    %474 = vector.extract_strided_slice %356 {offsets = [0, 80], sizes = [2, 256], strides = [1, 1]} : vector<2x512xf32> to vector<2x256xf32>
    %475 = vector.broadcast %473 : vector<2x1xf32> to vector<2x256xf32>
    %476 = arith.mulf %475, %474 : vector<2x256xf32>
    %477 = vector.extract_strided_slice %2 {offsets = [0, 10], sizes = [2, 1], strides = [1, 1]} : vector<2x49xf32> to vector<2x1xf32>
    %478 = vector.extract_strided_slice %356 {offsets = [0, 96], sizes = [2, 256], strides = [1, 1]} : vector<2x512xf32> to vector<2x256xf32>
    %479 = vector.broadcast %477 : vector<2x1xf32> to vector<2x256xf32>
    %480 = arith.mulf %479, %478 : vector<2x256xf32>
    %481 = arith.addf %476, %480 : vector<2x256xf32>
    %482 = vector.extract_strided_slice %2 {offsets = [0, 17], sizes = [2, 1], strides = [1, 1]} : vector<2x49xf32> to vector<2x1xf32>
    %483 = vector.extract_strided_slice %356 {offsets = [0, 112], sizes = [2, 256], strides = [1, 1]} : vector<2x512xf32> to vector<2x256xf32>
    %484 = vector.broadcast %482 : vector<2x1xf32> to vector<2x256xf32>
    %485 = arith.mulf %484, %483 : vector<2x256xf32>
    %486 = arith.addf %481, %485 : vector<2x256xf32>
    %487 = vector.extract_strided_slice %2 {offsets = [0, 24], sizes = [2, 1], strides = [1, 1]} : vector<2x49xf32> to vector<2x1xf32>
    %488 = vector.extract_strided_slice %356 {offsets = [0, 128], sizes = [2, 256], strides = [1, 1]} : vector<2x512xf32> to vector<2x256xf32>
    %489 = vector.broadcast %487 : vector<2x1xf32> to vector<2x256xf32>
    %490 = arith.mulf %489, %488 : vector<2x256xf32>
    %491 = arith.addf %486, %490 : vector<2x256xf32>
    %492 = vector.extract_strided_slice %2 {offsets = [0, 31], sizes = [2, 1], strides = [1, 1]} : vector<2x49xf32> to vector<2x1xf32>
    %493 = vector.extract_strided_slice %356 {offsets = [0, 144], sizes = [2, 256], strides = [1, 1]} : vector<2x512xf32> to vector<2x256xf32>
    %494 = vector.broadcast %492 : vector<2x1xf32> to vector<2x256xf32>
    %495 = arith.mulf %494, %493 : vector<2x256xf32>
    %496 = arith.addf %491, %495 : vector<2x256xf32>
    %497 = vector.extract_strided_slice %2 {offsets = [0, 38], sizes = [2, 1], strides = [1, 1]} : vector<2x49xf32> to vector<2x1xf32>
    %498 = vector.extract_strided_slice %356 {offsets = [0, 160], sizes = [2, 256], strides = [1, 1]} : vector<2x512xf32> to vector<2x256xf32>
    %499 = vector.broadcast %497 : vector<2x1xf32> to vector<2x256xf32>
    %500 = arith.mulf %499, %498 : vector<2x256xf32>
    %501 = arith.addf %496, %500 : vector<2x256xf32>
    %502 = vector.extract_strided_slice %2 {offsets = [0, 45], sizes = [2, 1], strides = [1, 1]} : vector<2x49xf32> to vector<2x1xf32>
    %503 = vector.extract_strided_slice %356 {offsets = [0, 176], sizes = [2, 256], strides = [1, 1]} : vector<2x512xf32> to vector<2x256xf32>
    %504 = vector.broadcast %502 : vector<2x1xf32> to vector<2x256xf32>
    %505 = arith.mulf %504, %503 : vector<2x256xf32>
    %506 = arith.addf %501, %505 : vector<2x256xf32>
    %507 = arith.addf %434, %506 : vector<2x256xf32>
    %508 = vector.extract_strided_slice %2 {offsets = [0, 4], sizes = [2, 1], strides = [1, 1]} : vector<2x49xf32> to vector<2x1xf32>
    %509 = vector.extract_strided_slice %356 {offsets = [0, 81], sizes = [2, 256], strides = [1, 1]} : vector<2x512xf32> to vector<2x256xf32>
    %510 = vector.broadcast %508 : vector<2x1xf32> to vector<2x256xf32>
    %511 = arith.mulf %510, %509 : vector<2x256xf32>
    %512 = vector.extract_strided_slice %2 {offsets = [0, 11], sizes = [2, 1], strides = [1, 1]} : vector<2x49xf32> to vector<2x1xf32>
    %513 = vector.extract_strided_slice %356 {offsets = [0, 97], sizes = [2, 256], strides = [1, 1]} : vector<2x512xf32> to vector<2x256xf32>
    %514 = vector.broadcast %512 : vector<2x1xf32> to vector<2x256xf32>
    %515 = arith.mulf %514, %513 : vector<2x256xf32>
    %516 = arith.addf %511, %515 : vector<2x256xf32>
    %517 = vector.extract_strided_slice %2 {offsets = [0, 18], sizes = [2, 1], strides = [1, 1]} : vector<2x49xf32> to vector<2x1xf32>
    %518 = vector.extract_strided_slice %356 {offsets = [0, 113], sizes = [2, 256], strides = [1, 1]} : vector<2x512xf32> to vector<2x256xf32>
    %519 = vector.broadcast %517 : vector<2x1xf32> to vector<2x256xf32>
    %520 = arith.mulf %519, %518 : vector<2x256xf32>
    %521 = arith.addf %516, %520 : vector<2x256xf32>
    %522 = vector.extract_strided_slice %2 {offsets = [0, 25], sizes = [2, 1], strides = [1, 1]} : vector<2x49xf32> to vector<2x1xf32>
    %523 = vector.extract_strided_slice %356 {offsets = [0, 129], sizes = [2, 256], strides = [1, 1]} : vector<2x512xf32> to vector<2x256xf32>
    %524 = vector.broadcast %522 : vector<2x1xf32> to vector<2x256xf32>
    %525 = arith.mulf %524, %523 : vector<2x256xf32>
    %526 = arith.addf %521, %525 : vector<2x256xf32>
    %527 = vector.extract_strided_slice %2 {offsets = [0, 32], sizes = [2, 1], strides = [1, 1]} : vector<2x49xf32> to vector<2x1xf32>
    %528 = vector.extract_strided_slice %356 {offsets = [0, 145], sizes = [2, 256], strides = [1, 1]} : vector<2x512xf32> to vector<2x256xf32>
    %529 = vector.broadcast %527 : vector<2x1xf32> to vector<2x256xf32>
    %530 = arith.mulf %529, %528 : vector<2x256xf32>
    %531 = arith.addf %526, %530 : vector<2x256xf32>
    %532 = vector.extract_strided_slice %2 {offsets = [0, 39], sizes = [2, 1], strides = [1, 1]} : vector<2x49xf32> to vector<2x1xf32>
    %533 = vector.extract_strided_slice %356 {offsets = [0, 161], sizes = [2, 256], strides = [1, 1]} : vector<2x512xf32> to vector<2x256xf32>
    %534 = vector.broadcast %532 : vector<2x1xf32> to vector<2x256xf32>
    %535 = arith.mulf %534, %533 : vector<2x256xf32>
    %536 = arith.addf %531, %535 : vector<2x256xf32>
    %537 = vector.extract_strided_slice %2 {offsets = [0, 46], sizes = [2, 1], strides = [1, 1]} : vector<2x49xf32> to vector<2x1xf32>
    %538 = vector.extract_strided_slice %356 {offsets = [0, 177], sizes = [2, 256], strides = [1, 1]} : vector<2x512xf32> to vector<2x256xf32>
    %539 = vector.broadcast %537 : vector<2x1xf32> to vector<2x256xf32>
    %540 = arith.mulf %539, %538 : vector<2x256xf32>
    %541 = arith.addf %536, %540 : vector<2x256xf32>
    %c4_60 = arith.constant 4 : index
    %c0_61 = arith.constant 0 : index
    %542 = vector.load %arg5[%c4_60, %c0_61] : memref<7x256xf32, #tpu.memory_space<vmem>>, vector<1x256xf32>
    %543 = vector.broadcast %542 : vector<1x256xf32> to vector<2x256xf32>
    %544 = arith.mulf %541, %543 : vector<2x256xf32>
    %545 = arith.addf %472, %544 : vector<2x256xf32>
    %546 = vector.extract_strided_slice %2 {offsets = [0, 5], sizes = [2, 1], strides = [1, 1]} : vector<2x49xf32> to vector<2x1xf32>
    %547 = vector.extract_strided_slice %356 {offsets = [0, 82], sizes = [2, 256], strides = [1, 1]} : vector<2x512xf32> to vector<2x256xf32>
    %548 = vector.broadcast %546 : vector<2x1xf32> to vector<2x256xf32>
    %549 = arith.mulf %548, %547 : vector<2x256xf32>
    %550 = vector.extract_strided_slice %2 {offsets = [0, 12], sizes = [2, 1], strides = [1, 1]} : vector<2x49xf32> to vector<2x1xf32>
    %551 = vector.extract_strided_slice %356 {offsets = [0, 98], sizes = [2, 256], strides = [1, 1]} : vector<2x512xf32> to vector<2x256xf32>
    %552 = vector.broadcast %550 : vector<2x1xf32> to vector<2x256xf32>
    %553 = arith.mulf %552, %551 : vector<2x256xf32>
    %554 = arith.addf %549, %553 : vector<2x256xf32>
    %555 = vector.extract_strided_slice %2 {offsets = [0, 19], sizes = [2, 1], strides = [1, 1]} : vector<2x49xf32> to vector<2x1xf32>
    %556 = vector.extract_strided_slice %356 {offsets = [0, 114], sizes = [2, 256], strides = [1, 1]} : vector<2x512xf32> to vector<2x256xf32>
    %557 = vector.broadcast %555 : vector<2x1xf32> to vector<2x256xf32>
    %558 = arith.mulf %557, %556 : vector<2x256xf32>
    %559 = arith.addf %554, %558 : vector<2x256xf32>
    %560 = vector.extract_strided_slice %2 {offsets = [0, 26], sizes = [2, 1], strides = [1, 1]} : vector<2x49xf32> to vector<2x1xf32>
    %561 = vector.extract_strided_slice %356 {offsets = [0, 130], sizes = [2, 256], strides = [1, 1]} : vector<2x512xf32> to vector<2x256xf32>
    %562 = vector.broadcast %560 : vector<2x1xf32> to vector<2x256xf32>
    %563 = arith.mulf %562, %561 : vector<2x256xf32>
    %564 = arith.addf %559, %563 : vector<2x256xf32>
    %565 = vector.extract_strided_slice %2 {offsets = [0, 33], sizes = [2, 1], strides = [1, 1]} : vector<2x49xf32> to vector<2x1xf32>
    %566 = vector.extract_strided_slice %356 {offsets = [0, 146], sizes = [2, 256], strides = [1, 1]} : vector<2x512xf32> to vector<2x256xf32>
    %567 = vector.broadcast %565 : vector<2x1xf32> to vector<2x256xf32>
    %568 = arith.mulf %567, %566 : vector<2x256xf32>
    %569 = arith.addf %564, %568 : vector<2x256xf32>
    %570 = vector.extract_strided_slice %2 {offsets = [0, 40], sizes = [2, 1], strides = [1, 1]} : vector<2x49xf32> to vector<2x1xf32>
    %571 = vector.extract_strided_slice %356 {offsets = [0, 162], sizes = [2, 256], strides = [1, 1]} : vector<2x512xf32> to vector<2x256xf32>
    %572 = vector.broadcast %570 : vector<2x1xf32> to vector<2x256xf32>
    %573 = arith.mulf %572, %571 : vector<2x256xf32>
    %574 = arith.addf %569, %573 : vector<2x256xf32>
    %575 = vector.extract_strided_slice %2 {offsets = [0, 47], sizes = [2, 1], strides = [1, 1]} : vector<2x49xf32> to vector<2x1xf32>
    %576 = vector.extract_strided_slice %356 {offsets = [0, 178], sizes = [2, 256], strides = [1, 1]} : vector<2x512xf32> to vector<2x256xf32>
    %577 = vector.broadcast %575 : vector<2x1xf32> to vector<2x256xf32>
    %578 = arith.mulf %577, %576 : vector<2x256xf32>
    %579 = arith.addf %574, %578 : vector<2x256xf32>
    %c5_62 = arith.constant 5 : index
    %c0_63 = arith.constant 0 : index
    %580 = vector.load %arg5[%c5_62, %c0_63] : memref<7x256xf32, #tpu.memory_space<vmem>>, vector<1x256xf32>
    %581 = vector.broadcast %580 : vector<1x256xf32> to vector<2x256xf32>
    %582 = arith.mulf %579, %581 : vector<2x256xf32>
    %583 = arith.addf %507, %582 : vector<2x256xf32>
    %584 = vector.extract_strided_slice %2 {offsets = [0, 6], sizes = [2, 1], strides = [1, 1]} : vector<2x49xf32> to vector<2x1xf32>
    %585 = vector.extract_strided_slice %356 {offsets = [0, 83], sizes = [2, 256], strides = [1, 1]} : vector<2x512xf32> to vector<2x256xf32>
    %586 = vector.broadcast %584 : vector<2x1xf32> to vector<2x256xf32>
    %587 = arith.mulf %586, %585 : vector<2x256xf32>
    %588 = vector.extract_strided_slice %2 {offsets = [0, 13], sizes = [2, 1], strides = [1, 1]} : vector<2x49xf32> to vector<2x1xf32>
    %589 = vector.extract_strided_slice %356 {offsets = [0, 99], sizes = [2, 256], strides = [1, 1]} : vector<2x512xf32> to vector<2x256xf32>
    %590 = vector.broadcast %588 : vector<2x1xf32> to vector<2x256xf32>
    %591 = arith.mulf %590, %589 : vector<2x256xf32>
    %592 = arith.addf %587, %591 : vector<2x256xf32>
    %593 = vector.extract_strided_slice %2 {offsets = [0, 20], sizes = [2, 1], strides = [1, 1]} : vector<2x49xf32> to vector<2x1xf32>
    %594 = vector.extract_strided_slice %356 {offsets = [0, 115], sizes = [2, 256], strides = [1, 1]} : vector<2x512xf32> to vector<2x256xf32>
    %595 = vector.broadcast %593 : vector<2x1xf32> to vector<2x256xf32>
    %596 = arith.mulf %595, %594 : vector<2x256xf32>
    %597 = arith.addf %592, %596 : vector<2x256xf32>
    %598 = vector.extract_strided_slice %2 {offsets = [0, 27], sizes = [2, 1], strides = [1, 1]} : vector<2x49xf32> to vector<2x1xf32>
    %599 = vector.extract_strided_slice %356 {offsets = [0, 131], sizes = [2, 256], strides = [1, 1]} : vector<2x512xf32> to vector<2x256xf32>
    %600 = vector.broadcast %598 : vector<2x1xf32> to vector<2x256xf32>
    %601 = arith.mulf %600, %599 : vector<2x256xf32>
    %602 = arith.addf %597, %601 : vector<2x256xf32>
    %603 = vector.extract_strided_slice %2 {offsets = [0, 34], sizes = [2, 1], strides = [1, 1]} : vector<2x49xf32> to vector<2x1xf32>
    %604 = vector.extract_strided_slice %356 {offsets = [0, 147], sizes = [2, 256], strides = [1, 1]} : vector<2x512xf32> to vector<2x256xf32>
    %605 = vector.broadcast %603 : vector<2x1xf32> to vector<2x256xf32>
    %606 = arith.mulf %605, %604 : vector<2x256xf32>
    %607 = arith.addf %602, %606 : vector<2x256xf32>
    %608 = vector.extract_strided_slice %2 {offsets = [0, 41], sizes = [2, 1], strides = [1, 1]} : vector<2x49xf32> to vector<2x1xf32>
    %609 = vector.extract_strided_slice %356 {offsets = [0, 163], sizes = [2, 256], strides = [1, 1]} : vector<2x512xf32> to vector<2x256xf32>
    %610 = vector.broadcast %608 : vector<2x1xf32> to vector<2x256xf32>
    %611 = arith.mulf %610, %609 : vector<2x256xf32>
    %612 = arith.addf %607, %611 : vector<2x256xf32>
    %613 = vector.extract_strided_slice %2 {offsets = [0, 48], sizes = [2, 1], strides = [1, 1]} : vector<2x49xf32> to vector<2x1xf32>
    %614 = vector.extract_strided_slice %356 {offsets = [0, 179], sizes = [2, 256], strides = [1, 1]} : vector<2x512xf32> to vector<2x256xf32>
    %615 = vector.broadcast %613 : vector<2x1xf32> to vector<2x256xf32>
    %616 = arith.mulf %615, %614 : vector<2x256xf32>
    %617 = arith.addf %612, %616 : vector<2x256xf32>
    %c6_64 = arith.constant 6 : index
    %c0_65 = arith.constant 0 : index
    %618 = vector.load %arg5[%c6_64, %c0_65] : memref<7x256xf32, #tpu.memory_space<vmem>>, vector<1x256xf32>
    %619 = vector.broadcast %618 : vector<1x256xf32> to vector<2x256xf32>
    %620 = arith.mulf %617, %619 : vector<2x256xf32>
    %621 = arith.addf %545, %620 : vector<2x256xf32>
    %622 = arith.addf %621, %583 : vector<2x256xf32>
    %623 = vector.extract_strided_slice %622 {offsets = [0, 0], sizes = [1, 256], strides = [1, 1]} : vector<2x256xf32> to vector<1x256xf32>
    %624 = vector.extract_strided_slice %622 {offsets = [1, 0], sizes = [1, 256], strides = [1, 1]} : vector<2x256xf32> to vector<1x256xf32>
    %625 = arith.addf %623, %624 : vector<1x256xf32>
    %626 = arith.negf %625 : vector<1x256xf32>
    %627 = math.exp %626 : vector<1x256xf32>
    %cst_66 = arith.constant 1.000000e+00 : f32
    %628 = vector.broadcast %cst_66 : f32 to vector<1x256xf32>
    %629 = arith.addf %628, %627 : vector<1x256xf32>
    %630 = arith.divf %628, %629 : vector<1x256xf32>
    %631 = vector.broadcast %344 : vector<32x1xf32> to vector<32x256xf32>
    %632 = arith.mulf %325, %631 : vector<32x256xf32>
    %633 = vector.broadcast %630 : vector<1x256xf32> to vector<32x256xf32>
    %634 = arith.mulf %632, %633 : vector<32x256xf32>
    %c1_67 = arith.constant 1 : index
    %c0_68 = arith.constant 0 : index
    %c0_69 = arith.constant 0 : index
    %635 = vector.load %arg6[%c1_67, %c0_68, %c0_69] : memref<2x32x256xf32, #tpu.memory_space<vmem>>, vector<1x32x256xf32>
    %636 = vector.shape_cast %635 : vector<1x32x256xf32> to vector<32x256xf32>
    %637 = vector.shape_cast %634 : vector<32x256xf32> to vector<1x32x256xf32>
    tpu.vector_store %arg6[%c1_67, %c0_68, %c0_69], %637 {strides = array<i32>} : memref<2x32x256xf32, #tpu.memory_space<vmem>>, vector<1x32x256xf32>,
    %cst_70 = arith.constant dense<0.000000e+00> : vector<32xf32>
    %638 = vector.multi_reduction <add>, %634, %cst_70 [1] : vector<32x256xf32> to vector<32xf32>
    %639 = vector.shape_cast %638 : vector<32xf32> to vector<32x1xf32>
    %cst_71 = arith.constant 3.906250e-03 : f32
    %640 = vector.broadcast %cst_71 : f32 to vector<32x1xf32>
    %641 = arith.mulf %639, %640 : vector<32x1xf32>
    %c1_72 = arith.constant 1 : index
    %c0_73 = arith.constant 0 : index
    %c0_74 = arith.constant 0 : index
    %642 = vector.load %arg7[%c1_72, %c0_73, %c0_74] : memref<2x32x1xf32, #tpu.memory_space<vmem>>, vector<1x32x1xf32>
    %643 = vector.shape_cast %642 : vector<1x32x1xf32> to vector<32x1xf32>
    %644 = vector.shape_cast %641 : vector<32x1xf32> to vector<1x32x1xf32>
    tpu.vector_store %arg7[%c1_72, %c0_73, %c0_74], %644 {strides = array<i32>} : memref<2x32x1xf32, #tpu.memory_space<vmem>>, vector<1x32x1xf32>,
    return
  }
  func.func @transform_0(%arg0: i32) -> (i32, i32, i32) {
    %c0_i32 = arith.constant 0 : i32
    %c0_i32_0 = arith.constant 0 : i32
    %c0_i32_1 = arith.constant 0 : i32
    return %arg0, %c0_i32, %c0_i32_0 : i32, i32, i32
  }
  func.func @transform_1(%arg0: i32) -> (i32, i32) {
    %c0_i32 = arith.constant 0 : i32
    %c0_i32_0 = arith.constant 0 : i32
    %c0_i32_1 = arith.constant 0 : i32
    return %c0_i32, %c0_i32_0 : i32, i32
  }
  func.func @transform_2(%arg0: i32) -> (i32, i32) {
    %c0_i32 = arith.constant 0 : i32
    %c0_i32_0 = arith.constant 0 : i32
    %c0_i32_1 = arith.constant 0 : i32
    return %c0_i32, %c0_i32_0 : i32, i32
  }
  func.func @transform_3(%arg0: i32) -> (i32, i32) {
    %c0_i32 = arith.constant 0 : i32
    %c0_i32_0 = arith.constant 0 : i32
    %c0_i32_1 = arith.constant 0 : i32
    return %c0_i32, %c0_i32_0 : i32, i32
  }
  func.func @transform_4(%arg0: i32) -> (i32, i32) {
    %c0_i32 = arith.constant 0 : i32
    %c0_i32_0 = arith.constant 0 : i32
    %c0_i32_1 = arith.constant 0 : i32
    return %c0_i32, %c0_i32_0 : i32, i32
  }
  func.func @transform_5(%arg0: i32) -> (i32, i32, i32) {
    %c0_i32 = arith.constant 0 : i32
    %c0_i32_0 = arith.constant 0 : i32
    %c0_i32_1 = arith.constant 0 : i32
    return %arg0, %c0_i32, %c0_i32_0 : i32, i32, i32
  }
  func.func @transform_6(%arg0: i32) -> (i32, i32, i32) {
    %c0_i32 = arith.constant 0 : i32
    %c0_i32_0 = arith.constant 0 : i32
    %c0_i32_1 = arith.constant 0 : i32
    return %arg0, %c0_i32, %c0_i32_0 : i32, i32, i32
  }
}

</mosaic_0001>

<llo_original>
// kernel: tpu_custom_call.1
$region0: #{tpu_custom_call.1}
  #allocation0 [shape = 'u32[]', space=smem, size = 0x4, offset = 0x4, fixed_abs, tag = 'smem constant byte address 0x4 - core index']
  #allocation1 [shape = 'u32[144,128]{1,0:T(1,128)}', space=vmem, size = 0x12000, scoped, tag = 'internal scratch']
  %s0 = inlined_call_operand.hbm [shape: f32[4,32,256], index: 0, kind: input, shape index: {}]
  %s1 = inlined_call_operand.vmem [shape: f32[2,32], index: 1, kind: input, shape index: {}]
  %s2 = inlined_call_operand.vmem [shape: f32[32,2], index: 2, kind: input, shape index: {}]
  %s3 = inlined_call_operand.vmem [shape: f32[2,49], index: 3, kind: input, shape index: {}]
  %s4 = inlined_call_operand.vmem [shape: f32[7,256], index: 4, kind: input, shape index: {}]
  %s5 = inlined_call_operand.hbm [shape: f32[4,32,256], index: 5, kind: output, shape index: {0}]
  %s6 = inlined_call_operand.vmem [shape: f32[4,32,1], index: 6, kind: output, shape index: {1}]
  %7 = xla_tuple %s5, %s6
  %s8 = sld [smem:[#allocation0]]
  $region65: #{tpu_custom_call.1} parent=0
    _
  %s10 = ssub.s32 1, %s8
  %s11 = scalar_select 0, %s10, %s8
  $region1: #{tpu_custom_call.1} parent=0
    #allocation2 [shape = 'u8[131072]{0}', space=vmem, size = 0x20000, scoped, tag = 'input window, operand 0']
    #allocation3 [shape = 's32[2]{0}', space=sflag, size = 0x8, scoped, tag = 'scoped memory for tpu_custom_call.1']
    #allocation4 [shape = 's32[2]{0}', space=sflag, size = 0x8, scoped, tag = 'scoped memory for tpu_custom_call.1']
    #allocation5 [shape = 'u8[131072]{0}', space=vmem, size = 0x20000, scoped, tag = 'output window, operand 0']
    %12 = vsyncpa [#allocation3], 0
    %s13 = scalar_lea.sflag [#allocation3], 1
    %14 = vsyncpa %s13, 0
    %15 = vsyncpa [#allocation4], 0
    %s16 = scalar_lea.sflag [#allocation4], 1
    %17 = vsyncpa %s16, 0
    loop: start=0, step=1, limit=4
    $region2: #{tpu_custom_call.1} parent=1 // loop_pre_header
      _
    $region3: #{tpu_custom_call.1} parent=1 // loop_header
      %s19 = sphi 0, %s23
      %p20 = scmp.ge.s32.totalorder %s19, 4
      %s29 = sphi 0, %s31
      %s32 = sphi 0, %s29
      %s33 = sphi 0, %s32
      %s49 = sphi 0, %s33
      %s53 = sphi 0, %s53
      %s55 = sphi 0, %s53
      %s56 = sphi 0, %s55
      %s70 = sphi 0, %s56
      %s74 = sphi 0, %s74
      %s76 = sphi 0, %s74
      %s77 = sphi 0, %s76
      %s91 = sphi 0, %s77
      %s95 = sphi 0, %s95
      %s97 = sphi 0, %s95
      %s98 = sphi 0, %s97
      %s112 = sphi 0, %s98
      %s116 = sphi 0, %s116
      %s118 = sphi 0, %s116
      %s119 = sphi 0, %s118
      %s133 = sphi 0, %s119
      %s139 = sphi 0, %s141
      %s142 = sphi 0, %s139
      %s143 = sphi 0, %s142
      %s159 = sphi 0, %s143
      %s165 = sphi 0, %s167
      %s168 = sphi 0, %s165
      %s169 = sphi 0, %s168
      %s185 = sphi 0, %s169
    $region4: #{tpu_custom_call.1} parent=1 // loop_header_branch
      %22 = sbr.rel (%p20) target = $region8
    $region5: #{tpu_custom_call.1} parent=1 // loop_body
      %s24 = ssub.s32 %s19, 1
      %s25 = ssub.s32 %s19, 2
      %s26 = sadd.s32 %s19, 1
      %s27 = ssub.s32 %s19, %s26
      %p28 = scmp.eq.s32.totalorder %s27, 0
      %s30 = sadd.s32 %s29, 1
      %s31 = scalar_select %p28, %s29, %s30
      %p34 = pneg %p28
      %p35 = scmp.eq.s32.totalorder %s19, 1
      %p36 = por %p34, %p35
      %p37 = scmp.ne.s32.totalorder %s29, %s32
      %p38 = scmp.eq.s32.totalorder %s19, 0
      %p39 = por %p37, %p38
      %p40 = scmp.ne.s32.totalorder %s29, %s32
      %p41 = scmp.eq.s32.totalorder %s24, 1
      %p42 = por %p40, %p41
      %p43 = scmp.ne.s32.totalorder %s32, %s33
      %p44 = scmp.eq.s32.totalorder %s24, 0
      %p45 = por %p43, %p44
      %p46 = scmp.ne.s32.totalorder %s32, %s33
      %p47 = scmp.eq.s32.totalorder %s25, 1
      %p48 = por %p46, %p47
      %p50 = scmp.ne.s32.totalorder %s33, %s49
      %p51 = scmp.eq.s32.totalorder %s25, 0
      %p52 = por %p50, %p51
      %s54 = sadd.s32 %s53, 1
      %p57 = scmp.eq.s32.totalorder %s19, 1
      %p58 = scmp.ne.s32.totalorder %s53, %s55
      %p59 = scmp.eq.s32.totalorder %s19, 0
      %p60 = por %p58, %p59
      %p61 = scmp.ne.s32.totalorder %s53, %s55
      %p62 = scmp.eq.s32.totalorder %s24, 1
      %p63 = por %p61, %p62
      %p64 = scmp.ne.s32.totalorder %s55, %s56
      %p65 = scmp.eq.s32.totalorder %s24, 0
      %p66 = por %p64, %p65
      %p67 = scmp.ne.s32.totalorder %s55, %s56
      %p68 = scmp.eq.s32.totalorder %s25, 1
      %p69 = por %p67, %p68
      %p71 = scmp.ne.s32.totalorder %s56, %s70
      %p72 = scmp.eq.s32.totalorder %s25, 0
      %p73 = por %p71, %p72
      %s75 = sadd.s32 %s74, 1
      %p78 = scmp.eq.s32.totalorder %s19, 1
      %p79 = scmp.ne.s32.totalorder %s74, %s76
      %p80 = scmp.eq.s32.totalorder %s19, 0
      %p81 = por %p79, %p80
      %p82 = scmp.ne.s32.totalorder %s74, %s76
      %p83 = scmp.eq.s32.totalorder %s24, 1
      %p84 = por %p82, %p83
      %p85 = scmp.ne.s32.totalorder %s76, %s77
      %p86 = scmp.eq.s32.totalorder %s24, 0
      %p87 = por %p85, %p86
      %p88 = scmp.ne.s32.totalorder %s76, %s77
      %p89 = scmp.eq.s32.totalorder %s25, 1
      %p90 = por %p88, %p89
      %p92 = scmp.ne.s32.totalorder %s77, %s91
      %p93 = scmp.eq.s32.totalorder %s25, 0
      %p94 = por %p92, %p93
      %s96 = sadd.s32 %s95, 1
      %p99 = scmp.eq.s32.totalorder %s19, 1
      %p100 = scmp.ne.s32.totalorder %s95, %s97
      %p101 = scmp.eq.s32.totalorder %s19, 0
      %p102 = por %p100, %p101
      %p103 = scmp.ne.s32.totalorder %s95, %s97
      %p104 = scmp.eq.s32.totalorder %s24, 1
      %p105 = por %p103, %p104
      %p106 = scmp.ne.s32.totalorder %s97, %s98
      %p107 = scmp.eq.s32.totalorder %s24, 0
      %p108 = por %p106, %p107
      %p109 = scmp.ne.s32.totalorder %s97, %s98
      %p110 = scmp.eq.s32.totalorder %s25, 1
      %p111 = por %p109, %p110
      %p113 = scmp.ne.s32.totalorder %s98, %s112
      %p114 = scmp.eq.s32.totalorder %s25, 0
      %p115 = por %p113, %p114
      %s117 = sadd.s32 %s116, 1
      %p120 = scmp.eq.s32.totalorder %s19, 1
      %p121 = scmp.ne.s32.totalorder %s116, %s118
      %p122 = scmp.eq.s32.totalorder %s19, 0
      %p123 = por %p121, %p122
      %p124 = scmp.ne.s32.totalorder %s116, %s118
      %p125 = scmp.eq.s32.totalorder %s24, 1
      %p126 = por %p124, %p125
      %p127 = scmp.ne.s32.totalorder %s118, %s119
      %p128 = scmp.eq.s32.totalorder %s24, 0
      %p129 = por %p127, %p128
      %p130 = scmp.ne.s32.totalorder %s118, %s119
      %p131 = scmp.eq.s32.totalorder %s25, 1
      %p132 = por %p130, %p131
      %p134 = scmp.ne.s32.totalorder %s119, %s133
      %p135 = scmp.eq.s32.totalorder %s25, 0
      %p136 = por %p134, %p135
      %s137 = ssub.s32 %s19, %s26
      %p138 = scmp.eq.s32.totalorder %s137, 0
      %s140 = sadd.s32 %s139, 1
      %s141 = scalar_select %p138, %s139, %s140
      %p144 = pneg %p138
      %p145 = scmp.eq.s32.totalorder %s19, 1
      %p146 = por %p144, %p145
      %p147 = scmp.ne.s32.totalorder %s139, %s142
      %p148 = scmp.eq.s32.totalorder %s19, 0
      %p149 = por %p147, %p148
      %p150 = scmp.ne.s32.totalorder %s139, %s142
      %p151 = scmp.eq.s32.totalorder %s24, 1
      %p152 = por %p150, %p151
      %p153 = scmp.ne.s32.totalorder %s142, %s143
      %p154 = scmp.eq.s32.totalorder %s24, 0
      %p155 = por %p153, %p154
      %p156 = scmp.ne.s32.totalorder %s142, %s143
      %p157 = scmp.eq.s32.totalorder %s25, 1
      %p158 = por %p156, %p157
      %p160 = scmp.ne.s32.totalorder %s143, %s159
      %p161 = scmp.eq.s32.totalorder %s25, 0
      %p162 = por %p160, %p161
      %s163 = ssub.s32 %s19, %s26
      %p164 = scmp.eq.s32.totalorder %s163, 0
      %s166 = sadd.s32 %s165, 1
      %s167 = scalar_select %p164, %s165, %s166
      %p170 = pneg %p164
      %p171 = scmp.eq.s32.totalorder %s19, 1
      %p172 = por %p170, %p171
      %p173 = scmp.ne.s32.totalorder %s165, %s168
      %p174 = scmp.eq.s32.totalorder %s19, 0
      %p175 = por %p173, %p174
      %p176 = scmp.ne.s32.totalorder %s165, %s168
      %p177 = scmp.eq.s32.totalorder %s24, 1
      %p178 = por %p176, %p177
      %p179 = scmp.ne.s32.totalorder %s168, %s169
      %p180 = scmp.eq.s32.totalorder %s24, 0
      %p181 = por %p179, %p180
      %p182 = scmp.ne.s32.totalorder %s168, %s169
      %p183 = scmp.eq.s32.totalorder %s25, 1
      %p184 = por %p182, %p183
      %p186 = scmp.ne.s32.totalorder %s169, %s185
      %p187 = scmp.eq.s32.totalorder %s25, 0
      %p188 = por %p186, %p187
      %p189 = scmp.le.s32.totalorder 1, %s19
      %p190 = scmp.lt.s32.totalorder %s19, 3
      %p191 = pnand %p189, %p190
      %p192 = pneg %p191
      // Predicated region
      $region9: #{tpu_custom_call.1} parent=5 // pred_check
        _
      $region10: #{tpu_custom_call.1} parent=5 // pred_check_branch
        %194 = sbr.rel (%p191) target = $region12
      $region11: #{tpu_custom_call.1} parent=5 // pred_region
        %s195 = ssub.s32 %s19, 1
        // Predicated region
        $region13: #{tpu_custom_call.1} parent=11 // pred_check
          %p196 = pneg %p66
        $region14: #{tpu_custom_call.1} parent=11 // pred_check_branch
          %198 = sbr.rel (%p196) target = $region16
        $region15: #{tpu_custom_call.1} parent=11 // pred_region
          _
        $region16: #{tpu_custom_call.1} parent=11 // pred_fallthru
          _
        // Predicated region
        $region17: #{tpu_custom_call.1} parent=11 // pred_check
          %p199 = pneg %p87
        $region18: #{tpu_custom_call.1} parent=11 // pred_check_branch
          %201 = sbr.rel (%p199) target = $region20
        $region19: #{tpu_custom_call.1} parent=11 // pred_region
          _
        $region20: #{tpu_custom_call.1} parent=11 // pred_fallthru
          _
        // Predicated region
        $region21: #{tpu_custom_call.1} parent=11 // pred_check
          %p202 = pneg %p108
        $region22: #{tpu_custom_call.1} parent=11 // pred_check_branch
          %204 = sbr.rel (%p202) target = $region24
        $region23: #{tpu_custom_call.1} parent=11 // pred_region
          _
        $region24: #{tpu_custom_call.1} parent=11 // pred_fallthru
          _
        // Predicated region
        $region25: #{tpu_custom_call.1} parent=11 // pred_check
          %p205 = pneg %p129
        $region26: #{tpu_custom_call.1} parent=11 // pred_check_branch
          %207 = sbr.rel (%p205) target = $region28
        $region27: #{tpu_custom_call.1} parent=11 // pred_region
          _
        $region28: #{tpu_custom_call.1} parent=11 // pred_fallthru
          _
      $region12: #{tpu_custom_call.1} parent=5 // pred_fallthru
        _
      %p208 = scmp.lt.s32.totalorder %s19, 2
      // Predicated region
      $region29: #{tpu_custom_call.1} parent=5 // pred_check
        %p209 = pneg %p208
      $region30: #{tpu_custom_call.1} parent=5 // pred_check_branch
        %211 = sbr.rel (%p209) target = $region32
      $region31: #{tpu_custom_call.1} parent=5 // pred_region
        // Predicated region
        $region33: #{tpu_custom_call.1} parent=31 // pred_check
          %p212 = pneg %p39
        $region34: #{tpu_custom_call.1} parent=31 // pred_check_branch
          %214 = sbr.rel (%p212) target = $region36
        $region35: #{tpu_custom_call.1} parent=31 // pred_region
          %s215 = sand.u32 %s29, 1
          %s216 = scalar_lea.sflag [#allocation3], %s215
          %s217 = sand.u32 %s29, 1
          %s218 = smul.addr %s217, 128
          %s219 = scalar_lea.vmem [#allocation2], %s218
          %s220 = smul.u32 2, %s19
          %s222 = ssub.s32 2048, 2048
          %223 = vsyncadd %s216, %s222
          %s224 = smul.addr %s220, 8
          %s225 = smul.addr %s224, 128
          %s226 = scalar_lea.hbm %s0, %s225
          %s227 = sshll.u32 %s219, 4
          %s228 = int_to_ptr.vmem [resolvable:$true] %s227
          %233 = dma.hbm_to_vmem [thread:$0]  %s226, 2048, %s228, %s216, 256, 256, 16
        $region36: #{tpu_custom_call.1} parent=31 // pred_fallthru
          _
      $region32: #{tpu_custom_call.1} parent=5 // pred_fallthru
        _
      %p234 = scmp.le.s32.totalorder 1, %s19
      %p235 = scmp.lt.s32.totalorder %s19, 3
      %p236 = pnand %p234, %p235
      %p237 = pneg %p236
      // Predicated region
      $region37: #{tpu_custom_call.1} parent=5 // pred_check
        _
      $region38: #{tpu_custom_call.1} parent=5 // pred_check_branch
        %239 = sbr.rel (%p236) target = $region40
      $region39: #{tpu_custom_call.1} parent=5 // pred_region
        %s240 = ssub.s32 %s19, 1
        %s241 = sand.u32 %s32, 1
        %s242 = scalar_lea.sflag [#allocation3], %s241
        %s243 = sand.u32 %s32, 1
        %s244 = smul.addr %s243, 128
        %s245 = scalar_lea.vmem [#allocation2], %s244
        // Predicated region
        $region41: #{tpu_custom_call.1} parent=39 // pred_check
          %p246 = pneg %p45
        $region42: #{tpu_custom_call.1} parent=39 // pred_check_branch
          %248 = sbr.rel (%p246) target = $region44
        $region43: #{tpu_custom_call.1} parent=39 // pred_region
          %249 = dma.done %s242, 2048
        $region44: #{tpu_custom_call.1} parent=39 // pred_fallthru
          _
        %s250 = sand.u32 %s32, 1
        %s251 = scalar_lea.sflag [#allocation3], %s250
        %s252 = sand.u32 %s32, 1
        %s253 = smul.addr %s252, 128
        %s254 = scalar_lea.vmem [#allocation2], %s253
        %p255 = pneg %p45
        %p256 = pneg %p42
        %p257 = pneg %p66
        %p258 = pneg %p63
        %p259 = pneg %p87
        %p260 = pneg %p84
        %p261 = pneg %p108
        %p262 = pneg %p105
        %p263 = pneg %p129
        %p264 = pneg %p126
        %p265 = pneg %p155
        %p266 = pneg %p152
        %s267 = sand.u32 %s142, 1
        %s268 = scalar_lea.sflag [#allocation4], %s267
        %s269 = sand.u32 %s142, 1
        %s270 = smul.addr %s269, 128
        %s271 = scalar_lea.vmem [#allocation5], %s270
        %p272 = pneg %p181
        %p273 = pneg %p178
        %s274 = smul.u32 2, %s24
        %p275 = scmp.lt.s32.totalorder %s274, 3
        %s276 = scalar_select %p275, %s274, 3
        %s277 = smul.addr %s276, 4
        %s278 = smul.addr %s277, 8
        %s279 = scalar_lea.vmem %s6, %s278
        %s280 = smul.u32 2, %s24
        %s281 = smul.u32 2, %s24
        %s282 = smul.u32 2, %s24
        %p283 = scmp.lt.s32.totalorder %s282, 3
        %s284 = scalar_select %p283, %s282, 3
        %s285 = smul.addr %s284, 4
        %s286 = smul.addr %s285, 8
        %s287 = scalar_lea.vmem %s6, %s286
        %s288 = smul.u32 2, %s24
        %v289 = vld [vmem:[%s1] sm:$0x3]
        %v290 = vld [vmem:[%s2] sm:$0xff]
        %v291 = vld [vmem:[%s2 + $0x8] sm:$0xff]
        %v292 = vld [vmem:[%s2 + $0x10] sm:$0xff]
        %v293 = vld [vmem:[%s2 + $0x18] sm:$0xff]
        %v294 = vld [vmem:[%s3] sm:$0x3]
        %v295 = vld [vmem:[%s245] sm:$0xff]
        %v296 = vld [vmem:[%s245 + $0x8] sm:$0xff]
        %v297 = vld [vmem:[%s245 + $0x10] sm:$0xff]
        %v298 = vld [vmem:[%s245 + $0x18] sm:$0xff]
        %v299 = vld [vmem:[%s245 + $0x20] sm:$0xff]
        %v300 = vld [vmem:[%s245 + $0x28] sm:$0xff]
        %v301 = vld [vmem:[%s245 + $0x30] sm:$0xff]
        %v302 = vld [vmem:[%s245 + $0x38] sm:$0xff]
        %v303 = vadd.f32 %v295, %v296
        %304 = vadd.xlane.f32.xlu0 %v303
        %v305 = vpop.xlane.xlu0 %304
        %v306 = vadd.f32 %v297, %v298
        %307 = vadd.xlane.f32.xlu0 %v306
        %v308 = vpop.xlane.xlu0 %307
        %v309 = vadd.f32 %v299, %v300
        %310 = vadd.xlane.f32.xlu0 %v309
        %v311 = vpop.xlane.xlu0 %310
        %v312 = vadd.f32 %v301, %v302
        %313 = vadd.xlane.f32.xlu0 %v312
        %v314 = vpop.xlane.xlu0 %313
        %v315 = vmul.f32 %v305, 0.00390625
        %v316 = vmul.f32 %v308, 0.00390625
        %v317 = vmul.f32 %v311, 0.00390625
        %v318 = vmul.f32 %v314, 0.00390625
        %v319 = vmax.f32 %v295, %v296
        %320 = vmax.xlane.f32.xlu0 %v319
        %v321 = vpop.xlane.xlu0 %320
        %v322 = vmax.f32 %v297, %v298
        %323 = vmax.xlane.f32.xlu0 %v322
        %v324 = vpop.xlane.xlu0 %323
        %v325 = vmax.f32 %v299, %v300
        %326 = vmax.xlane.f32.xlu0 %v325
        %v327 = vpop.xlane.xlu0 %326
        %v328 = vmax.f32 %v301, %v302
        %329 = vmax.xlane.f32.xlu0 %v328
        %v330 = vpop.xlane.xlu0 %329
        %vm331 = vcmask 7168
        %v332 = vsel %vm331, %v315, %v321
        %v333 = vsel %vm331, %v316, %v324
        %v334 = vsel %vm331, %v317, %v327
        %v335 = vsel %vm331, %v318, %v330
        %vm336 = vcmask 261120
        %v338 = vsel %vm336, %v289, 0
        %340 = vmatprep.subr.mxu0 0.0
        %341 = vmatpush1.msra.mxu0 0.0
        %342 = vmatprep.subr.mxu0 0.0
        %343 = vmatpush1.msra.mxu0 0.0
        %344 = vmatprep.subr.mxu0 0.0
        %345 = vmatpush1.msra.mxu0 0.0
        %346 = vmatprep.subr.mxu0 0.0
        %347 = vmatpush1.msra.mxu0 0.0
        %348 = vmatprep.subr.mxu0 0.0
        %349 = vmatpush1.msra.mxu0 0.0
        %350 = vmatprep.subr.mxu0 0.0
        %351 = vmatpush1.msra.mxu0 0.0
        %352 = vmatprep.subr.mxu0 0.0
        %353 = vmatpush1.msra.mxu0 0.0
        %354 = vmatprep.subr.mxu0 0.0
        %355 = vmatpush1.msra.mxu0 0.0
        %356 = vmatprep.subr.mxu0 0.0
        %357 = vmatpush1.msra.mxu0 0.0
        %358 = vmatprep.subr.mxu0 0.0
        %359 = vmatpush1.msra.mxu0 0.0
        %360 = vmatprep.subr.mxu0 0.0
        %361 = vmatpush1.msra.mxu0 0.0
        %362 = vmatprep.subr.mxu0 0.0
        %363 = vmatpush1.msra.mxu0 0.0
        %364 = vmatprep.subr.mxu0 0.0
        %v365 = vand.u32 %v335, 4294901760
        %366 = vmatpush1.msra.mxu0 %v365
        %367 = vmatprep.subr.mxu0 0.0
        %v368 = vand.u32 %v334, 4294901760
        %369 = vmatpush1.msra.mxu0 %v368
        %370 = vmatprep.subr.mxu0 0.0
        %v371 = vand.u32 %v333, 4294901760
        %372 = vmatpush1.msra.mxu0 %v371
        %373 = vmatprep.subr.mxu0 0.0
        %v374 = vand.u32 %v332, 4294901760
        %375 = vmatpush1.msra.mxu0 %v374
        %376 = vmatprep.subr.mxu0 0.0
        %377 = vmatpush2.msra.mxu0 0.0
        %378 = vmatprep.subr.mxu0 0.0
        %379 = vmatpush2.msra.mxu0 0.0
        %380 = vmatprep.subr.mxu0 0.0
        %381 = vmatpush2.msra.mxu0 0.0
        %382 = vmatprep.subr.mxu0 0.0
        %383 = vmatpush2.msra.mxu0 0.0
        %384 = vmatprep.subr.mxu0 0.0
        %385 = vmatpush2.msra.mxu0 0.0
        %386 = vmatprep.subr.mxu0 0.0
        %387 = vmatpush2.msra.mxu0 0.0
        %388 = vmatprep.subr.mxu0 0.0
        %389 = vmatpush2.msra.mxu0 0.0
        %390 = vmatprep.subr.mxu0 0.0
        %391 = vmatpush2.msra.mxu0 0.0
        %392 = vmatprep.subr.mxu0 0.0
        %393 = vmatpush2.msra.mxu0 0.0
        %394 = vmatprep.subr.mxu0 0.0
        %395 = vmatpush2.msra.mxu0 0.0
        %396 = vmatprep.subr.mxu0 0.0
        %397 = vmatpush2.msra.mxu0 0.0
        %398 = vmatprep.subr.mxu0 0.0
        %399 = vmatpush2.msra.mxu0 0.0
        %400 = vmatprep.subr.mxu0 0.0
        %401 = vmatpush2.msra.mxu0 0.0
        %402 = vmatprep.subr.mxu0 0.0
        %403 = vmatpush2.msra.mxu0 0.0
        %404 = vmatprep.subr.mxu0 0.0
        %405 = vmatpush2.msra.mxu0 0.0
        %406 = vmatprep.subr.mxu0 0.0
        %407 = vmatpush2.msra.mxu0 0.0
        %408 = vmatprep.mubr.f32.mxu0 0.0
        %v409 = vand.u32 %v338, 4294901760
        %v410 = vsub.f32 %v338, %v409
        %v411 = vand.u32 %v410, 4294901760
        %v412 = vsub.f32 %v410, %v411
        %v413 = vand.u32 %v412, 4294901760
        %414 = vmatmul.mubr.f32.gmra.mxu0 %v413
        %v415 = vpop.f32.mrf.mxu0
        %v416 = vadd.f32 0.0, %v415
        %v417 = vpop.f32.mrf.mxu0
        %418 = vdwg.mxu0
        %419 = vmatprep.subr.mxu0 0.0
        %420 = vmatpush1.msra.mxu0 0.0
        %421 = vmatprep.subr.mxu0 0.0
        %422 = vmatpush1.msra.mxu0 0.0
        %423 = vmatprep.subr.mxu0 0.0
        %424 = vmatpush1.msra.mxu0 0.0
        %425 = vmatprep.subr.mxu0 0.0
        %426 = vmatpush1.msra.mxu0 0.0
        %427 = vmatprep.subr.mxu0 0.0
        %428 = vmatpush1.msra.mxu0 0.0
        %429 = vmatprep.subr.mxu0 0.0
        %430 = vmatpush1.msra.mxu0 0.0
        %431 = vmatprep.subr.mxu0 0.0
        %432 = vmatpush1.msra.mxu0 0.0
        %433 = vmatprep.subr.mxu0 0.0
        %434 = vmatpush1.msra.mxu0 0.0
        %435 = vmatprep.subr.mxu0 0.0
        %436 = vmatpush1.msra.mxu0 0.0
        %437 = vmatprep.subr.mxu0 0.0
        %438 = vmatpush1.msra.mxu0 0.0
        %439 = vmatprep.subr.mxu0 0.0
        %440 = vmatpush1.msra.mxu0 0.0
        %441 = vmatprep.subr.mxu0 0.0
        %442 = vmatpush1.msra.mxu0 0.0
        %443 = vmatprep.subr.mxu0 0.0
        %v444 = vand.u32 %v335, 4294901760
        %v445 = vsub.f32 %v335, %v444
        %v446 = vand.u32 %v445, 4294901760
        %v447 = vsub.f32 %v445, %v446
        %v448 = vand.u32 %v447, 4294901760
        %449 = vmatpush1.msra.mxu0 %v448
        %450 = vmatprep.subr.mxu0 0.0
        %v451 = vand.u32 %v334, 4294901760
        %v452 = vsub.f32 %v334, %v451
        %v453 = vand.u32 %v452, 4294901760
        %v454 = vsub.f32 %v452, %v453
        %v455 = vand.u32 %v454, 4294901760
        %456 = vmatpush1.msra.mxu0 %v455
        %457 = vmatprep.subr.mxu0 0.0
        %v458 = vand.u32 %v333, 4294901760
        %v459 = vsub.f32 %v333, %v458
        %v460 = vand.u32 %v459, 4294901760
        %v461 = vsub.f32 %v459, %v460
        %v462 = vand.u32 %v461, 4294901760
        %463 = vmatpush1.msra.mxu0 %v462
        %464 = vmatprep.subr.mxu0 0.0
        %v465 = vand.u32 %v332, 4294901760
        %v466 = vsub.f32 %v332, %v465
        %v467 = vand.u32 %v466, 4294901760
        %v468 = vsub.f32 %v466, %v467
        %v469 = vand.u32 %v468, 4294901760
        %470 = vmatpush1.msra.mxu0 %v469
        %471 = vmatprep.subr.mxu0 0.0
        %472 = vmatpush2.msra.mxu0 0.0
        %473 = vmatprep.subr.mxu0 0.0
        %474 = vmatpush2.msra.mxu0 0.0
        %475 = vmatprep.subr.mxu0 0.0
        %476 = vmatpush2.msra.mxu0 0.0
        %477 = vmatprep.subr.mxu0 0.0
        %478 = vmatpush2.msra.mxu0 0.0
        %479 = vmatprep.subr.mxu0 0.0
        %480 = vmatpush2.msra.mxu0 0.0
        %481 = vmatprep.subr.mxu0 0.0
        %482 = vmatpush2.msra.mxu0 0.0
        %483 = vmatprep.subr.mxu0 0.0
        %484 = vmatpush2.msra.mxu0 0.0
        %485 = vmatprep.subr.mxu0 0.0
        %486 = vmatpush2.msra.mxu0 0.0
        %487 = vmatprep.subr.mxu0 0.0
        %488 = vmatpush2.msra.mxu0 0.0
        %489 = vmatprep.subr.mxu0 0.0
        %490 = vmatpush2.msra.mxu0 0.0
        %491 = vmatprep.subr.mxu0 0.0
        %492 = vmatpush2.msra.mxu0 0.0
        %493 = vmatprep.subr.mxu0 0.0
        %494 = vmatpush2.msra.mxu0 0.0
        %495 = vmatprep.subr.mxu0 0.0
        %496 = vmatpush2.msra.mxu0 0.0
        %497 = vmatprep.subr.mxu0 0.0
        %498 = vmatpush2.msra.mxu0 0.0
        %499 = vmatprep.subr.mxu0 0.0
        %500 = vmatpush2.msra.mxu0 0.0
        %501 = vmatprep.subr.mxu0 0.0
        %502 = vmatpush2.msra.mxu0 0.0
        %503 = vmatprep.mubr.f32.mxu0 0.0
        %v504 = vand.u32 %v338, 4294901760
        %505 = vmatmul.mubr.f32.gmra.mxu0 %v504
        %v506 = vpop.f32.mrf.mxu0
        %v507 = vadd.f32 %v416, %v506
        %v508 = vpop.f32.mrf.mxu0
        %509 = vdwg.mxu0
        %510 = vmatprep.subr.mxu0 0.0
        %511 = vmatpush1.msra.mxu0 0.0
        %512 = vmatprep.subr.mxu0 0.0
        %513 = vmatpush1.msra.mxu0 0.0
        %514 = vmatprep.subr.mxu0 0.0
        %515 = vmatpush1.msra.mxu0 0.0
        %516 = vmatprep.subr.mxu0 0.0
        %517 = vmatpush1.msra.mxu0 0.0
        %518 = vmatprep.subr.mxu0 0.0
        %519 = vmatpush1.msra.mxu0 0.0
        %520 = vmatprep.subr.mxu0 0.0
        %521 = vmatpush1.msra.mxu0 0.0
        %522 = vmatprep.subr.mxu0 0.0
        %523 = vmatpush1.msra.mxu0 0.0
        %524 = vmatprep.subr.mxu0 0.0
        %525 = vmatpush1.msra.mxu0 0.0
        %526 = vmatprep.subr.mxu0 0.0
        %527 = vmatpush1.msra.mxu0 0.0
        %528 = vmatprep.subr.mxu0 0.0
        %529 = vmatpush1.msra.mxu0 0.0
        %530 = vmatprep.subr.mxu0 0.0
        %531 = vmatpush1.msra.mxu0 0.0
        %532 = vmatprep.subr.mxu0 0.0
        %533 = vmatpush1.msra.mxu0 0.0
        %534 = vmatprep.subr.mxu0 0.0
        %v535 = vand.u32 %v335, 4294901760
        %v536 = vsub.f32 %v335, %v535
        %537 = vmatpush1.msra.mxu0 %v536
        %538 = vmatprep.subr.mxu0 0.0
        %v539 = vand.u32 %v334, 4294901760
        %v540 = vsub.f32 %v334, %v539
        %541 = vmatpush1.msra.mxu0 %v540
        %542 = vmatprep.subr.mxu0 0.0
        %v543 = vand.u32 %v333, 4294901760
        %v544 = vsub.f32 %v333, %v543
        %545 = vmatpush1.msra.mxu0 %v544
        %546 = vmatprep.subr.mxu0 0.0
        %v547 = vand.u32 %v332, 4294901760
        %v548 = vsub.f32 %v332, %v547
        %549 = vmatpush1.msra.mxu0 %v548
        %550 = vmatprep.subr.mxu0 0.0
        %551 = vmatpush2.msra.mxu0 0.0
        %552 = vmatprep.subr.mxu0 0.0
        %553 = vmatpush2.msra.mxu0 0.0
        %554 = vmatprep.subr.mxu0 0.0
        %555 = vmatpush2.msra.mxu0 0.0
        %556 = vmatprep.subr.mxu0 0.0
        %557 = vmatpush2.msra.mxu0 0.0
        %558 = vmatprep.subr.mxu0 0.0
        %559 = vmatpush2.msra.mxu0 0.0
        %560 = vmatprep.subr.mxu0 0.0
        %561 = vmatpush2.msra.mxu0 0.0
        %562 = vmatprep.subr.mxu0 0.0
        %563 = vmatpush2.msra.mxu0 0.0
        %564 = vmatprep.subr.mxu0 0.0
        %565 = vmatpush2.msra.mxu0 0.0
        %566 = vmatprep.subr.mxu0 0.0
        %567 = vmatpush2.msra.mxu0 0.0
        %568 = vmatprep.subr.mxu0 0.0
        %569 = vmatpush2.msra.mxu0 0.0
        %570 = vmatprep.subr.mxu0 0.0
        %571 = vmatpush2.msra.mxu0 0.0
        %572 = vmatprep.subr.mxu0 0.0
        %573 = vmatpush2.msra.mxu0 0.0
        %574 = vmatprep.subr.mxu0 0.0
        %575 = vmatpush2.msra.mxu0 0.0
        %576 = vmatprep.subr.mxu0 0.0
        %577 = vmatpush2.msra.mxu0 0.0
        %578 = vmatprep.subr.mxu0 0.0
        %579 = vmatpush2.msra.mxu0 0.0
        %580 = vmatprep.subr.mxu0 0.0
        %581 = vmatpush2.msra.mxu0 0.0
        %582 = vmatprep.mubr.f32.mxu0 0.0
        %v583 = vand.u32 %v338, 4294901760
        %v584 = vsub.f32 %v338, %v583
        %585 = vmatmul.mubr.f32.gmra.mxu0 %v584
        %v586 = vpop.f32.mrf.mxu0
        %v587 = vadd.f32 %v507, %v586
        %v588 = vpop.f32.mrf.mxu0
        %589 = vdwg.mxu0
        %590 = vmatprep.subr.mxu0 0.0
        %591 = vmatpush1.msra.mxu0 0.0
        %592 = vmatprep.subr.mxu0 0.0
        %593 = vmatpush1.msra.mxu0 0.0
        %594 = vmatprep.subr.mxu0 0.0
        %595 = vmatpush1.msra.mxu0 0.0
        %596 = vmatprep.subr.mxu0 0.0
        %597 = vmatpush1.msra.mxu0 0.0
        %598 = vmatprep.subr.mxu0 0.0
        %599 = vmatpush1.msra.mxu0 0.0
        %600 = vmatprep.subr.mxu0 0.0
        %601 = vmatpush1.msra.mxu0 0.0
        %602 = vmatprep.subr.mxu0 0.0
        %603 = vmatpush1.msra.mxu0 0.0
        %604 = vmatprep.subr.mxu0 0.0
        %605 = vmatpush1.msra.mxu0 0.0
        %606 = vmatprep.subr.mxu0 0.0
        %607 = vmatpush1.msra.mxu0 0.0
        %608 = vmatprep.subr.mxu0 0.0
        %609 = vmatpush1.msra.mxu0 0.0
        %610 = vmatprep.subr.mxu0 0.0
        %611 = vmatpush1.msra.mxu0 0.0
        %612 = vmatprep.subr.mxu0 0.0
        %613 = vmatpush1.msra.mxu0 0.0
        %614 = vmatprep.subr.mxu0 0.0
        %v615 = vand.u32 %v335, 4294901760
        %616 = vmatpush1.msra.mxu0 %v615
        %617 = vmatprep.subr.mxu0 0.0
        %v618 = vand.u32 %v334, 4294901760
        %619 = vmatpush1.msra.mxu0 %v618
        %620 = vmatprep.subr.mxu0 0.0
        %v621 = vand.u32 %v333, 4294901760
        %622 = vmatpush1.msra.mxu0 %v621
        %623 = vmatprep.subr.mxu0 0.0
        %v624 = vand.u32 %v332, 4294901760
        %625 = vmatpush1.msra.mxu0 %v624
        %626 = vmatprep.subr.mxu0 0.0
        %627 = vmatpush2.msra.mxu0 0.0
        %628 = vmatprep.subr.mxu0 0.0
        %629 = vmatpush2.msra.mxu0 0.0
        %630 = vmatprep.subr.mxu0 0.0
        %631 = vmatpush2.msra.mxu0 0.0
        %632 = vmatprep.subr.mxu0 0.0
        %633 = vmatpush2.msra.mxu0 0.0
        %634 = vmatprep.subr.mxu0 0.0
        %635 = vmatpush2.msra.mxu0 0.0
        %636 = vmatprep.subr.mxu0 0.0
        %637 = vmatpush2.msra.mxu0 0.0
        %638 = vmatprep.subr.mxu0 0.0
        %639 = vmatpush2.msra.mxu0 0.0
        %640 = vmatprep.subr.mxu0 0.0
        %641 = vmatpush2.msra.mxu0 0.0
        %642 = vmatprep.subr.mxu0 0.0
        %643 = vmatpush2.msra.mxu0 0.0
        %644 = vmatprep.subr.mxu0 0.0
        %645 = vmatpush2.msra.mxu0 0.0
        %646 = vmatprep.subr.mxu0 0.0
        %647 = vmatpush2.msra.mxu0 0.0
        %648 = vmatprep.subr.mxu0 0.0
        %649 = vmatpush2.msra.mxu0 0.0
        %650 = vmatprep.subr.mxu0 0.0
        %651 = vmatpush2.msra.mxu0 0.0
        %652 = vmatprep.subr.mxu0 0.0
        %653 = vmatpush2.msra.mxu0 0.0
        %654 = vmatprep.subr.mxu0 0.0
        %655 = vmatpush2.msra.mxu0 0.0
        %656 = vmatprep.subr.mxu0 0.0
        %657 = vmatpush2.msra.mxu0 0.0
        %658 = vmatprep.mubr.f32.mxu0 0.0
        %v659 = vand.u32 %v338, 4294901760
        %v660 = vsub.f32 %v338, %v659
        %v661 = vand.u32 %v660, 4294901760
        %662 = vmatmul.mubr.f32.gmra.mxu0 %v661
        %v663 = vpop.f32.mrf.mxu0
        %v664 = vadd.f32 %v587, %v663
        %v665 = vpop.f32.mrf.mxu0
        %666 = vdwg.mxu0
        %667 = vmatprep.subr.mxu0 0.0
        %668 = vmatpush1.msra.mxu0 0.0
        %669 = vmatprep.subr.mxu0 0.0
        %670 = vmatpush1.msra.mxu0 0.0
        %671 = vmatprep.subr.mxu0 0.0
        %672 = vmatpush1.msra.mxu0 0.0
        %673 = vmatprep.subr.mxu0 0.0
        %674 = vmatpush1.msra.mxu0 0.0
        %675 = vmatprep.subr.mxu0 0.0
        %676 = vmatpush1.msra.mxu0 0.0
        %677 = vmatprep.subr.mxu0 0.0
        %678 = vmatpush1.msra.mxu0 0.0
        %679 = vmatprep.subr.mxu0 0.0
        %680 = vmatpush1.msra.mxu0 0.0
        %681 = vmatprep.subr.mxu0 0.0
        %682 = vmatpush1.msra.mxu0 0.0
        %683 = vmatprep.subr.mxu0 0.0
        %684 = vmatpush1.msra.mxu0 0.0
        %685 = vmatprep.subr.mxu0 0.0
        %686 = vmatpush1.msra.mxu0 0.0
        %687 = vmatprep.subr.mxu0 0.0
        %688 = vmatpush1.msra.mxu0 0.0
        %689 = vmatprep.subr.mxu0 0.0
        %690 = vmatpush1.msra.mxu0 0.0
        %691 = vmatprep.subr.mxu0 0.0
        %v692 = vand.u32 %v335, 4294901760
        %v693 = vsub.f32 %v335, %v692
        %v694 = vand.u32 %v693, 4294901760
        %695 = vmatpush1.msra.mxu0 %v694
        %696 = vmatprep.subr.mxu0 0.0
        %v697 = vand.u32 %v334, 4294901760
        %v698 = vsub.f32 %v334, %v697
        %v699 = vand.u32 %v698, 4294901760
        %700 = vmatpush1.msra.mxu0 %v699
        %701 = vmatprep.subr.mxu0 0.0
        %v702 = vand.u32 %v333, 4294901760
        %v703 = vsub.f32 %v333, %v702
        %v704 = vand.u32 %v703, 4294901760
        %705 = vmatpush1.msra.mxu0 %v704
        %706 = vmatprep.subr.mxu0 0.0
        %v707 = vand.u32 %v332, 4294901760
        %v708 = vsub.f32 %v332, %v707
        %v709 = vand.u32 %v708, 4294901760
        %710 = vmatpush1.msra.mxu0 %v709
        %711 = vmatprep.subr.mxu0 0.0
        %712 = vmatpush2.msra.mxu0 0.0
        %713 = vmatprep.subr.mxu0 0.0
        %714 = vmatpush2.msra.mxu0 0.0
        %715 = vmatprep.subr.mxu0 0.0
        %716 = vmatpush2.msra.mxu0 0.0
        %717 = vmatprep.subr.mxu0 0.0
        %718 = vmatpush2.msra.mxu0 0.0
        %719 = vmatprep.subr.mxu0 0.0
        %720 = vmatpush2.msra.mxu0 0.0
        %721 = vmatprep.subr.mxu0 0.0
        %722 = vmatpush2.msra.mxu0 0.0
        %723 = vmatprep.subr.mxu0 0.0
        %724 = vmatpush2.msra.mxu0 0.0
        %725 = vmatprep.subr.mxu0 0.0
        %726 = vmatpush2.msra.mxu0 0.0
        %727 = vmatprep.subr.mxu0 0.0
        %728 = vmatpush2.msra.mxu0 0.0
        %729 = vmatprep.subr.mxu0 0.0
        %730 = vmatpush2.msra.mxu0 0.0
        %731 = vmatprep.subr.mxu0 0.0
        %732 = vmatpush2.msra.mxu0 0.0
        %733 = vmatprep.subr.mxu0 0.0
        %734 = vmatpush2.msra.mxu0 0.0
        %735 = vmatprep.subr.mxu0 0.0
        %736 = vmatpush2.msra.mxu0 0.0
        %737 = vmatprep.subr.mxu0 0.0
        %738 = vmatpush2.msra.mxu0 0.0
        %739 = vmatprep.subr.mxu0 0.0
        %740 = vmatpush2.msra.mxu0 0.0
        %741 = vmatprep.subr.mxu0 0.0
        %742 = vmatpush2.msra.mxu0 0.0
        %743 = vmatprep.mubr.f32.mxu0 0.0
        %v744 = vand.u32 %v338, 4294901760
        %745 = vmatmul.mubr.f32.gmra.mxu0 %v744
        %v746 = vpop.f32.mrf.mxu0
        %v747 = vadd.f32 %v664, %v746
        %v748 = vpop.f32.mrf.mxu0
        %749 = vdwg.mxu0
        %750 = vmatprep.subr.mxu0 0.0
        %751 = vmatpush1.msra.mxu0 0.0
        %752 = vmatprep.subr.mxu0 0.0
        %753 = vmatpush1.msra.mxu0 0.0
        %754 = vmatprep.subr.mxu0 0.0
        %755 = vmatpush1.msra.mxu0 0.0
        %756 = vmatprep.subr.mxu0 0.0
        %757 = vmatpush1.msra.mxu0 0.0
        %758 = vmatprep.subr.mxu0 0.0
        %759 = vmatpush1.msra.mxu0 0.0
        %760 = vmatprep.subr.mxu0 0.0
        %761 = vmatpush1.msra.mxu0 0.0
        %762 = vmatprep.subr.mxu0 0.0
        %763 = vmatpush1.msra.mxu0 0.0
        %764 = vmatprep.subr.mxu0 0.0
        %765 = vmatpush1.msra.mxu0 0.0
        %766 = vmatprep.subr.mxu0 0.0
        %767 = vmatpush1.msra.mxu0 0.0
        %768 = vmatprep.subr.mxu0 0.0
        %769 = vmatpush1.msra.mxu0 0.0
        %770 = vmatprep.subr.mxu0 0.0
        %771 = vmatpush1.msra.mxu0 0.0
        %772 = vmatprep.subr.mxu0 0.0
        %773 = vmatpush1.msra.mxu0 0.0
        %774 = vmatprep.subr.mxu0 0.0
        %v775 = vand.u32 %v335, 4294901760
        %776 = vmatpush1.msra.mxu0 %v775
        %777 = vmatprep.subr.mxu0 0.0
        %v778 = vand.u32 %v334, 4294901760
        %779 = vmatpush1.msra.mxu0 %v778
        %780 = vmatprep.subr.mxu0 0.0
        %v781 = vand.u32 %v333, 4294901760
        %782 = vmatpush1.msra.mxu0 %v781
        %783 = vmatprep.subr.mxu0 0.0
        %v784 = vand.u32 %v332, 4294901760
        %785 = vmatpush1.msra.mxu0 %v784
        %786 = vmatprep.subr.mxu0 0.0
        %787 = vmatpush2.msra.mxu0 0.0
        %788 = vmatprep.subr.mxu0 0.0
        %789 = vmatpush2.msra.mxu0 0.0
        %790 = vmatprep.subr.mxu0 0.0
        %791 = vmatpush2.msra.mxu0 0.0
        %792 = vmatprep.subr.mxu0 0.0
        %793 = vmatpush2.msra.mxu0 0.0
        %794 = vmatprep.subr.mxu0 0.0
        %795 = vmatpush2.msra.mxu0 0.0
        %796 = vmatprep.subr.mxu0 0.0
        %797 = vmatpush2.msra.mxu0 0.0
        %798 = vmatprep.subr.mxu0 0.0
        %799 = vmatpush2.msra.mxu0 0.0
        %800 = vmatprep.subr.mxu0 0.0
        %801 = vmatpush2.msra.mxu0 0.0
        %802 = vmatprep.subr.mxu0 0.0
        %803 = vmatpush2.msra.mxu0 0.0
        %804 = vmatprep.subr.mxu0 0.0
        %805 = vmatpush2.msra.mxu0 0.0
        %806 = vmatprep.subr.mxu0 0.0
        %807 = vmatpush2.msra.mxu0 0.0
        %808 = vmatprep.subr.mxu0 0.0
        %809 = vmatpush2.msra.mxu0 0.0
        %810 = vmatprep.subr.mxu0 0.0
        %811 = vmatpush2.msra.mxu0 0.0
        %812 = vmatprep.subr.mxu0 0.0
        %813 = vmatpush2.msra.mxu0 0.0
        %814 = vmatprep.subr.mxu0 0.0
        %815 = vmatpush2.msra.mxu0 0.0
        %816 = vmatprep.subr.mxu0 0.0
        %817 = vmatpush2.msra.mxu0 0.0
        %818 = vmatprep.mubr.f32.mxu0 0.0
        %v819 = vand.u32 %v338, 4294901760
        %820 = vmatmul.mubr.f32.gmra.mxu0 %v819
        %v821 = vpop.f32.mrf.mxu0
        %v822 = vadd.f32 %v747, %v821
        %v823 = vpop.f32.mrf.mxu0
        %824 = vdwg.mxu0
        %v825 = vmax.f32 %v822, 0.0
        %vm826 = vcmask 15360
        %v828 = vsel %vm826, %v290, 0
        %v831 = vsel %vm826, %v291, 0
        %v834 = vsel %vm826, %v292, 0
        %v837 = vsel %vm826, %v293, 0
        %vm839 = vcmask 1041408
        %v841 = vsel %vm839, %v825, 0
        %843 = vmatprep.subr.mxu0 0.0
        %844 = vmatpush1.msra.mxu0 0.0
        %845 = vmatprep.subr.mxu0 0.0
        %846 = vmatpush1.msra.mxu0 0.0
        %847 = vmatprep.subr.mxu0 0.0
        %848 = vmatpush1.msra.mxu0 0.0
        %849 = vmatprep.subr.mxu0 0.0
        %850 = vmatpush1.msra.mxu0 0.0
        %851 = vmatprep.subr.mxu0 0.0
        %852 = vmatpush1.msra.mxu0 0.0
        %853 = vmatprep.subr.mxu0 0.0
        %854 = vmatpush1.msra.mxu0 0.0
        %855 = vmatprep.subr.mxu0 0.0
        %856 = vmatpush1.msra.mxu0 0.0
        %857 = vmatprep.subr.mxu0 0.0
        %858 = vmatpush1.msra.mxu0 0.0
        %859 = vmatprep.subr.mxu0 0.0
        %860 = vmatpush1.msra.mxu0 0.0
        %861 = vmatprep.subr.mxu0 0.0
        %862 = vmatpush1.msra.mxu0 0.0
        %863 = vmatprep.subr.mxu0 0.0
        %864 = vmatpush1.msra.mxu0 0.0
        %865 = vmatprep.subr.mxu0 0.0
        %866 = vmatpush1.msra.mxu0 0.0
        %867 = vmatprep.subr.mxu0 0.0
        %868 = vmatpush1.msra.mxu0 0.0
        %869 = vmatprep.subr.mxu0 0.0
        %870 = vmatpush1.msra.mxu0 0.0
        %871 = vmatprep.subr.mxu0 0.0
        %872 = vmatpush1.msra.mxu0 0.0
        %873 = vmatprep.subr.mxu0 0.0
        %v874 = vand.u32 %v841, 4294901760
        %875 = vmatpush1.msra.mxu0 %v874
        %876 = vmatprep.subr.mxu0 0.0
        %877 = vmatpush2.msra.mxu0 0.0
        %878 = vmatprep.subr.mxu0 0.0
        %879 = vmatpush2.msra.mxu0 0.0
        %880 = vmatprep.subr.mxu0 0.0
        %881 = vmatpush2.msra.mxu0 0.0
        %882 = vmatprep.subr.mxu0 0.0
        %883 = vmatpush2.msra.mxu0 0.0
        %884 = vmatprep.subr.mxu0 0.0
        %885 = vmatpush2.msra.mxu0 0.0
        %886 = vmatprep.subr.mxu0 0.0
        %887 = vmatpush2.msra.mxu0 0.0
        %888 = vmatprep.subr.mxu0 0.0
        %889 = vmatpush2.msra.mxu0 0.0
        %890 = vmatprep.subr.mxu0 0.0
        %891 = vmatpush2.msra.mxu0 0.0
        %892 = vmatprep.subr.mxu0 0.0
        %893 = vmatpush2.msra.mxu0 0.0
        %894 = vmatprep.subr.mxu0 0.0
        %895 = vmatpush2.msra.mxu0 0.0
        %896 = vmatprep.subr.mxu0 0.0
        %897 = vmatpush2.msra.mxu0 0.0
        %898 = vmatprep.subr.mxu0 0.0
        %899 = vmatpush2.msra.mxu0 0.0
        %900 = vmatprep.subr.mxu0 0.0
        %901 = vmatpush2.msra.mxu0 0.0
        %902 = vmatprep.subr.mxu0 0.0
        %903 = vmatpush2.msra.mxu0 0.0
        %904 = vmatprep.subr.mxu0 0.0
        %905 = vmatpush2.msra.mxu0 0.0
        %906 = vmatprep.subr.mxu0 0.0
        %907 = vmatpush2.msra.mxu0 0.0
        %908 = vmatprep.mubr.f32.mxu0 0.0
        %v909 = vand.u32 %v828, 4294901760
        %v910 = vsub.f32 %v828, %v909
        %v911 = vand.u32 %v910, 4294901760
        %v912 = vsub.f32 %v910, %v911
        %v913 = vand.u32 %v912, 4294901760
        %914 = vmatmul.mubr.f32.gmra.mxu0 %v913
        %v915 = vpop.f32.mrf.mxu0
        %v916 = vadd.f32 0.0, %v915
        %v917 = vpop.f32.mrf.mxu0
        %918 = vmatprep.mubr.f32.mxu0 0.0
        %v919 = vand.u32 %v831, 4294901760
        %v920 = vsub.f32 %v831, %v919
        %v921 = vand.u32 %v920, 4294901760
        %v922 = vsub.f32 %v920, %v921
        %v923 = vand.u32 %v922, 4294901760
        %924 = vmatmul.mubr.f32.gmra.mxu0 %v923
        %v925 = vpop.f32.mrf.mxu0
        %v926 = vadd.f32 0.0, %v925
        %v927 = vpop.f32.mrf.mxu0
        %928 = vmatprep.mubr.f32.mxu0 0.0
        %v929 = vand.u32 %v834, 4294901760
        %v930 = vsub.f32 %v834, %v929
        %v931 = vand.u32 %v930, 4294901760
        %v932 = vsub.f32 %v930, %v931
        %v933 = vand.u32 %v932, 4294901760
        %934 = vmatmul.mubr.f32.gmra.mxu0 %v933
        %v935 = vpop.f32.mrf.mxu0
        %v936 = vadd.f32 0.0, %v935
        %v937 = vpop.f32.mrf.mxu0
        %938 = vmatprep.mubr.f32.mxu0 0.0
        %v939 = vand.u32 %v837, 4294901760
        %v940 = vsub.f32 %v837, %v939
        %v941 = vand.u32 %v940, 4294901760
        %v942 = vsub.f32 %v940, %v941
        %v943 = vand.u32 %v942, 4294901760
        %944 = vmatmul.mubr.f32.gmra.mxu0 %v943
        %v945 = vpop.f32.mrf.mxu0
        %v946 = vadd.f32 0.0, %v945
        %v947 = vpop.f32.mrf.mxu0
        %948 = vdwg.mxu0
        %949 = vmatprep.subr.mxu0 0.0
        %950 = vmatpush1.msra.mxu0 0.0
        %951 = vmatprep.subr.mxu0 0.0
        %952 = vmatpush1.msra.mxu0 0.0
        %953 = vmatprep.subr.mxu0 0.0
        %954 = vmatpush1.msra.mxu0 0.0
        %955 = vmatprep.subr.mxu0 0.0
        %956 = vmatpush1.msra.mxu0 0.0
        %957 = vmatprep.subr.mxu0 0.0
        %958 = vmatpush1.msra.mxu0 0.0
        %959 = vmatprep.subr.mxu0 0.0
        %960 = vmatpush1.msra.mxu0 0.0
        %961 = vmatprep.subr.mxu0 0.0
        %962 = vmatpush1.msra.mxu0 0.0
        %963 = vmatprep.subr.mxu0 0.0
        %964 = vmatpush1.msra.mxu0 0.0
        %965 = vmatprep.subr.mxu0 0.0
        %966 = vmatpush1.msra.mxu0 0.0
        %967 = vmatprep.subr.mxu0 0.0
        %968 = vmatpush1.msra.mxu0 0.0
        %969 = vmatprep.subr.mxu0 0.0
        %970 = vmatpush1.msra.mxu0 0.0
        %971 = vmatprep.subr.mxu0 0.0
        %972 = vmatpush1.msra.mxu0 0.0
        %973 = vmatprep.subr.mxu0 0.0
        %974 = vmatpush1.msra.mxu0 0.0
        %975 = vmatprep.subr.mxu0 0.0
        %976 = vmatpush1.msra.mxu0 0.0
        %977 = vmatprep.subr.mxu0 0.0
        %978 = vmatpush1.msra.mxu0 0.0
        %979 = vmatprep.subr.mxu0 0.0
        %v980 = vand.u32 %v841, 4294901760
        %v981 = vsub.f32 %v841, %v980
        %v982 = vand.u32 %v981, 4294901760
        %v983 = vsub.f32 %v981, %v982
        %v984 = vand.u32 %v983, 4294901760
        %985 = vmatpush1.msra.mxu0 %v984
        %986 = vmatprep.subr.mxu0 0.0
        %987 = vmatpush2.msra.mxu0 0.0
        %988 = vmatprep.subr.mxu0 0.0
        %989 = vmatpush2.msra.mxu0 0.0
        %990 = vmatprep.subr.mxu0 0.0
        %991 = vmatpush2.msra.mxu0 0.0
        %992 = vmatprep.subr.mxu0 0.0
        %993 = vmatpush2.msra.mxu0 0.0
        %994 = vmatprep.subr.mxu0 0.0
        %995 = vmatpush2.msra.mxu0 0.0
        %996 = vmatprep.subr.mxu0 0.0
        %997 = vmatpush2.msra.mxu0 0.0
        %998 = vmatprep.subr.mxu0 0.0
        %999 = vmatpush2.msra.mxu0 0.0
        %1000 = vmatprep.subr.mxu0 0.0
        %1001 = vmatpush2.msra.mxu0 0.0
        %1002 = vmatprep.subr.mxu0 0.0
        %1003 = vmatpush2.msra.mxu0 0.0
        %1004 = vmatprep.subr.mxu0 0.0
        %1005 = vmatpush2.msra.mxu0 0.0
        %1006 = vmatprep.subr.mxu0 0.0
        %1007 = vmatpush2.msra.mxu0 0.0
        %1008 = vmatprep.subr.mxu0 0.0
        %1009 = vmatpush2.msra.mxu0 0.0
        %1010 = vmatprep.subr.mxu0 0.0
        %1011 = vmatpush2.msra.mxu0 0.0
        %1012 = vmatprep.subr.mxu0 0.0
        %1013 = vmatpush2.msra.mxu0 0.0
        %1014 = vmatprep.subr.mxu0 0.0
        %1015 = vmatpush2.msra.mxu0 0.0
        %1016 = vmatprep.subr.mxu0 0.0
        %1017 = vmatpush2.msra.mxu0 0.0
        %1018 = vmatprep.mubr.f32.mxu0 0.0
        %v1019 = vand.u32 %v828, 4294901760
        %1020 = vmatmul.mubr.f32.gmra.mxu0 %v1019
        %v1021 = vpop.f32.mrf.mxu0
        %v1022 = vadd.f32 %v916, %v1021
        %v1023 = vpop.f32.mrf.mxu0
        %1024 = vmatprep.mubr.f32.mxu0 0.0
        %v1025 = vand.u32 %v831, 4294901760
        %1026 = vmatmul.mubr.f32.gmra.mxu0 %v1025
        %v1027 = vpop.f32.mrf.mxu0
        %v1028 = vadd.f32 %v926, %v1027
        %v1029 = vpop.f32.mrf.mxu0
        %1030 = vmatprep.mubr.f32.mxu0 0.0
        %v1031 = vand.u32 %v834, 4294901760
        %1032 = vmatmul.mubr.f32.gmra.mxu0 %v1031
        %v1033 = vpop.f32.mrf.mxu0
        %v1034 = vadd.f32 %v936, %v1033
        %v1035 = vpop.f32.mrf.mxu0
        %1036 = vmatprep.mubr.f32.mxu0 0.0
        %v1037 = vand.u32 %v837, 4294901760
        %1038 = vmatmul.mubr.f32.gmra.mxu0 %v1037
        %v1039 = vpop.f32.mrf.mxu0
        %v1040 = vadd.f32 %v946, %v1039
        %v1041 = vpop.f32.mrf.mxu0
        %1042 = vdwg.mxu0
        %1043 = vmatprep.subr.mxu0 0.0
        %1044 = vmatpush1.msra.mxu0 0.0
        %1045 = vmatprep.subr.mxu0 0.0
        %1046 = vmatpush1.msra.mxu0 0.0
        %1047 = vmatprep.subr.mxu0 0.0
        %1048 = vmatpush1.msra.mxu0 0.0
        %1049 = vmatprep.subr.mxu0 0.0
        %1050 = vmatpush1.msra.mxu0 0.0
        %1051 = vmatprep.subr.mxu0 0.0
        %1052 = vmatpush1.msra.mxu0 0.0
        %1053 = vmatprep.subr.mxu0 0.0
        %1054 = vmatpush1.msra.mxu0 0.0
        %1055 = vmatprep.subr.mxu0 0.0
        %1056 = vmatpush1.msra.mxu0 0.0
        %1057 = vmatprep.subr.mxu0 0.0
        %1058 = vmatpush1.msra.mxu0 0.0
        %1059 = vmatprep.subr.mxu0 0.0
        %1060 = vmatpush1.msra.mxu0 0.0
        %1061 = vmatprep.subr.mxu0 0.0
        %1062 = vmatpush1.msra.mxu0 0.0
        %1063 = vmatprep.subr.mxu0 0.0
        %1064 = vmatpush1.msra.mxu0 0.0
        %1065 = vmatprep.subr.mxu0 0.0
        %1066 = vmatpush1.msra.mxu0 0.0
        %1067 = vmatprep.subr.mxu0 0.0
        %1068 = vmatpush1.msra.mxu0 0.0
        %1069 = vmatprep.subr.mxu0 0.0
        %1070 = vmatpush1.msra.mxu0 0.0
        %1071 = vmatprep.subr.mxu0 0.0
        %1072 = vmatpush1.msra.mxu0 0.0
        %1073 = vmatprep.subr.mxu0 0.0
        %v1074 = vand.u32 %v841, 4294901760
        %v1075 = vsub.f32 %v841, %v1074
        %1076 = vmatpush1.msra.mxu0 %v1075
        %1077 = vmatprep.subr.mxu0 0.0
        %1078 = vmatpush2.msra.mxu0 0.0
        %1079 = vmatprep.subr.mxu0 0.0
        %1080 = vmatpush2.msra.mxu0 0.0
        %1081 = vmatprep.subr.mxu0 0.0
        %1082 = vmatpush2.msra.mxu0 0.0
        %1083 = vmatprep.subr.mxu0 0.0
        %1084 = vmatpush2.msra.mxu0 0.0
        %1085 = vmatprep.subr.mxu0 0.0
        %1086 = vmatpush2.msra.mxu0 0.0
        %1087 = vmatprep.subr.mxu0 0.0
        %1088 = vmatpush2.msra.mxu0 0.0
        %1089 = vmatprep.subr.mxu0 0.0
        %1090 = vmatpush2.msra.mxu0 0.0
        %1091 = vmatprep.subr.mxu0 0.0
        %1092 = vmatpush2.msra.mxu0 0.0
        %1093 = vmatprep.subr.mxu0 0.0
        %1094 = vmatpush2.msra.mxu0 0.0
        %1095 = vmatprep.subr.mxu0 0.0
        %1096 = vmatpush2.msra.mxu0 0.0
        %1097 = vmatprep.subr.mxu0 0.0
        %1098 = vmatpush2.msra.mxu0 0.0
        %1099 = vmatprep.subr.mxu0 0.0
        %1100 = vmatpush2.msra.mxu0 0.0
        %1101 = vmatprep.subr.mxu0 0.0
        %1102 = vmatpush2.msra.mxu0 0.0
        %1103 = vmatprep.subr.mxu0 0.0
        %1104 = vmatpush2.msra.mxu0 0.0
        %1105 = vmatprep.subr.mxu0 0.0
        %1106 = vmatpush2.msra.mxu0 0.0
        %1107 = vmatprep.subr.mxu0 0.0
        %1108 = vmatpush2.msra.mxu0 0.0
        %1109 = vmatprep.mubr.f32.mxu0 0.0
        %v1110 = vand.u32 %v828, 4294901760
        %v1111 = vsub.f32 %v828, %v1110
        %1112 = vmatmul.mubr.f32.gmra.mxu0 %v1111
        %v1113 = vpop.f32.mrf.mxu0
        %v1114 = vadd.f32 %v1022, %v1113
        %v1115 = vpop.f32.mrf.mxu0
        %1116 = vmatprep.mubr.f32.mxu0 0.0
        %v1117 = vand.u32 %v831, 4294901760
        %v1118 = vsub.f32 %v831, %v1117
        %1119 = vmatmul.mubr.f32.gmra.mxu0 %v1118
        %v1120 = vpop.f32.mrf.mxu0
        %v1121 = vadd.f32 %v1028, %v1120
        %v1122 = vpop.f32.mrf.mxu0
        %1123 = vmatprep.mubr.f32.mxu0 0.0
        %v1124 = vand.u32 %v834, 4294901760
        %v1125 = vsub.f32 %v834, %v1124
        %1126 = vmatmul.mubr.f32.gmra.mxu0 %v1125
        %v1127 = vpop.f32.mrf.mxu0
        %v1128 = vadd.f32 %v1034, %v1127
        %v1129 = vpop.f32.mrf.mxu0
        %1130 = vmatprep.mubr.f32.mxu0 0.0
        %v1131 = vand.u32 %v837, 4294901760
        %v1132 = vsub.f32 %v837, %v1131
        %1133 = vmatmul.mubr.f32.gmra.mxu0 %v1132
        %v1134 = vpop.f32.mrf.mxu0
        %v1135 = vadd.f32 %v1040, %v1134
        %v1136 = vpop.f32.mrf.mxu0
        %1137 = vdwg.mxu0
        %1138 = vmatprep.subr.mxu0 0.0
        %1139 = vmatpush1.msra.mxu0 0.0
        %1140 = vmatprep.subr.mxu0 0.0
        %1141 = vmatpush1.msra.mxu0 0.0
        %1142 = vmatprep.subr.mxu0 0.0
        %1143 = vmatpush1.msra.mxu0 0.0
        %1144 = vmatprep.subr.mxu0 0.0
        %1145 = vmatpush1.msra.mxu0 0.0
        %1146 = vmatprep.subr.mxu0 0.0
        %1147 = vmatpush1.msra.mxu0 0.0
        %1148 = vmatprep.subr.mxu0 0.0
        %1149 = vmatpush1.msra.mxu0 0.0
        %1150 = vmatprep.subr.mxu0 0.0
        %1151 = vmatpush1.msra.mxu0 0.0
        %1152 = vmatprep.subr.mxu0 0.0
        %1153 = vmatpush1.msra.mxu0 0.0
        %1154 = vmatprep.subr.mxu0 0.0
        %1155 = vmatpush1.msra.mxu0 0.0
        %1156 = vmatprep.subr.mxu0 0.0
        %1157 = vmatpush1.msra.mxu0 0.0
        %1158 = vmatprep.subr.mxu0 0.0
        %1159 = vmatpush1.msra.mxu0 0.0
        %1160 = vmatprep.subr.mxu0 0.0
        %1161 = vmatpush1.msra.mxu0 0.0
        %1162 = vmatprep.subr.mxu0 0.0
        %1163 = vmatpush1.msra.mxu0 0.0
        %1164 = vmatprep.subr.mxu0 0.0
        %1165 = vmatpush1.msra.mxu0 0.0
        %1166 = vmatprep.subr.mxu0 0.0
        %1167 = vmatpush1.msra.mxu0 0.0
        %1168 = vmatprep.subr.mxu0 0.0
        %v1169 = vand.u32 %v841, 4294901760
        %1170 = vmatpush1.msra.mxu0 %v1169
        %1171 = vmatprep.subr.mxu0 0.0
        %1172 = vmatpush2.msra.mxu0 0.0
        %1173 = vmatprep.subr.mxu0 0.0
        %1174 = vmatpush2.msra.mxu0 0.0
        %1175 = vmatprep.subr.mxu0 0.0
        %1176 = vmatpush2.msra.mxu0 0.0
        %1177 = vmatprep.subr.mxu0 0.0
        %1178 = vmatpush2.msra.mxu0 0.0
        %1179 = vmatprep.subr.mxu0 0.0
        %1180 = vmatpush2.msra.mxu0 0.0
        %1181 = vmatprep.subr.mxu0 0.0
        %1182 = vmatpush2.msra.mxu0 0.0
        %1183 = vmatprep.subr.mxu0 0.0
        %1184 = vmatpush2.msra.mxu0 0.0
        %1185 = vmatprep.subr.mxu0 0.0
        %1186 = vmatpush2.msra.mxu0 0.0
        %1187 = vmatprep.subr.mxu0 0.0
        %1188 = vmatpush2.msra.mxu0 0.0
        %1189 = vmatprep.subr.mxu0 0.0
        %1190 = vmatpush2.msra.mxu0 0.0
        %1191 = vmatprep.subr.mxu0 0.0
        %1192 = vmatpush2.msra.mxu0 0.0
        %1193 = vmatprep.subr.mxu0 0.0
        %1194 = vmatpush2.msra.mxu0 0.0
        %1195 = vmatprep.subr.mxu0 0.0
        %1196 = vmatpush2.msra.mxu0 0.0
        %1197 = vmatprep.subr.mxu0 0.0
        %1198 = vmatpush2.msra.mxu0 0.0
        %1199 = vmatprep.subr.mxu0 0.0
        %1200 = vmatpush2.msra.mxu0 0.0
        %1201 = vmatprep.subr.mxu0 0.0
        %1202 = vmatpush2.msra.mxu0 0.0
        %1203 = vmatprep.mubr.f32.mxu0 0.0
        %v1204 = vand.u32 %v828, 4294901760
        %v1205 = vsub.f32 %v828, %v1204
        %v1206 = vand.u32 %v1205, 4294901760
        %1207 = vmatmul.mubr.f32.gmra.mxu0 %v1206
        %v1208 = vpop.f32.mrf.mxu0
        %v1209 = vadd.f32 %v1114, %v1208
        %v1210 = vpop.f32.mrf.mxu0
        %1211 = vmatprep.mubr.f32.mxu0 0.0
        %v1212 = vand.u32 %v831, 4294901760
        %v1213 = vsub.f32 %v831, %v1212
        %v1214 = vand.u32 %v1213, 4294901760
        %1215 = vmatmul.mubr.f32.gmra.mxu0 %v1214
        %v1216 = vpop.f32.mrf.mxu0
        %v1217 = vadd.f32 %v1121, %v1216
        %v1218 = vpop.f32.mrf.mxu0
        %1219 = vmatprep.mubr.f32.mxu0 0.0
        %v1220 = vand.u32 %v834, 4294901760
        %v1221 = vsub.f32 %v834, %v1220
        %v1222 = vand.u32 %v1221, 4294901760
        %1223 = vmatmul.mubr.f32.gmra.mxu0 %v1222
        %v1224 = vpop.f32.mrf.mxu0
        %v1225 = vadd.f32 %v1128, %v1224
        %v1226 = vpop.f32.mrf.mxu0
        %1227 = vmatprep.mubr.f32.mxu0 0.0
        %v1228 = vand.u32 %v837, 4294901760
        %v1229 = vsub.f32 %v837, %v1228
        %v1230 = vand.u32 %v1229, 4294901760
        %1231 = vmatmul.mubr.f32.gmra.mxu0 %v1230
        %v1232 = vpop.f32.mrf.mxu0
        %v1233 = vadd.f32 %v1135, %v1232
        %v1234 = vpop.f32.mrf.mxu0
        %1235 = vdwg.mxu0
        %1236 = vmatprep.subr.mxu0 0.0
        %1237 = vmatpush1.msra.mxu0 0.0
        %1238 = vmatprep.subr.mxu0 0.0
        %1239 = vmatpush1.msra.mxu0 0.0
        %1240 = vmatprep.subr.mxu0 0.0
        %1241 = vmatpush1.msra.mxu0 0.0
        %1242 = vmatprep.subr.mxu0 0.0
        %1243 = vmatpush1.msra.mxu0 0.0
        %1244 = vmatprep.subr.mxu0 0.0
        %1245 = vmatpush1.msra.mxu0 0.0
        %1246 = vmatprep.subr.mxu0 0.0
        %1247 = vmatpush1.msra.mxu0 0.0
        %1248 = vmatprep.subr.mxu0 0.0
        %1249 = vmatpush1.msra.mxu0 0.0
        %1250 = vmatprep.subr.mxu0 0.0
        %1251 = vmatpush1.msra.mxu0 0.0
        %1252 = vmatprep.subr.mxu0 0.0
        %1253 = vmatpush1.msra.mxu0 0.0
        %1254 = vmatprep.subr.mxu0 0.0
        %1255 = vmatpush1.msra.mxu0 0.0
        %1256 = vmatprep.subr.mxu0 0.0
        %1257 = vmatpush1.msra.mxu0 0.0
        %1258 = vmatprep.subr.mxu0 0.0
        %1259 = vmatpush1.msra.mxu0 0.0
        %1260 = vmatprep.subr.mxu0 0.0
        %1261 = vmatpush1.msra.mxu0 0.0
        %1262 = vmatprep.subr.mxu0 0.0
        %1263 = vmatpush1.msra.mxu0 0.0
        %1264 = vmatprep.subr.mxu0 0.0
        %1265 = vmatpush1.msra.mxu0 0.0
        %1266 = vmatprep.subr.mxu0 0.0
        %v1267 = vand.u32 %v841, 4294901760
        %v1268 = vsub.f32 %v841, %v1267
        %v1269 = vand.u32 %v1268, 4294901760
        %1270 = vmatpush1.msra.mxu0 %v1269
        %1271 = vmatprep.subr.mxu0 0.0
        %1272 = vmatpush2.msra.mxu0 0.0
        %1273 = vmatprep.subr.mxu0 0.0
        %1274 = vmatpush2.msra.mxu0 0.0
        %1275 = vmatprep.subr.mxu0 0.0
        %1276 = vmatpush2.msra.mxu0 0.0
        %1277 = vmatprep.subr.mxu0 0.0
        %1278 = vmatpush2.msra.mxu0 0.0
        %1279 = vmatprep.subr.mxu0 0.0
        %1280 = vmatpush2.msra.mxu0 0.0
        %1281 = vmatprep.subr.mxu0 0.0
        %1282 = vmatpush2.msra.mxu0 0.0
        %1283 = vmatprep.subr.mxu0 0.0
        %1284 = vmatpush2.msra.mxu0 0.0
        %1285 = vmatprep.subr.mxu0 0.0
        %1286 = vmatpush2.msra.mxu0 0.0
        %1287 = vmatprep.subr.mxu0 0.0
        %1288 = vmatpush2.msra.mxu0 0.0
        %1289 = vmatprep.subr.mxu0 0.0
        %1290 = vmatpush2.msra.mxu0 0.0
        %1291 = vmatprep.subr.mxu0 0.0
        %1292 = vmatpush2.msra.mxu0 0.0
        %1293 = vmatprep.subr.mxu0 0.0
        %1294 = vmatpush2.msra.mxu0 0.0
        %1295 = vmatprep.subr.mxu0 0.0
        %1296 = vmatpush2.msra.mxu0 0.0
        %1297 = vmatprep.subr.mxu0 0.0
        %1298 = vmatpush2.msra.mxu0 0.0
        %1299 = vmatprep.subr.mxu0 0.0
        %1300 = vmatpush2.msra.mxu0 0.0
        %1301 = vmatprep.subr.mxu0 0.0
        %1302 = vmatpush2.msra.mxu0 0.0
        %1303 = vmatprep.mubr.f32.mxu0 0.0
        %v1304 = vand.u32 %v828, 4294901760
        %1305 = vmatmul.mubr.f32.gmra.mxu0 %v1304
        %v1306 = vpop.f32.mrf.mxu0
        %v1307 = vadd.f32 %v1209, %v1306
        %v1308 = vpop.f32.mrf.mxu0
        %1309 = vmatprep.mubr.f32.mxu0 0.0
        %v1310 = vand.u32 %v831, 4294901760
        %1311 = vmatmul.mubr.f32.gmra.mxu0 %v1310
        %v1312 = vpop.f32.mrf.mxu0
        %v1313 = vadd.f32 %v1217, %v1312
        %v1314 = vpop.f32.mrf.mxu0
        %1315 = vmatprep.mubr.f32.mxu0 0.0
        %v1316 = vand.u32 %v834, 4294901760
        %1317 = vmatmul.mubr.f32.gmra.mxu0 %v1316
        %v1318 = vpop.f32.mrf.mxu0
        %v1319 = vadd.f32 %v1225, %v1318
        %v1320 = vpop.f32.mrf.mxu0
        %1321 = vmatprep.mubr.f32.mxu0 0.0
        %v1322 = vand.u32 %v837, 4294901760
        %1323 = vmatmul.mubr.f32.gmra.mxu0 %v1322
        %v1324 = vpop.f32.mrf.mxu0
        %v1325 = vadd.f32 %v1233, %v1324
        %v1326 = vpop.f32.mrf.mxu0
        %1327 = vdwg.mxu0
        %1328 = vmatprep.subr.mxu0 0.0
        %1329 = vmatpush1.msra.mxu0 0.0
        %1330 = vmatprep.subr.mxu0 0.0
        %1331 = vmatpush1.msra.mxu0 0.0
        %1332 = vmatprep.subr.mxu0 0.0
        %1333 = vmatpush1.msra.mxu0 0.0
        %1334 = vmatprep.subr.mxu0 0.0
        %1335 = vmatpush1.msra.mxu0 0.0
        %1336 = vmatprep.subr.mxu0 0.0
        %1337 = vmatpush1.msra.mxu0 0.0
        %1338 = vmatprep.subr.mxu0 0.0
        %1339 = vmatpush1.msra.mxu0 0.0
        %1340 = vmatprep.subr.mxu0 0.0
        %1341 = vmatpush1.msra.mxu0 0.0
        %1342 = vmatprep.subr.mxu0 0.0
        %1343 = vmatpush1.msra.mxu0 0.0
        %1344 = vmatprep.subr.mxu0 0.0
        %1345 = vmatpush1.msra.mxu0 0.0
        %1346 = vmatprep.subr.mxu0 0.0
        %1347 = vmatpush1.msra.mxu0 0.0
        %1348 = vmatprep.subr.mxu0 0.0
        %1349 = vmatpush1.msra.mxu0 0.0
        %1350 = vmatprep.subr.mxu0 0.0
        %1351 = vmatpush1.msra.mxu0 0.0
        %1352 = vmatprep.subr.mxu0 0.0
        %1353 = vmatpush1.msra.mxu0 0.0
        %1354 = vmatprep.subr.mxu0 0.0
        %1355 = vmatpush1.msra.mxu0 0.0
        %1356 = vmatprep.subr.mxu0 0.0
        %1357 = vmatpush1.msra.mxu0 0.0
        %1358 = vmatprep.subr.mxu0 0.0
        %v1359 = vand.u32 %v841, 4294901760
        %1360 = vmatpush1.msra.mxu0 %v1359
        %1361 = vmatprep.subr.mxu0 0.0
        %1362 = vmatpush2.msra.mxu0 0.0
        %1363 = vmatprep.subr.mxu0 0.0
        %1364 = vmatpush2.msra.mxu0 0.0
        %1365 = vmatprep.subr.mxu0 0.0
        %1366 = vmatpush2.msra.mxu0 0.0
        %1367 = vmatprep.subr.mxu0 0.0
        %1368 = vmatpush2.msra.mxu0 0.0
        %1369 = vmatprep.subr.mxu0 0.0
        %1370 = vmatpush2.msra.mxu0 0.0
        %1371 = vmatprep.subr.mxu0 0.0
        %1372 = vmatpush2.msra.mxu0 0.0
        %1373 = vmatprep.subr.mxu0 0.0
        %1374 = vmatpush2.msra.mxu0 0.0
        %1375 = vmatprep.subr.mxu0 0.0
        %1376 = vmatpush2.msra.mxu0 0.0
        %1377 = vmatprep.subr.mxu0 0.0
        %1378 = vmatpush2.msra.mxu0 0.0
        %1379 = vmatprep.subr.mxu0 0.0
        %1380 = vmatpush2.msra.mxu0 0.0
        %1381 = vmatprep.subr.mxu0 0.0
        %1382 = vmatpush2.msra.mxu0 0.0
        %1383 = vmatprep.subr.mxu0 0.0
        %1384 = vmatpush2.msra.mxu0 0.0
        %1385 = vmatprep.subr.mxu0 0.0
        %1386 = vmatpush2.msra.mxu0 0.0
        %1387 = vmatprep.subr.mxu0 0.0
        %1388 = vmatpush2.msra.mxu0 0.0
        %1389 = vmatprep.subr.mxu0 0.0
        %1390 = vmatpush2.msra.mxu0 0.0
        %1391 = vmatprep.subr.mxu0 0.0
        %1392 = vmatpush2.msra.mxu0 0.0
        %1393 = vmatprep.mubr.f32.mxu0 0.0
        %v1394 = vand.u32 %v828, 4294901760
        %1395 = vmatmul.mubr.f32.gmra.mxu0 %v1394
        %v1396 = vpop.f32.mrf.mxu0
        %v1397 = vadd.f32 %v1307, %v1396
        %v1398 = vpop.f32.mrf.mxu0
        %1399 = vmatprep.mubr.f32.mxu0 0.0
        %v1400 = vand.u32 %v831, 4294901760
        %1401 = vmatmul.mubr.f32.gmra.mxu0 %v1400
        %v1402 = vpop.f32.mrf.mxu0
        %v1403 = vadd.f32 %v1313, %v1402
        %v1404 = vpop.f32.mrf.mxu0
        %1405 = vmatprep.mubr.f32.mxu0 0.0
        %v1406 = vand.u32 %v834, 4294901760
        %1407 = vmatmul.mubr.f32.gmra.mxu0 %v1406
        %v1408 = vpop.f32.mrf.mxu0
        %v1409 = vadd.f32 %v1319, %v1408
        %v1410 = vpop.f32.mrf.mxu0
        %1411 = vmatprep.mubr.f32.mxu0 0.0
        %v1412 = vand.u32 %v837, 4294901760
        %1413 = vmatmul.mubr.f32.gmra.mxu0 %v1412
        %v1414 = vpop.f32.mrf.mxu0
        %v1415 = vadd.f32 %v1325, %v1414
        %v1416 = vpop.f32.mrf.mxu0
        %1417 = vdwg.mxu0
        %1422 = vrot.lane.b32.xlu0 %v1397, 127
        %v1423 = vpop.permute.xlu0 %1422
        %1424 = vrot.lane.b32.xlu0 %v1403, 127
        %v1425 = vpop.permute.xlu0 %1424
        %1426 = vrot.lane.b32.xlu0 %v1409, 127
        %v1427 = vpop.permute.xlu0 %1426
        %1428 = vrot.lane.b32.xlu0 %v1415, 127
        %v1429 = vpop.permute.xlu0 %1428
        %v1434 = vadd.f32 %v1397, %v1423
        %v1435 = vadd.f32 %v1403, %v1425
        %v1436 = vadd.f32 %v1409, %v1427
        %v1437 = vadd.f32 %v1415, %v1429
        %v1438 = vxor.u32 %v1434, 2147483648
        %v1439 = vxor.u32 %v1435, 2147483648
        %v1440 = vxor.u32 %v1436, 2147483648
        %v1441 = vxor.u32 %v1437, 2147483648
        %v1442 = vmul.f32 %v1438, 1.442695
        %v1443 = vpow.pop %v1442
        %v1444 = vmul.f32 %v1439, 1.442695
        %v1445 = vpow.pop %v1444
        %v1446 = vmul.f32 %v1440, 1.442695
        %v1447 = vpow.pop %v1446
        %v1448 = vmul.f32 %v1441, 1.442695
        %v1449 = vpow.pop %v1448
        %v1450 = vadd.f32 %v1443, 1.0
        %v1451 = vadd.f32 %v1445, 1.0
        %v1452 = vadd.f32 %v1447, 1.0
        %v1453 = vadd.f32 %v1449, 1.0
        %v1454 = vrcp.pop %v1450
        %v1455 = vmul.f32 1.0, %v1454
        %v1456 = vrcp.pop %v1451
        %v1457 = vmul.f32 1.0, %v1456
        %v1458 = vrcp.pop %v1452
        %v1459 = vmul.f32 1.0, %v1458
        %v1460 = vrcp.pop %v1453
        %v1461 = vmul.f32 1.0, %v1460
        %1463 = vset.pattern.permute.xlu0 0
        %1464 = vperm.xlu0 %1463, %v1455
        %v1465 = vpop.permute.xlu0 %1464
        %1468 = vset.pattern.permute.xlu0 0
        %1469 = vperm.xlu0 %1468, %v1457
        %v1470 = vpop.permute.xlu0 %1469
        %1473 = vset.pattern.permute.xlu0 0
        %1474 = vperm.xlu0 %1473, %v1459
        %v1475 = vpop.permute.xlu0 %1474
        %1478 = vset.pattern.permute.xlu0 0
        %1479 = vperm.xlu0 %1478, %v1461
        %v1480 = vpop.permute.xlu0 %1479
        %v1482 = vmul.f32 %v295, %v1465
        %v1483 = vmul.f32 %v296, %v1465
        %v1484 = vmul.f32 %v297, %v1470
        %v1485 = vmul.f32 %v298, %v1470
        %v1486 = vmul.f32 %v299, %v1475
        %v1487 = vmul.f32 %v300, %v1475
        %v1488 = vmul.f32 %v301, %v1480
        %v1489 = vmul.f32 %v302, %v1480
        %v1490 = vadd.f32 %v1482, %v1484
        %v1491 = vadd.f32 %v1490, %v1486
        %v1492 = vadd.f32 %v1491, %v1488
        %v1493 = vrot.slane %v1492, 4
        %v1494 = vadd.f32 %v1492, %v1493
        %v1495 = vrot.slane %v1494, 2
        %v1496 = vadd.f32 %v1494, %v1495
        %v1497 = vrot.slane %v1496, 1
        %v1498 = vadd.f32 %v1496, %v1497
        %v1499 = vadd.f32 %v1483, %v1485
        %v1500 = vadd.f32 %v1499, %v1487
        %v1501 = vadd.f32 %v1500, %v1489
        %v1502 = vrot.slane %v1501, 4
        %v1503 = vadd.f32 %v1501, %v1502
        %v1504 = vrot.slane %v1503, 2
        %v1505 = vadd.f32 %v1503, %v1504
        %v1506 = vrot.slane %v1505, 1
        %v1507 = vadd.f32 %v1505, %v1506
        %v1508 = vmul.f32 %v1498, 0.03125
        %v1509 = vmul.f32 %v1507, 0.03125
        %v1510 = vmax.f32 %v1482, %v1486
        %v1511 = vmax.f32 %v1484, %v1488
        %v1512 = vmax.f32 %v1510, %v1511
        %v1513 = vrot.slane %v1512, 4
        %v1514 = vmax.f32 %v1512, %v1513
        %v1515 = vrot.slane %v1514, 2
        %v1516 = vmax.f32 %v1514, %v1515
        %v1517 = vrot.slane %v1516, 1
        %v1518 = vmax.f32 %v1516, %v1517
        %v1519 = vmax.f32 %v1483, %v1487
        %v1520 = vmax.f32 %v1485, %v1489
        %v1521 = vmax.f32 %v1519, %v1520
        %v1522 = vrot.slane %v1521, 4
        %v1523 = vmax.f32 %v1521, %v1522
        %v1524 = vrot.slane %v1523, 2
        %v1525 = vmax.f32 %v1523, %v1524
        %v1526 = vrot.slane %v1525, 1
        %v1527 = vmax.f32 %v1525, %v1526
        %vm1528 = vcmask 1040384
        %v1529 = vsel %vm1528, %v1508, %v1518
        %v1530 = vsel %vm1528, %v1509, %v1527
        %1532 = vset.pattern.permute.xlu0 0
        %1533 = vperm.xlu0 %1532, %v294
        %v1534 = vpop.permute.xlu0 %1533
        %v1536 = vmul.f32 %v1534, 0.0
        %v1537 = vmul.f32 %v1534, %v1529
        %v1538 = vmul.f32 %v1534, %v1530
        %1539 = vset.pattern.permute.xlu0 7
        %1540 = vperm.xlu0 %1539, %v294
        %v1541 = vpop.permute.xlu0 %1540
        %v1543 = vmul.f32 %v1541, 0.0
        %v1544 = vmul.f32 %v1541, %v1529
        %v1545 = vmul.f32 %v1541, %v1530
        %1549 = vrot.lane.b32.xlu0 %v1543, 112
        %v1550 = vpop.permute.xlu0 %1549
        %1551 = vrot.lane.b32.xlu0 %v1544, 112
        %v1552 = vpop.permute.xlu0 %1551
        %1553 = vrot.lane.b32.xlu0 %v1545, 112
        %v1554 = vpop.permute.xlu0 %1553
        %vm1555 = vcmask 916480
        %v1556 = vsel %vm1555, %v1550, %v1552
        %v1557 = vsel %vm1555, %v1552, %v1554
        %v1561 = vadd.f32 %v1536, %v1556
        %v1562 = vadd.f32 %v1537, %v1557
        %v1563 = vadd.f32 %v1538, %v1554
        %1564 = vset.pattern.permute.xlu0 14
        %1565 = vperm.xlu0 %1564, %v294
        %v1566 = vpop.permute.xlu0 %1565
        %v1568 = vmul.f32 %v1566, 0.0
        %v1569 = vmul.f32 %v1566, %v1529
        %v1570 = vmul.f32 %v1566, %v1530
        %1574 = vrot.lane.b32.xlu0 %v1568, 96
        %v1575 = vpop.permute.xlu0 %1574
        %1576 = vrot.lane.b32.xlu0 %v1569, 96
        %v1577 = vpop.permute.xlu0 %1576
        %1578 = vrot.lane.b32.xlu0 %v1570, 96
        %v1579 = vpop.permute.xlu0 %1578
        %vm1580 = vcmask 785408
        %v1581 = vsel %vm1580, %v1575, %v1577
        %v1582 = vsel %vm1580, %v1577, %v1579
        %v1586 = vadd.f32 %v1561, %v1581
        %v1587 = vadd.f32 %v1562, %v1582
        %v1588 = vadd.f32 %v1563, %v1579
        %1589 = vset.pattern.permute.xlu0 21
        %1590 = vperm.xlu0 %1589, %v294
        %v1591 = vpop.permute.xlu0 %1590
        %v1593 = vmul.f32 %v1591, 0.0
        %v1594 = vmul.f32 %v1591, %v1529
        %v1595 = vmul.f32 %v1591, %v1530
        %1599 = vrot.lane.b32.xlu0 %v1593, 80
        %v1600 = vpop.permute.xlu0 %1599
        %1601 = vrot.lane.b32.xlu0 %v1594, 80
        %v1602 = vpop.permute.xlu0 %1601
        %1603 = vrot.lane.b32.xlu0 %v1595, 80
        %v1604 = vpop.permute.xlu0 %1603
        %vm1605 = vcmask 654336
        %v1606 = vsel %vm1605, %v1600, %v1602
        %v1607 = vsel %vm1605, %v1602, %v1604
        %v1611 = vadd.f32 %v1586, %v1606
        %v1612 = vadd.f32 %v1587, %v1607
        %v1613 = vadd.f32 %v1588, %v1604
        %1614 = vset.pattern.permute.xlu0 28
        %1615 = vperm.xlu0 %1614, %v294
        %v1616 = vpop.permute.xlu0 %1615
        %v1618 = vmul.f32 %v1616, %v1529
        %v1619 = vmul.f32 %v1616, %v1530
        %v1620 = vmul.f32 %v1616, 0.0
        %1624 = vrot.lane.b32.xlu0 %v1618, 64
        %v1625 = vpop.permute.xlu0 %1624
        %1626 = vrot.lane.b32.xlu0 %v1619, 64
        %v1627 = vpop.permute.xlu0 %1626
        %1628 = vrot.lane.b32.xlu0 %v1620, 64
        %v1629 = vpop.permute.xlu0 %1628
        %vm1630 = vcmask 523264
        %v1631 = vsel %vm1630, %v1625, %v1627
        %v1632 = vsel %vm1630, %v1627, %v1629
        %v1636 = vadd.f32 %v1611, %v1625
        %v1637 = vadd.f32 %v1612, %v1631
        %v1638 = vadd.f32 %v1613, %v1632
        %1639 = vset.pattern.permute.xlu0 35
        %1640 = vperm.xlu0 %1639, %v294
        %v1641 = vpop.permute.xlu0 %1640
        %v1643 = vmul.f32 %v1641, %v1529
        %v1644 = vmul.f32 %v1641, %v1530
        %v1645 = vmul.f32 %v1641, 0.0
        %1649 = vrot.lane.b32.xlu0 %v1643, 48
        %v1650 = vpop.permute.xlu0 %1649
        %1651 = vrot.lane.b32.xlu0 %v1644, 48
        %v1652 = vpop.permute.xlu0 %1651
        %1653 = vrot.lane.b32.xlu0 %v1645, 48
        %v1654 = vpop.permute.xlu0 %1653
        %vm1655 = vcmask 392192
        %v1656 = vsel %vm1655, %v1650, %v1652
        %v1657 = vsel %vm1655, %v1652, %v1654
        %v1661 = vadd.f32 %v1636, %v1650
        %v1662 = vadd.f32 %v1637, %v1656
        %v1663 = vadd.f32 %v1638, %v1657
        %1664 = vset.pattern.permute.xlu0 42
        %1665 = vperm.xlu0 %1664, %v294
        %v1666 = vpop.permute.xlu0 %1665
        %v1668 = vmul.f32 %v1666, %v1529
        %v1669 = vmul.f32 %v1666, %v1530
        %v1670 = vmul.f32 %v1666, 0.0
        %1674 = vrot.lane.b32.xlu0 %v1668, 32
        %v1675 = vpop.permute.xlu0 %1674
        %1676 = vrot.lane.b32.xlu0 %v1669, 32
        %v1677 = vpop.permute.xlu0 %1676
        %1678 = vrot.lane.b32.xlu0 %v1670, 32
        %v1679 = vpop.permute.xlu0 %1678
        %v1680 = vsel %vm336, %v1675, %v1677
        %v1681 = vsel %vm336, %v1677, %v1679
        %v1685 = vadd.f32 %v1661, %v1675
        %v1686 = vadd.f32 %v1662, %v1680
        %v1687 = vadd.f32 %v1663, %v1681
        %v1688 = vld [vmem:[%s4] ss:$8 sm:$0x3]
        %v1690 = vlaneseq
        %v1691 = vshrl.u32 %v1690, 7
        %v1692 = vsub.s32 0, %v1691
        %v1693 = vrot.slane %v1688, %v1692
        %v1694 = vlaneseq
        %v1695 = vshrl.u32 %v1694, 7
        %v1696 = vsub.s32 1, %v1695
        %v1697 = vrot.slane %v1688, %v1696
        %1698 = vrot.lane.b32.xlu0 %v1693, 77
        %v1699 = vpop.permute.xlu0 %1698
        %1700 = vrot.lane.b32.xlu0 %v1697, 77
        %v1701 = vpop.permute.xlu0 %1700
        %vm1702 = vcmask 629760
        %v1703 = vsel %vm1702, %v1699, %v1701
        %v1707 = vmul.f32 %v1685, %v1699
        %v1708 = vmul.f32 %v1686, %v1703
        %v1709 = vmul.f32 %v1687, %v1701
        %v1710 = vadd.f32 %v1707, 0.0
        %v1711 = vadd.f32 %v1708, 0.0
        %v1712 = vadd.f32 %v1709, 0.0
        %1713 = vset.pattern.permute.xlu0 1
        %1714 = vperm.xlu0 %1713, %v294
        %v1715 = vpop.permute.xlu0 %1714
        %v1717 = vmul.f32 %v1715, 0.0
        %v1718 = vmul.f32 %v1715, %v1529
        %v1719 = vmul.f32 %v1715, %v1530
        %1720 = vset.pattern.permute.xlu0 8
        %1721 = vperm.xlu0 %1720, %v294
        %v1722 = vpop.permute.xlu0 %1721
        %v1724 = vmul.f32 %v1722, 0.0
        %v1725 = vmul.f32 %v1722, %v1529
        %v1726 = vmul.f32 %v1722, %v1530
        %1730 = vrot.lane.b32.xlu0 %v1724, 112
        %v1731 = vpop.permute.xlu0 %1730
        %1732 = vrot.lane.b32.xlu0 %v1725, 112
        %v1733 = vpop.permute.xlu0 %1732
        %1734 = vrot.lane.b32.xlu0 %v1726, 112
        %v1735 = vpop.permute.xlu0 %1734
        %v1736 = vsel %vm1555, %v1731, %v1733
        %v1737 = vsel %vm1555, %v1733, %v1735
        %v1741 = vadd.f32 %v1717, %v1736
        %v1742 = vadd.f32 %v1718, %v1737
        %v1743 = vadd.f32 %v1719, %v1735
        %1744 = vset.pattern.permute.xlu0 15
        %1745 = vperm.xlu0 %1744, %v294
        %v1746 = vpop.permute.xlu0 %1745
        %v1748 = vmul.f32 %v1746, 0.0
        %v1749 = vmul.f32 %v1746, %v1529
        %v1750 = vmul.f32 %v1746, %v1530
        %1754 = vrot.lane.b32.xlu0 %v1748, 96
        %v1755 = vpop.permute.xlu0 %1754
        %1756 = vrot.lane.b32.xlu0 %v1749, 96
        %v1757 = vpop.permute.xlu0 %1756
        %1758 = vrot.lane.b32.xlu0 %v1750, 96
        %v1759 = vpop.permute.xlu0 %1758
        %v1760 = vsel %vm1580, %v1755, %v1757
        %v1761 = vsel %vm1580, %v1757, %v1759
        %v1765 = vadd.f32 %v1741, %v1760
        %v1766 = vadd.f32 %v1742, %v1761
        %v1767 = vadd.f32 %v1743, %v1759
        %1768 = vset.pattern.permute.xlu0 22
        %1769 = vperm.xlu0 %1768, %v294
        %v1770 = vpop.permute.xlu0 %1769
        %v1772 = vmul.f32 %v1770, 0.0
        %v1773 = vmul.f32 %v1770, %v1529
        %v1774 = vmul.f32 %v1770, %v1530
        %1778 = vrot.lane.b32.xlu0 %v1772, 80
        %v1779 = vpop.permute.xlu0 %1778
        %1780 = vrot.lane.b32.xlu0 %v1773, 80
        %v1781 = vpop.permute.xlu0 %1780
        %1782 = vrot.lane.b32.xlu0 %v1774, 80
        %v1783 = vpop.permute.xlu0 %1782
        %v1784 = vsel %vm1605, %v1779, %v1781
        %v1785 = vsel %vm1605, %v1781, %v1783
        %v1789 = vadd.f32 %v1765, %v1784
        %v1790 = vadd.f32 %v1766, %v1785
        %v1791 = vadd.f32 %v1767, %v1783
        %1792 = vset.pattern.permute.xlu0 29
        %1793 = vperm.xlu0 %1792, %v294
        %v1794 = vpop.permute.xlu0 %1793
        %v1796 = vmul.f32 %v1794, %v1529
        %v1797 = vmul.f32 %v1794, %v1530
        %v1798 = vmul.f32 %v1794, 0.0
        %1802 = vrot.lane.b32.xlu0 %v1796, 64
        %v1803 = vpop.permute.xlu0 %1802
        %1804 = vrot.lane.b32.xlu0 %v1797, 64
        %v1805 = vpop.permute.xlu0 %1804
        %1806 = vrot.lane.b32.xlu0 %v1798, 64
        %v1807 = vpop.permute.xlu0 %1806
        %v1808 = vsel %vm1630, %v1803, %v1805
        %v1809 = vsel %vm1630, %v1805, %v1807
        %v1813 = vadd.f32 %v1789, %v1803
        %v1814 = vadd.f32 %v1790, %v1808
        %v1815 = vadd.f32 %v1791, %v1809
        %1816 = vset.pattern.permute.xlu0 36
        %1817 = vperm.xlu0 %1816, %v294
        %v1818 = vpop.permute.xlu0 %1817
        %v1820 = vmul.f32 %v1818, %v1529
        %v1821 = vmul.f32 %v1818, %v1530
        %v1822 = vmul.f32 %v1818, 0.0
        %1826 = vrot.lane.b32.xlu0 %v1820, 48
        %v1827 = vpop.permute.xlu0 %1826
        %1828 = vrot.lane.b32.xlu0 %v1821, 48
        %v1829 = vpop.permute.xlu0 %1828
        %1830 = vrot.lane.b32.xlu0 %v1822, 48
        %v1831 = vpop.permute.xlu0 %1830
        %v1832 = vsel %vm1655, %v1827, %v1829
        %v1833 = vsel %vm1655, %v1829, %v1831
        %v1837 = vadd.f32 %v1813, %v1827
        %v1838 = vadd.f32 %v1814, %v1832
        %v1839 = vadd.f32 %v1815, %v1833
        %1840 = vset.pattern.permute.xlu0 43
        %1841 = vperm.xlu0 %1840, %v294
        %v1842 = vpop.permute.xlu0 %1841
        %v1844 = vmul.f32 %v1842, %v1529
        %v1845 = vmul.f32 %v1842, %v1530
        %v1846 = vmul.f32 %v1842, 0.0
        %1850 = vrot.lane.b32.xlu0 %v1844, 32
        %v1851 = vpop.permute.xlu0 %1850
        %1852 = vrot.lane.b32.xlu0 %v1845, 32
        %v1853 = vpop.permute.xlu0 %1852
        %1854 = vrot.lane.b32.xlu0 %v1846, 32
        %v1855 = vpop.permute.xlu0 %1854
        %v1856 = vsel %vm336, %v1851, %v1853
        %v1857 = vsel %vm336, %v1853, %v1855
        %v1861 = vadd.f32 %v1837, %v1851
        %v1862 = vadd.f32 %v1838, %v1856
        %v1863 = vadd.f32 %v1839, %v1857
        %s1864 = scalar_lea.vmem %s4, 1
        %v1865 = vld [vmem:[%s1864] ss:$8 sm:$0x3]
        %v1867 = vlaneseq
        %v1868 = vshrl.u32 %v1867, 7
        %v1869 = vsub.s32 0, %v1868
        %v1870 = vrot.slane %v1865, %v1869
        %v1871 = vlaneseq
        %v1872 = vshrl.u32 %v1871, 7
        %v1873 = vsub.s32 1, %v1872
        %v1874 = vrot.slane %v1865, %v1873
        %1875 = vrot.lane.b32.xlu0 %v1870, 78
        %v1876 = vpop.permute.xlu0 %1875
        %1877 = vrot.lane.b32.xlu0 %v1874, 78
        %v1878 = vpop.permute.xlu0 %1877
        %vm1879 = vcmask 637952
        %v1880 = vsel %vm1879, %v1876, %v1878
        %v1884 = vmul.f32 %v1861, %v1876
        %v1885 = vmul.f32 %v1862, %v1880
        %v1886 = vmul.f32 %v1863, %v1878
        %v1887 = vadd.f32 %v1884, 0.0
        %v1888 = vadd.f32 %v1885, 0.0
        %v1889 = vadd.f32 %v1886, 0.0
        %1890 = vset.pattern.permute.xlu0 2
        %1891 = vperm.xlu0 %1890, %v294
        %v1892 = vpop.permute.xlu0 %1891
        %v1894 = vmul.f32 %v1892, 0.0
        %v1895 = vmul.f32 %v1892, %v1529
        %v1896 = vmul.f32 %v1892, %v1530
        %1897 = vset.pattern.permute.xlu0 9
        %1898 = vperm.xlu0 %1897, %v294
        %v1899 = vpop.permute.xlu0 %1898
        %v1901 = vmul.f32 %v1899, 0.0
        %v1902 = vmul.f32 %v1899, %v1529
        %v1903 = vmul.f32 %v1899, %v1530
        %1907 = vrot.lane.b32.xlu0 %v1901, 112
        %v1908 = vpop.permute.xlu0 %1907
        %1909 = vrot.lane.b32.xlu0 %v1902, 112
        %v1910 = vpop.permute.xlu0 %1909
        %1911 = vrot.lane.b32.xlu0 %v1903, 112
        %v1912 = vpop.permute.xlu0 %1911
        %v1913 = vsel %vm1555, %v1908, %v1910
        %v1914 = vsel %vm1555, %v1910, %v1912
        %v1918 = vadd.f32 %v1894, %v1913
        %v1919 = vadd.f32 %v1895, %v1914
        %v1920 = vadd.f32 %v1896, %v1912
        %1921 = vset.pattern.permute.xlu0 16
        %1922 = vperm.xlu0 %1921, %v294
        %v1923 = vpop.permute.xlu0 %1922
        %v1925 = vmul.f32 %v1923, 0.0
        %v1926 = vmul.f32 %v1923, %v1529
        %v1927 = vmul.f32 %v1923, %v1530
        %1931 = vrot.lane.b32.xlu0 %v1925, 96
        %v1932 = vpop.permute.xlu0 %1931
        %1933 = vrot.lane.b32.xlu0 %v1926, 96
        %v1934 = vpop.permute.xlu0 %1933
        %1935 = vrot.lane.b32.xlu0 %v1927, 96
        %v1936 = vpop.permute.xlu0 %1935
        %v1937 = vsel %vm1580, %v1932, %v1934
        %v1938 = vsel %vm1580, %v1934, %v1936
        %v1942 = vadd.f32 %v1918, %v1937
        %v1943 = vadd.f32 %v1919, %v1938
        %v1944 = vadd.f32 %v1920, %v1936
        %1945 = vset.pattern.permute.xlu0 23
        %1946 = vperm.xlu0 %1945, %v294
        %v1947 = vpop.permute.xlu0 %1946
        %v1949 = vmul.f32 %v1947, 0.0
        %v1950 = vmul.f32 %v1947, %v1529
        %v1951 = vmul.f32 %v1947, %v1530
        %1955 = vrot.lane.b32.xlu0 %v1949, 80
        %v1956 = vpop.permute.xlu0 %1955
        %1957 = vrot.lane.b32.xlu0 %v1950, 80
        %v1958 = vpop.permute.xlu0 %1957
        %1959 = vrot.lane.b32.xlu0 %v1951, 80
        %v1960 = vpop.permute.xlu0 %1959
        %v1961 = vsel %vm1605, %v1956, %v1958
        %v1962 = vsel %vm1605, %v1958, %v1960
        %v1966 = vadd.f32 %v1942, %v1961
        %v1967 = vadd.f32 %v1943, %v1962
        %v1968 = vadd.f32 %v1944, %v1960
        %1969 = vset.pattern.permute.xlu0 30
        %1970 = vperm.xlu0 %1969, %v294
        %v1971 = vpop.permute.xlu0 %1970
        %v1973 = vmul.f32 %v1971, %v1529
        %v1974 = vmul.f32 %v1971, %v1530
        %v1975 = vmul.f32 %v1971, 0.0
        %1979 = vrot.lane.b32.xlu0 %v1973, 64
        %v1980 = vpop.permute.xlu0 %1979
        %1981 = vrot.lane.b32.xlu0 %v1974, 64
        %v1982 = vpop.permute.xlu0 %1981
        %1983 = vrot.lane.b32.xlu0 %v1975, 64
        %v1984 = vpop.permute.xlu0 %1983
        %v1985 = vsel %vm1630, %v1980, %v1982
        %v1986 = vsel %vm1630, %v1982, %v1984
        %v1990 = vadd.f32 %v1966, %v1980
        %v1991 = vadd.f32 %v1967, %v1985
        %v1992 = vadd.f32 %v1968, %v1986
        %1993 = vset.pattern.permute.xlu0 37
        %1994 = vperm.xlu0 %1993, %v294
        %v1995 = vpop.permute.xlu0 %1994
        %v1997 = vmul.f32 %v1995, %v1529
        %v1998 = vmul.f32 %v1995, %v1530
        %v1999 = vmul.f32 %v1995, 0.0
        %2003 = vrot.lane.b32.xlu0 %v1997, 48
        %v2004 = vpop.permute.xlu0 %2003
        %2005 = vrot.lane.b32.xlu0 %v1998, 48
        %v2006 = vpop.permute.xlu0 %2005
        %2007 = vrot.lane.b32.xlu0 %v1999, 48
        %v2008 = vpop.permute.xlu0 %2007
        %v2009 = vsel %vm1655, %v2004, %v2006
        %v2010 = vsel %vm1655, %v2006, %v2008
        %v2014 = vadd.f32 %v1990, %v2004
        %v2015 = vadd.f32 %v1991, %v2009
        %v2016 = vadd.f32 %v1992, %v2010
        %2017 = vset.pattern.permute.xlu0 44
        %2018 = vperm.xlu0 %2017, %v294
        %v2019 = vpop.permute.xlu0 %2018
        %v2021 = vmul.f32 %v2019, %v1529
        %v2022 = vmul.f32 %v2019, %v1530
        %v2023 = vmul.f32 %v2019, 0.0
        %2027 = vrot.lane.b32.xlu0 %v2021, 32
        %v2028 = vpop.permute.xlu0 %2027
        %2029 = vrot.lane.b32.xlu0 %v2022, 32
        %v2030 = vpop.permute.xlu0 %2029
        %2031 = vrot.lane.b32.xlu0 %v2023, 32
        %v2032 = vpop.permute.xlu0 %2031
        %v2033 = vsel %vm336, %v2028, %v2030
        %v2034 = vsel %vm336, %v2030, %v2032
        %v2038 = vadd.f32 %v2014, %v2028
        %v2039 = vadd.f32 %v2015, %v2033
        %v2040 = vadd.f32 %v2016, %v2034
        %s2041 = scalar_lea.vmem %s4, 2
        %v2042 = vld [vmem:[%s2041] ss:$8 sm:$0x3]
        %v2044 = vlaneseq
        %v2045 = vshrl.u32 %v2044, 7
        %v2046 = vsub.s32 0, %v2045
        %v2047 = vrot.slane %v2042, %v2046
        %v2048 = vlaneseq
        %v2049 = vshrl.u32 %v2048, 7
        %v2050 = vsub.s32 1, %v2049
        %v2051 = vrot.slane %v2042, %v2050
        %2052 = vrot.lane.b32.xlu0 %v2047, 79
        %v2053 = vpop.permute.xlu0 %2052
        %2054 = vrot.lane.b32.xlu0 %v2051, 79
        %v2055 = vpop.permute.xlu0 %2054
        %vm2056 = vcmask 646144
        %v2057 = vsel %vm2056, %v2053, %v2055
        %v2061 = vmul.f32 %v2038, %v2053
        %v2062 = vmul.f32 %v2039, %v2057
        %v2063 = vmul.f32 %v2040, %v2055
        %2067 = vrot.lane.b32.xlu0 %v2061, 126
        %v2068 = vpop.permute.xlu0 %2067
        %2069 = vrot.lane.b32.xlu0 %v2062, 126
        %v2070 = vpop.permute.xlu0 %2069
        %2071 = vrot.lane.b32.xlu0 %v2063, 126
        %v2072 = vpop.permute.xlu0 %2071
        %vm2073 = vcmask 1031168
        %v2074 = vsel %vm2073, %v2068, %v2070
        %v2075 = vsel %vm2073, %v2070, %v2072
        %v2079 = vadd.f32 %v1710, %v2074
        %v2080 = vadd.f32 %v1711, %v2075
        %v2081 = vadd.f32 %v1712, %v2072
        %2082 = vset.pattern.permute.xlu0 3
        %2083 = vperm.xlu0 %2082, %v294
        %v2084 = vpop.permute.xlu0 %2083
        %v2086 = vmul.f32 %v2084, 0.0
        %v2087 = vmul.f32 %v2084, %v1529
        %v2088 = vmul.f32 %v2084, %v1530
        %2089 = vset.pattern.permute.xlu0 10
        %2090 = vperm.xlu0 %2089, %v294
        %v2091 = vpop.permute.xlu0 %2090
        %v2093 = vmul.f32 %v2091, 0.0
        %v2094 = vmul.f32 %v2091, %v1529
        %v2095 = vmul.f32 %v2091, %v1530
        %2099 = vrot.lane.b32.xlu0 %v2093, 112
        %v2100 = vpop.permute.xlu0 %2099
        %2101 = vrot.lane.b32.xlu0 %v2094, 112
        %v2102 = vpop.permute.xlu0 %2101
        %2103 = vrot.lane.b32.xlu0 %v2095, 112
        %v2104 = vpop.permute.xlu0 %2103
        %v2105 = vsel %vm1555, %v2100, %v2102
        %v2106 = vsel %vm1555, %v2102, %v2104
        %v2110 = vadd.f32 %v2086, %v2105
        %v2111 = vadd.f32 %v2087, %v2106
        %v2112 = vadd.f32 %v2088, %v2104
        %2113 = vset.pattern.permute.xlu0 17
        %2114 = vperm.xlu0 %2113, %v294
        %v2115 = vpop.permute.xlu0 %2114
        %v2117 = vmul.f32 %v2115, 0.0
        %v2118 = vmul.f32 %v2115, %v1529
        %v2119 = vmul.f32 %v2115, %v1530
        %2123 = vrot.lane.b32.xlu0 %v2117, 96
        %v2124 = vpop.permute.xlu0 %2123
        %2125 = vrot.lane.b32.xlu0 %v2118, 96
        %v2126 = vpop.permute.xlu0 %2125
        %2127 = vrot.lane.b32.xlu0 %v2119, 96
        %v2128 = vpop.permute.xlu0 %2127
        %v2129 = vsel %vm1580, %v2124, %v2126
        %v2130 = vsel %vm1580, %v2126, %v2128
        %v2134 = vadd.f32 %v2110, %v2129
        %v2135 = vadd.f32 %v2111, %v2130
        %v2136 = vadd.f32 %v2112, %v2128
        %2137 = vset.pattern.permute.xlu0 24
        %2138 = vperm.xlu0 %2137, %v294
        %v2139 = vpop.permute.xlu0 %2138
        %v2141 = vmul.f32 %v2139, %v1529
        %v2142 = vmul.f32 %v2139, %v1530
        %2145 = vrot.lane.b32.xlu0 %v2141, 80
        %v2146 = vpop.permute.xlu0 %2145
        %2147 = vrot.lane.b32.xlu0 %v2142, 80
        %v2148 = vpop.permute.xlu0 %2147
        %v2149 = vsel %vm1605, %v2146, %v2148
        %v2153 = vadd.f32 %v2134, %v2146
        %v2154 = vadd.f32 %v2135, %v2149
        %v2155 = vadd.f32 %v2136, %v2148
        %2156 = vset.pattern.permute.xlu0 31
        %2157 = vperm.xlu0 %2156, %v294
        %v2158 = vpop.permute.xlu0 %2157
        %v2160 = vmul.f32 %v2158, %v1529
        %v2161 = vmul.f32 %v2158, %v1530
        %v2162 = vmul.f32 %v2158, 0.0
        %2166 = vrot.lane.b32.xlu0 %v2160, 64
        %v2167 = vpop.permute.xlu0 %2166
        %2168 = vrot.lane.b32.xlu0 %v2161, 64
        %v2169 = vpop.permute.xlu0 %2168
        %2170 = vrot.lane.b32.xlu0 %v2162, 64
        %v2171 = vpop.permute.xlu0 %2170
        %v2172 = vsel %vm1630, %v2167, %v2169
        %v2173 = vsel %vm1630, %v2169, %v2171
        %v2177 = vadd.f32 %v2153, %v2167
        %v2178 = vadd.f32 %v2154, %v2172
        %v2179 = vadd.f32 %v2155, %v2173
        %2180 = vset.pattern.permute.xlu0 38
        %2181 = vperm.xlu0 %2180, %v294
        %v2182 = vpop.permute.xlu0 %2181
        %v2184 = vmul.f32 %v2182, %v1529
        %v2185 = vmul.f32 %v2182, %v1530
        %v2186 = vmul.f32 %v2182, 0.0
        %2190 = vrot.lane.b32.xlu0 %v2184, 48
        %v2191 = vpop.permute.xlu0 %2190
        %2192 = vrot.lane.b32.xlu0 %v2185, 48
        %v2193 = vpop.permute.xlu0 %2192
        %2194 = vrot.lane.b32.xlu0 %v2186, 48
        %v2195 = vpop.permute.xlu0 %2194
        %v2196 = vsel %vm1655, %v2191, %v2193
        %v2197 = vsel %vm1655, %v2193, %v2195
        %v2201 = vadd.f32 %v2177, %v2191
        %v2202 = vadd.f32 %v2178, %v2196
        %v2203 = vadd.f32 %v2179, %v2197
        %2204 = vset.pattern.permute.xlu0 45
        %2205 = vperm.xlu0 %2204, %v294
        %v2206 = vpop.permute.xlu0 %2205
        %v2208 = vmul.f32 %v2206, %v1529
        %v2209 = vmul.f32 %v2206, %v1530
        %v2210 = vmul.f32 %v2206, 0.0
        %2214 = vrot.lane.b32.xlu0 %v2208, 32
        %v2215 = vpop.permute.xlu0 %2214
        %2216 = vrot.lane.b32.xlu0 %v2209, 32
        %v2217 = vpop.permute.xlu0 %2216
        %2218 = vrot.lane.b32.xlu0 %v2210, 32
        %v2219 = vpop.permute.xlu0 %2218
        %v2220 = vsel %vm336, %v2215, %v2217
        %v2221 = vsel %vm336, %v2217, %v2219
        %v2225 = vadd.f32 %v2201, %v2215
        %v2226 = vadd.f32 %v2202, %v2220
        %v2227 = vadd.f32 %v2203, %v2221
        %2231 = vrot.lane.b32.xlu0 %v2225, 126
        %v2232 = vpop.permute.xlu0 %2231
        %2233 = vrot.lane.b32.xlu0 %v2226, 126
        %v2234 = vpop.permute.xlu0 %2233
        %2235 = vrot.lane.b32.xlu0 %v2227, 126
        %v2236 = vpop.permute.xlu0 %2235
        %v2237 = vsel %vm2073, %v2232, %v2234
        %v2238 = vsel %vm2073, %v2234, %v2236
        %v2242 = vadd.f32 %v1887, %v2237
        %v2243 = vadd.f32 %v1888, %v2238
        %v2244 = vadd.f32 %v1889, %v2236
        %2245 = vset.pattern.permute.xlu0 4
        %2246 = vperm.xlu0 %2245, %v294
        %v2247 = vpop.permute.xlu0 %2246
        %v2249 = vmul.f32 %v2247, 0.0
        %v2250 = vmul.f32 %v2247, %v1529
        %v2251 = vmul.f32 %v2247, %v1530
        %2252 = vset.pattern.permute.xlu0 11
        %2253 = vperm.xlu0 %2252, %v294
        %v2254 = vpop.permute.xlu0 %2253
        %v2256 = vmul.f32 %v2254, 0.0
        %v2257 = vmul.f32 %v2254, %v1529
        %v2258 = vmul.f32 %v2254, %v1530
        %2262 = vrot.lane.b32.xlu0 %v2256, 112
        %v2263 = vpop.permute.xlu0 %2262
        %2264 = vrot.lane.b32.xlu0 %v2257, 112
        %v2265 = vpop.permute.xlu0 %2264
        %2266 = vrot.lane.b32.xlu0 %v2258, 112
        %v2267 = vpop.permute.xlu0 %2266
        %v2268 = vsel %vm1555, %v2263, %v2265
        %v2269 = vsel %vm1555, %v2265, %v2267
        %v2273 = vadd.f32 %v2249, %v2268
        %v2274 = vadd.f32 %v2250, %v2269
        %v2275 = vadd.f32 %v2251, %v2267
        %2276 = vset.pattern.permute.xlu0 18
        %2277 = vperm.xlu0 %2276, %v294
        %v2278 = vpop.permute.xlu0 %2277
        %v2280 = vmul.f32 %v2278, 0.0
        %v2281 = vmul.f32 %v2278, %v1529
        %v2282 = vmul.f32 %v2278, %v1530
        %2286 = vrot.lane.b32.xlu0 %v2280, 96
        %v2287 = vpop.permute.xlu0 %2286
        %2288 = vrot.lane.b32.xlu0 %v2281, 96
        %v2289 = vpop.permute.xlu0 %2288
        %2290 = vrot.lane.b32.xlu0 %v2282, 96
        %v2291 = vpop.permute.xlu0 %2290
        %v2292 = vsel %vm1580, %v2287, %v2289
        %v2293 = vsel %vm1580, %v2289, %v2291
        %v2297 = vadd.f32 %v2273, %v2292
        %v2298 = vadd.f32 %v2274, %v2293
        %v2299 = vadd.f32 %v2275, %v2291
        %2300 = vset.pattern.permute.xlu0 25
        %2301 = vperm.xlu0 %2300, %v294
        %v2302 = vpop.permute.xlu0 %2301
        %v2304 = vmul.f32 %v2302, %v1529
        %v2305 = vmul.f32 %v2302, %v1530
        %v2306 = vmul.f32 %v2302, 0.0
        %2310 = vrot.lane.b32.xlu0 %v2304, 80
        %v2311 = vpop.permute.xlu0 %2310
        %2312 = vrot.lane.b32.xlu0 %v2305, 80
        %v2313 = vpop.permute.xlu0 %2312
        %2314 = vrot.lane.b32.xlu0 %v2306, 80
        %v2315 = vpop.permute.xlu0 %2314
        %v2316 = vsel %vm1605, %v2311, %v2313
        %v2317 = vsel %vm1605, %v2313, %v2315
        %v2321 = vadd.f32 %v2297, %v2311
        %v2322 = vadd.f32 %v2298, %v2316
        %v2323 = vadd.f32 %v2299, %v2317
        %2324 = vset.pattern.permute.xlu0 32
        %2325 = vperm.xlu0 %2324, %v294
        %v2326 = vpop.permute.xlu0 %2325
        %v2328 = vmul.f32 %v2326, %v1529
        %v2329 = vmul.f32 %v2326, %v1530
        %v2330 = vmul.f32 %v2326, 0.0
        %2334 = vrot.lane.b32.xlu0 %v2328, 64
        %v2335 = vpop.permute.xlu0 %2334
        %2336 = vrot.lane.b32.xlu0 %v2329, 64
        %v2337 = vpop.permute.xlu0 %2336
        %2338 = vrot.lane.b32.xlu0 %v2330, 64
        %v2339 = vpop.permute.xlu0 %2338
        %v2340 = vsel %vm1630, %v2335, %v2337
        %v2341 = vsel %vm1630, %v2337, %v2339
        %v2345 = vadd.f32 %v2321, %v2335
        %v2346 = vadd.f32 %v2322, %v2340
        %v2347 = vadd.f32 %v2323, %v2341
        %2348 = vset.pattern.permute.xlu0 39
        %2349 = vperm.xlu0 %2348, %v294
        %v2350 = vpop.permute.xlu0 %2349
        %v2352 = vmul.f32 %v2350, %v1529
        %v2353 = vmul.f32 %v2350, %v1530
        %v2354 = vmul.f32 %v2350, 0.0
        %2358 = vrot.lane.b32.xlu0 %v2352, 48
        %v2359 = vpop.permute.xlu0 %2358
        %2360 = vrot.lane.b32.xlu0 %v2353, 48
        %v2361 = vpop.permute.xlu0 %2360
        %2362 = vrot.lane.b32.xlu0 %v2354, 48
        %v2363 = vpop.permute.xlu0 %2362
        %v2364 = vsel %vm1655, %v2359, %v2361
        %v2365 = vsel %vm1655, %v2361, %v2363
        %v2369 = vadd.f32 %v2345, %v2359
        %v2370 = vadd.f32 %v2346, %v2364
        %v2371 = vadd.f32 %v2347, %v2365
        %2372 = vset.pattern.permute.xlu0 46
        %2373 = vperm.xlu0 %2372, %v294
        %v2374 = vpop.permute.xlu0 %2373
        %v2376 = vmul.f32 %v2374, %v1529
        %v2377 = vmul.f32 %v2374, %v1530
        %v2378 = vmul.f32 %v2374, 0.0
        %2382 = vrot.lane.b32.xlu0 %v2376, 32
        %v2383 = vpop.permute.xlu0 %2382
        %2384 = vrot.lane.b32.xlu0 %v2377, 32
        %v2385 = vpop.permute.xlu0 %2384
        %2386 = vrot.lane.b32.xlu0 %v2378, 32
        %v2387 = vpop.permute.xlu0 %2386
        %v2388 = vsel %vm336, %v2383, %v2385
        %v2389 = vsel %vm336, %v2385, %v2387
        %v2393 = vadd.f32 %v2369, %v2383
        %v2394 = vadd.f32 %v2370, %v2388
        %v2395 = vadd.f32 %v2371, %v2389
        %s2396 = scalar_lea.vmem %s4, 4
        %v2397 = vld [vmem:[%s2396] ss:$8 sm:$0x3]
        %v2399 = vlaneseq
        %v2400 = vshrl.u32 %v2399, 7
        %v2401 = vsub.s32 0, %v2400
        %v2402 = vrot.slane %v2397, %v2401
        %v2403 = vlaneseq
        %v2404 = vshrl.u32 %v2403, 7
        %v2405 = vsub.s32 1, %v2404
        %v2406 = vrot.slane %v2397, %v2405
        %2407 = vrot.lane.b32.xlu0 %v2402, 81
        %v2408 = vpop.permute.xlu0 %2407
        %2409 = vrot.lane.b32.xlu0 %v2406, 81
        %v2410 = vpop.permute.xlu0 %2409
        %vm2411 = vcmask 662528
        %v2412 = vsel %vm2411, %v2408, %v2410
        %v2416 = vmul.f32 %v2393, %v2408
        %v2417 = vmul.f32 %v2394, %v2412
        %v2418 = vmul.f32 %v2395, %v2410
        %2422 = vrot.lane.b32.xlu0 %v2416, 124
        %v2423 = vpop.permute.xlu0 %2422
        %2424 = vrot.lane.b32.xlu0 %v2417, 124
        %v2425 = vpop.permute.xlu0 %2424
        %2426 = vrot.lane.b32.xlu0 %v2418, 124
        %v2427 = vpop.permute.xlu0 %2426
        %vm2428 = vcmask 1014784
        %v2429 = vsel %vm2428, %v2423, %v2425
        %v2430 = vsel %vm2428, %v2425, %v2427
        %v2434 = vadd.f32 %v2079, %v2429
        %v2435 = vadd.f32 %v2080, %v2430
        %v2436 = vadd.f32 %v2081, %v2427
        %2437 = vset.pattern.permute.xlu0 5
        %2438 = vperm.xlu0 %2437, %v294
        %v2439 = vpop.permute.xlu0 %2438
        %v2441 = vmul.f32 %v2439, 0.0
        %v2442 = vmul.f32 %v2439, %v1529
        %v2443 = vmul.f32 %v2439, %v1530
        %2444 = vset.pattern.permute.xlu0 12
        %2445 = vperm.xlu0 %2444, %v294
        %v2446 = vpop.permute.xlu0 %2445
        %v2448 = vmul.f32 %v2446, 0.0
        %v2449 = vmul.f32 %v2446, %v1529
        %v2450 = vmul.f32 %v2446, %v1530
        %2454 = vrot.lane.b32.xlu0 %v2448, 112
        %v2455 = vpop.permute.xlu0 %2454
        %2456 = vrot.lane.b32.xlu0 %v2449, 112
        %v2457 = vpop.permute.xlu0 %2456
        %2458 = vrot.lane.b32.xlu0 %v2450, 112
        %v2459 = vpop.permute.xlu0 %2458
        %v2460 = vsel %vm1555, %v2455, %v2457
        %v2461 = vsel %vm1555, %v2457, %v2459
        %v2465 = vadd.f32 %v2441, %v2460
        %v2466 = vadd.f32 %v2442, %v2461
        %v2467 = vadd.f32 %v2443, %v2459
        %2468 = vset.pattern.permute.xlu0 19
        %2469 = vperm.xlu0 %2468, %v294
        %v2470 = vpop.permute.xlu0 %2469
        %v2472 = vmul.f32 %v2470, 0.0
        %v2473 = vmul.f32 %v2470, %v1529
        %v2474 = vmul.f32 %v2470, %v1530
        %2478 = vrot.lane.b32.xlu0 %v2472, 96
        %v2479 = vpop.permute.xlu0 %2478
        %2480 = vrot.lane.b32.xlu0 %v2473, 96
        %v2481 = vpop.permute.xlu0 %2480
        %2482 = vrot.lane.b32.xlu0 %v2474, 96
        %v2483 = vpop.permute.xlu0 %2482
        %v2484 = vsel %vm1580, %v2479, %v2481
        %v2485 = vsel %vm1580, %v2481, %v2483
        %v2489 = vadd.f32 %v2465, %v2484
        %v2490 = vadd.f32 %v2466, %v2485
        %v2491 = vadd.f32 %v2467, %v2483
        %2492 = vset.pattern.permute.xlu0 26
        %2493 = vperm.xlu0 %2492, %v294
        %v2494 = vpop.permute.xlu0 %2493
        %v2496 = vmul.f32 %v2494, %v1529
        %v2497 = vmul.f32 %v2494, %v1530
        %v2498 = vmul.f32 %v2494, 0.0
        %2502 = vrot.lane.b32.xlu0 %v2496, 80
        %v2503 = vpop.permute.xlu0 %2502
        %2504 = vrot.lane.b32.xlu0 %v2497, 80
        %v2505 = vpop.permute.xlu0 %2504
        %2506 = vrot.lane.b32.xlu0 %v2498, 80
        %v2507 = vpop.permute.xlu0 %2506
        %v2508 = vsel %vm1605, %v2503, %v2505
        %v2509 = vsel %vm1605, %v2505, %v2507
        %v2513 = vadd.f32 %v2489, %v2503
        %v2514 = vadd.f32 %v2490, %v2508
        %v2515 = vadd.f32 %v2491, %v2509
        %2516 = vset.pattern.permute.xlu0 33
        %2517 = vperm.xlu0 %2516, %v294
        %v2518 = vpop.permute.xlu0 %2517
        %v2520 = vmul.f32 %v2518, %v1529
        %v2521 = vmul.f32 %v2518, %v1530
        %v2522 = vmul.f32 %v2518, 0.0
        %2526 = vrot.lane.b32.xlu0 %v2520, 64
        %v2527 = vpop.permute.xlu0 %2526
        %2528 = vrot.lane.b32.xlu0 %v2521, 64
        %v2529 = vpop.permute.xlu0 %2528
        %2530 = vrot.lane.b32.xlu0 %v2522, 64
        %v2531 = vpop.permute.xlu0 %2530
        %v2532 = vsel %vm1630, %v2527, %v2529
        %v2533 = vsel %vm1630, %v2529, %v2531
        %v2537 = vadd.f32 %v2513, %v2527
        %v2538 = vadd.f32 %v2514, %v2532
        %v2539 = vadd.f32 %v2515, %v2533
        %2540 = vset.pattern.permute.xlu0 40
        %2541 = vperm.xlu0 %2540, %v294
        %v2542 = vpop.permute.xlu0 %2541
        %v2544 = vmul.f32 %v2542, %v1529
        %v2545 = vmul.f32 %v2542, %v1530
        %v2546 = vmul.f32 %v2542, 0.0
        %2550 = vrot.lane.b32.xlu0 %v2544, 48
        %v2551 = vpop.permute.xlu0 %2550
        %2552 = vrot.lane.b32.xlu0 %v2545, 48
        %v2553 = vpop.permute.xlu0 %2552
        %2554 = vrot.lane.b32.xlu0 %v2546, 48
        %v2555 = vpop.permute.xlu0 %2554
        %v2556 = vsel %vm1655, %v2551, %v2553
        %v2557 = vsel %vm1655, %v2553, %v2555
        %v2561 = vadd.f32 %v2537, %v2551
        %v2562 = vadd.f32 %v2538, %v2556
        %v2563 = vadd.f32 %v2539, %v2557
        %2564 = vset.pattern.permute.xlu0 47
        %2565 = vperm.xlu0 %2564, %v294
        %v2566 = vpop.permute.xlu0 %2565
        %v2568 = vmul.f32 %v2566, %v1529
        %v2569 = vmul.f32 %v2566, %v1530
        %v2570 = vmul.f32 %v2566, 0.0
        %2574 = vrot.lane.b32.xlu0 %v2568, 32
        %v2575 = vpop.permute.xlu0 %2574
        %2576 = vrot.lane.b32.xlu0 %v2569, 32
        %v2577 = vpop.permute.xlu0 %2576
        %2578 = vrot.lane.b32.xlu0 %v2570, 32
        %v2579 = vpop.permute.xlu0 %2578
        %v2580 = vsel %vm336, %v2575, %v2577
        %v2581 = vsel %vm336, %v2577, %v2579
        %v2585 = vadd.f32 %v2561, %v2575
        %v2586 = vadd.f32 %v2562, %v2580
        %v2587 = vadd.f32 %v2563, %v2581
        %s2588 = scalar_lea.vmem %s4, 5
        %v2589 = vld [vmem:[%s2588] ss:$8 sm:$0x3]
        %v2591 = vlaneseq
        %v2592 = vshrl.u32 %v2591, 7
        %v2593 = vsub.s32 0, %v2592
        %v2594 = vrot.slane %v2589, %v2593
        %v2595 = vlaneseq
        %v2596 = vshrl.u32 %v2595, 7
        %v2597 = vsub.s32 1, %v2596
        %v2598 = vrot.slane %v2589, %v2597
        %2599 = vrot.lane.b32.xlu0 %v2594, 82
        %v2600 = vpop.permute.xlu0 %2599
        %2601 = vrot.lane.b32.xlu0 %v2598, 82
        %v2602 = vpop.permute.xlu0 %2601
        %vm2603 = vcmask 670720
        %v2604 = vsel %vm2603, %v2600, %v2602
        %v2608 = vmul.f32 %v2585, %v2600
        %v2609 = vmul.f32 %v2586, %v2604
        %v2610 = vmul.f32 %v2587, %v2602
        %2614 = vrot.lane.b32.xlu0 %v2608, 124
        %v2615 = vpop.permute.xlu0 %2614
        %2616 = vrot.lane.b32.xlu0 %v2609, 124
        %v2617 = vpop.permute.xlu0 %2616
        %2618 = vrot.lane.b32.xlu0 %v2610, 124
        %v2619 = vpop.permute.xlu0 %2618
        %v2620 = vsel %vm2428, %v2615, %v2617
        %v2621 = vsel %vm2428, %v2617, %v2619
        %v2625 = vadd.f32 %v2242, %v2620
        %v2626 = vadd.f32 %v2243, %v2621
        %v2627 = vadd.f32 %v2244, %v2619
        %2628 = vset.pattern.permute.xlu0 6
        %2629 = vperm.xlu0 %2628, %v294
        %v2630 = vpop.permute.xlu0 %2629
        %v2632 = vmul.f32 %v2630, 0.0
        %v2633 = vmul.f32 %v2630, %v1529
        %v2634 = vmul.f32 %v2630, %v1530
        %2635 = vset.pattern.permute.xlu0 13
        %2636 = vperm.xlu0 %2635, %v294
        %v2637 = vpop.permute.xlu0 %2636
        %v2639 = vmul.f32 %v2637, 0.0
        %v2640 = vmul.f32 %v2637, %v1529
        %v2641 = vmul.f32 %v2637, %v1530
        %2645 = vrot.lane.b32.xlu0 %v2639, 112
        %v2646 = vpop.permute.xlu0 %2645
        %2647 = vrot.lane.b32.xlu0 %v2640, 112
        %v2648 = vpop.permute.xlu0 %2647
        %2649 = vrot.lane.b32.xlu0 %v2641, 112
        %v2650 = vpop.permute.xlu0 %2649
        %v2651 = vsel %vm1555, %v2646, %v2648
        %v2652 = vsel %vm1555, %v2648, %v2650
        %v2656 = vadd.f32 %v2632, %v2651
        %v2657 = vadd.f32 %v2633, %v2652
        %v2658 = vadd.f32 %v2634, %v2650
        %2659 = vset.pattern.permute.xlu0 20
        %2660 = vperm.xlu0 %2659, %v294
        %v2661 = vpop.permute.xlu0 %2660
        %v2663 = vmul.f32 %v2661, 0.0
        %v2664 = vmul.f32 %v2661, %v1529
        %v2665 = vmul.f32 %v2661, %v1530
        %2669 = vrot.lane.b32.xlu0 %v2663, 96
        %v2670 = vpop.permute.xlu0 %2669
        %2671 = vrot.lane.b32.xlu0 %v2664, 96
        %v2672 = vpop.permute.xlu0 %2671
        %2673 = vrot.lane.b32.xlu0 %v2665, 96
        %v2674 = vpop.permute.xlu0 %2673
        %v2675 = vsel %vm1580, %v2670, %v2672
        %v2676 = vsel %vm1580, %v2672, %v2674
        %v2680 = vadd.f32 %v2656, %v2675
        %v2681 = vadd.f32 %v2657, %v2676
        %v2682 = vadd.f32 %v2658, %v2674
        %2683 = vset.pattern.permute.xlu0 27
        %2684 = vperm.xlu0 %2683, %v294
        %v2685 = vpop.permute.xlu0 %2684
        %v2687 = vmul.f32 %v2685, %v1529
        %v2688 = vmul.f32 %v2685, %v1530
        %v2689 = vmul.f32 %v2685, 0.0
        %2693 = vrot.lane.b32.xlu0 %v2687, 80
        %v2694 = vpop.permute.xlu0 %2693
        %2695 = vrot.lane.b32.xlu0 %v2688, 80
        %v2696 = vpop.permute.xlu0 %2695
        %2697 = vrot.lane.b32.xlu0 %v2689, 80
        %v2698 = vpop.permute.xlu0 %2697
        %v2699 = vsel %vm1605, %v2694, %v2696
        %v2700 = vsel %vm1605, %v2696, %v2698
        %v2704 = vadd.f32 %v2680, %v2694
        %v2705 = vadd.f32 %v2681, %v2699
        %v2706 = vadd.f32 %v2682, %v2700
        %2707 = vset.pattern.permute.xlu0 34
        %2708 = vperm.xlu0 %2707, %v294
        %v2709 = vpop.permute.xlu0 %2708
        %v2711 = vmul.f32 %v2709, %v1529
        %v2712 = vmul.f32 %v2709, %v1530
        %v2713 = vmul.f32 %v2709, 0.0
        %2717 = vrot.lane.b32.xlu0 %v2711, 64
        %v2718 = vpop.permute.xlu0 %2717
        %2719 = vrot.lane.b32.xlu0 %v2712, 64
        %v2720 = vpop.permute.xlu0 %2719
        %2721 = vrot.lane.b32.xlu0 %v2713, 64
        %v2722 = vpop.permute.xlu0 %2721
        %v2723 = vsel %vm1630, %v2718, %v2720
        %v2724 = vsel %vm1630, %v2720, %v2722
        %v2728 = vadd.f32 %v2704, %v2718
        %v2729 = vadd.f32 %v2705, %v2723
        %v2730 = vadd.f32 %v2706, %v2724
        %2731 = vset.pattern.permute.xlu0 41
        %2732 = vperm.xlu0 %2731, %v294
        %v2733 = vpop.permute.xlu0 %2732
        %v2735 = vmul.f32 %v2733, %v1529
        %v2736 = vmul.f32 %v2733, %v1530
        %v2737 = vmul.f32 %v2733, 0.0
        %2741 = vrot.lane.b32.xlu0 %v2735, 48
        %v2742 = vpop.permute.xlu0 %2741
        %2743 = vrot.lane.b32.xlu0 %v2736, 48
        %v2744 = vpop.permute.xlu0 %2743
        %2745 = vrot.lane.b32.xlu0 %v2737, 48
        %v2746 = vpop.permute.xlu0 %2745
        %v2747 = vsel %vm1655, %v2742, %v2744
        %v2748 = vsel %vm1655, %v2744, %v2746
        %v2752 = vadd.f32 %v2728, %v2742
        %v2753 = vadd.f32 %v2729, %v2747
        %v2754 = vadd.f32 %v2730, %v2748
        %2755 = vset.pattern.permute.xlu0 48
        %2756 = vperm.xlu0 %2755, %v294
        %v2757 = vpop.permute.xlu0 %2756
        %v2759 = vmul.f32 %v2757, %v1529
        %v2760 = vmul.f32 %v2757, %v1530
        %v2761 = vmul.f32 %v2757, 0.0
        %2765 = vrot.lane.b32.xlu0 %v2759, 32
        %v2766 = vpop.permute.xlu0 %2765
        %2767 = vrot.lane.b32.xlu0 %v2760, 32
        %v2768 = vpop.permute.xlu0 %2767
        %2769 = vrot.lane.b32.xlu0 %v2761, 32
        %v2770 = vpop.permute.xlu0 %2769
        %v2771 = vsel %vm336, %v2766, %v2768
        %v2772 = vsel %vm336, %v2768, %v2770
        %v2776 = vadd.f32 %v2752, %v2766
        %v2777 = vadd.f32 %v2753, %v2771
        %v2778 = vadd.f32 %v2754, %v2772
        %s2779 = scalar_lea.vmem %s4, 6
        %v2780 = vld [vmem:[%s2779] ss:$8 sm:$0x3]
        %v2782 = vlaneseq
        %v2783 = vshrl.u32 %v2782, 7
        %v2784 = vsub.s32 0, %v2783
        %v2785 = vrot.slane %v2780, %v2784
        %v2786 = vlaneseq
        %v2787 = vshrl.u32 %v2786, 7
        %v2788 = vsub.s32 1, %v2787
        %v2789 = vrot.slane %v2780, %v2788
        %2790 = vrot.lane.b32.xlu0 %v2785, 83
        %v2791 = vpop.permute.xlu0 %2790
        %2792 = vrot.lane.b32.xlu0 %v2789, 83
        %v2793 = vpop.permute.xlu0 %2792
        %vm2794 = vcmask 678912
        %v2795 = vsel %vm2794, %v2791, %v2793
        %v2799 = vmul.f32 %v2776, %v2791
        %v2800 = vmul.f32 %v2777, %v2795
        %v2801 = vmul.f32 %v2778, %v2793
        %2805 = vrot.lane.b32.xlu0 %v2799, 122
        %v2806 = vpop.permute.xlu0 %2805
        %2807 = vrot.lane.b32.xlu0 %v2800, 122
        %v2808 = vpop.permute.xlu0 %2807
        %2809 = vrot.lane.b32.xlu0 %v2801, 122
        %v2810 = vpop.permute.xlu0 %2809
        %vm2811 = vcmask 998400
        %v2812 = vsel %vm2811, %v2806, %v2808
        %v2813 = vsel %vm2811, %v2808, %v2810
        %v2817 = vadd.f32 %v2434, %v2812
        %v2818 = vadd.f32 %v2435, %v2813
        %v2819 = vadd.f32 %v2436, %v2810
        %2823 = vrot.lane.b32.xlu0 %v2625, 127
        %v2824 = vpop.permute.xlu0 %2823
        %2825 = vrot.lane.b32.xlu0 %v2626, 127
        %v2826 = vpop.permute.xlu0 %2825
        %2827 = vrot.lane.b32.xlu0 %v2627, 127
        %v2828 = vpop.permute.xlu0 %2827
        %vm2829 = vcmask 1039360
        %v2830 = vsel %vm2829, %v2824, %v2826
        %v2831 = vsel %vm2829, %v2826, %v2828
        %v2835 = vadd.f32 %v2817, %v2830
        %v2836 = vadd.f32 %v2818, %v2831
        %v2837 = vadd.f32 %v2819, %v2828
        %v2841 = vrot.slane %v2835, 1
        %v2842 = vrot.slane %v2836, 1
        %v2843 = vrot.slane %v2837, 1
        %v2847 = vadd.f32 %v2835, %v2841
        %v2848 = vadd.f32 %v2836, %v2842
        %v2849 = vadd.f32 %v2837, %v2843
        %v2850 = vxor.u32 %v2847, 2147483648
        %v2851 = vxor.u32 %v2848, 2147483648
        %v2852 = vxor.u32 %v2849, 2147483648
        %v2853 = vmul.f32 %v2850, 1.442695
        %v2854 = vpow.pop %v2853
        %v2855 = vmul.f32 %v2851, 1.442695
        %v2856 = vpow.pop %v2855
        %v2857 = vmul.f32 %v2852, 1.442695
        %v2858 = vpow.pop %v2857
        %v2859 = vadd.f32 %v2854, 1.0
        %v2860 = vadd.f32 %v2856, 1.0
        %v2861 = vadd.f32 %v2858, 1.0
        %v2862 = vrcp.pop %v2859
        %v2863 = vmul.f32 1.0, %v2862
        %v2864 = vrcp.pop %v2860
        %v2865 = vmul.f32 1.0, %v2864
        %v2866 = vrcp.pop %v2861
        %v2867 = vmul.f32 1.0, %v2866
        %v2868 = vlaneseq
        %v2869 = vshrl.u32 %v2868, 7
        %v2870 = vsub.s32 0, %v2869
        %v2871 = vrot.slane %v2863, %v2870
        %v2872 = vlaneseq
        %v2873 = vshrl.u32 %v2872, 7
        %v2874 = vsub.s32 0, %v2873
        %v2875 = vrot.slane %v2865, %v2874
        %v2876 = vlaneseq
        %v2877 = vshrl.u32 %v2876, 7
        %v2878 = vsub.s32 0, %v2877
        %v2879 = vrot.slane %v2867, %v2878
        %2883 = vrot.lane.b32.xlu0 %v2871, 51
        %v2884 = vpop.permute.xlu0 %2883
        %2885 = vrot.lane.b32.xlu0 %v2875, 51
        %v2886 = vpop.permute.xlu0 %2885
        %2887 = vrot.lane.b32.xlu0 %v2879, 51
        %v2888 = vpop.permute.xlu0 %2887
        %vm2889 = vcmask 416768
        %v2890 = vsel %vm2889, %v2884, %v2886
        %v2891 = vsel %vm2889, %v2886, %v2888
        %v2894 = vmul.f32 %v1482, %v2890
        %v2895 = vmul.f32 %v1483, %v2891
        %v2896 = vmul.f32 %v1484, %v2890
        %v2897 = vmul.f32 %v1485, %v2891
        %v2898 = vmul.f32 %v1486, %v2890
        %v2899 = vmul.f32 %v1487, %v2891
        %v2900 = vmul.f32 %v1488, %v2890
        %v2901 = vmul.f32 %v1489, %v2891
        %2902 = vst [vmem:[%s271] sm:$0xff] %v2894
        %2903 = vst [vmem:[%s271 + $0x8] sm:$0xff] %v2895
        %2904 = vst [vmem:[%s271 + $0x10] sm:$0xff] %v2896
        %2905 = vst [vmem:[%s271 + $0x18] sm:$0xff] %v2897
        %2906 = vst [vmem:[%s271 + $0x20] sm:$0xff] %v2898
        %2907 = vst [vmem:[%s271 + $0x28] sm:$0xff] %v2899
        %2908 = vst [vmem:[%s271 + $0x30] sm:$0xff] %v2900
        %2909 = vst [vmem:[%s271 + $0x38] sm:$0xff] %v2901
        %v2910 = vadd.f32 %v2894, %v2895
        %2911 = vadd.xlane.f32.xlu0 %v2910
        %v2912 = vpop.xlane.xlu0 %2911
        %v2913 = vadd.f32 %v2896, %v2897
        %2914 = vadd.xlane.f32.xlu0 %v2913
        %v2915 = vpop.xlane.xlu0 %2914
        %v2916 = vadd.f32 %v2898, %v2899
        %2917 = vadd.xlane.f32.xlu0 %v2916
        %v2918 = vpop.xlane.xlu0 %2917
        %v2919 = vadd.f32 %v2900, %v2901
        %2920 = vadd.xlane.f32.xlu0 %v2919
        %v2921 = vpop.xlane.xlu0 %2920
        %v2922 = vmul.f32 %v2912, 0.00390625
        %v2923 = vmul.f32 %v2915, 0.00390625
        %v2924 = vmul.f32 %v2918, 0.00390625
        %v2925 = vmul.f32 %v2921, 0.00390625
        %2926 = vst.msk [vmem:[%s287] sm:$0xff] %vm331, %v2922
        %2927 = vst.msk [vmem:[%s287 + $0x8] sm:$0xff] %vm331, %v2923
        %2928 = vst.msk [vmem:[%s287 + $0x10] sm:$0xff] %vm331, %v2924
        %2929 = vst.msk [vmem:[%s287 + $0x18] sm:$0xff] %vm331, %v2925
        %s2930 = scalar_lea.vmem %s245, 64 [#allocation2]
        %v2931 = vld [vmem:[%s2930] sm:$0xff]
        %v2932 = vld [vmem:[%s2930 + $0x8] sm:$0xff]
        %v2933 = vld [vmem:[%s2930 + $0x10] sm:$0xff]
        %v2934 = vld [vmem:[%s2930 + $0x18] sm:$0xff]
        %v2935 = vld [vmem:[%s2930 + $0x20] sm:$0xff]
        %v2936 = vld [vmem:[%s2930 + $0x28] sm:$0xff]
        %v2937 = vld [vmem:[%s2930 + $0x30] sm:$0xff]
        %v2938 = vld [vmem:[%s2930 + $0x38] sm:$0xff]
        %v2939 = vadd.f32 %v2931, %v2932
        %2940 = vadd.xlane.f32.xlu0 %v2939
        %v2941 = vpop.xlane.xlu0 %2940
        %v2942 = vadd.f32 %v2933, %v2934
        %2943 = vadd.xlane.f32.xlu0 %v2942
        %v2944 = vpop.xlane.xlu0 %2943
        %v2945 = vadd.f32 %v2935, %v2936
        %2946 = vadd.xlane.f32.xlu0 %v2945
        %v2947 = vpop.xlane.xlu0 %2946
        %v2948 = vadd.f32 %v2937, %v2938
        %2949 = vadd.xlane.f32.xlu0 %v2948
        %v2950 = vpop.xlane.xlu0 %2949
        %v2951 = vmul.f32 %v2941, 0.00390625
        %v2952 = vmul.f32 %v2944, 0.00390625
        %v2953 = vmul.f32 %v2947, 0.00390625
        %v2954 = vmul.f32 %v2950, 0.00390625
        %v2955 = vmax.f32 %v2931, %v2932
        %2956 = vmax.xlane.f32.xlu0 %v2955
        %v2957 = vpop.xlane.xlu0 %2956
        %v2958 = vmax.f32 %v2933, %v2934
        %2959 = vmax.xlane.f32.xlu0 %v2958
        %v2960 = vpop.xlane.xlu0 %2959
        %v2961 = vmax.f32 %v2935, %v2936
        %2962 = vmax.xlane.f32.xlu0 %v2961
        %v2963 = vpop.xlane.xlu0 %2962
        %v2964 = vmax.f32 %v2937, %v2938
        %2965 = vmax.xlane.f32.xlu0 %v2964
        %v2966 = vpop.xlane.xlu0 %2965
        %v2967 = vsel %vm331, %v2951, %v2957
        %v2968 = vsel %vm331, %v2952, %v2960
        %v2969 = vsel %vm331, %v2953, %v2963
        %v2970 = vsel %vm331, %v2954, %v2966
        %2971 = vmatprep.subr.mxu0 0.0
        %2972 = vmatpush1.msra.mxu0 0.0
        %2973 = vmatprep.subr.mxu0 0.0
        %2974 = vmatpush1.msra.mxu0 0.0
        %2975 = vmatprep.subr.mxu0 0.0
        %2976 = vmatpush1.msra.mxu0 0.0
        %2977 = vmatprep.subr.mxu0 0.0
        %2978 = vmatpush1.msra.mxu0 0.0
        %2979 = vmatprep.subr.mxu0 0.0
        %2980 = vmatpush1.msra.mxu0 0.0
        %2981 = vmatprep.subr.mxu0 0.0
        %2982 = vmatpush1.msra.mxu0 0.0
        %2983 = vmatprep.subr.mxu0 0.0
        %2984 = vmatpush1.msra.mxu0 0.0
        %2985 = vmatprep.subr.mxu0 0.0
        %2986 = vmatpush1.msra.mxu0 0.0
        %2987 = vmatprep.subr.mxu0 0.0
        %2988 = vmatpush1.msra.mxu0 0.0
        %2989 = vmatprep.subr.mxu0 0.0
        %2990 = vmatpush1.msra.mxu0 0.0
        %2991 = vmatprep.subr.mxu0 0.0
        %2992 = vmatpush1.msra.mxu0 0.0
        %2993 = vmatprep.subr.mxu0 0.0
        %2994 = vmatpush1.msra.mxu0 0.0
        %2995 = vmatprep.subr.mxu0 0.0
        %v2996 = vand.u32 %v2970, 4294901760
        %2997 = vmatpush1.msra.mxu0 %v2996
        %2998 = vmatprep.subr.mxu0 0.0
        %v2999 = vand.u32 %v2969, 4294901760
        %3000 = vmatpush1.msra.mxu0 %v2999
        %3001 = vmatprep.subr.mxu0 0.0
        %v3002 = vand.u32 %v2968, 4294901760
        %3003 = vmatpush1.msra.mxu0 %v3002
        %3004 = vmatprep.subr.mxu0 0.0
        %v3005 = vand.u32 %v2967, 4294901760
        %3006 = vmatpush1.msra.mxu0 %v3005
        %3007 = vmatprep.subr.mxu0 0.0
        %3008 = vmatpush2.msra.mxu0 0.0
        %3009 = vmatprep.subr.mxu0 0.0
        %3010 = vmatpush2.msra.mxu0 0.0
        %3011 = vmatprep.subr.mxu0 0.0
        %3012 = vmatpush2.msra.mxu0 0.0
        %3013 = vmatprep.subr.mxu0 0.0
        %3014 = vmatpush2.msra.mxu0 0.0
        %3015 = vmatprep.subr.mxu0 0.0
        %3016 = vmatpush2.msra.mxu0 0.0
        %3017 = vmatprep.subr.mxu0 0.0
        %3018 = vmatpush2.msra.mxu0 0.0
        %3019 = vmatprep.subr.mxu0 0.0
        %3020 = vmatpush2.msra.mxu0 0.0
        %3021 = vmatprep.subr.mxu0 0.0
        %3022 = vmatpush2.msra.mxu0 0.0
        %3023 = vmatprep.subr.mxu0 0.0
        %3024 = vmatpush2.msra.mxu0 0.0
        %3025 = vmatprep.subr.mxu0 0.0
        %3026 = vmatpush2.msra.mxu0 0.0
        %3027 = vmatprep.subr.mxu0 0.0
        %3028 = vmatpush2.msra.mxu0 0.0
        %3029 = vmatprep.subr.mxu0 0.0
        %3030 = vmatpush2.msra.mxu0 0.0
        %3031 = vmatprep.subr.mxu0 0.0
        %3032 = vmatpush2.msra.mxu0 0.0
        %3033 = vmatprep.subr.mxu0 0.0
        %3034 = vmatpush2.msra.mxu0 0.0
        %3035 = vmatprep.subr.mxu0 0.0
        %3036 = vmatpush2.msra.mxu0 0.0
        %3037 = vmatprep.subr.mxu0 0.0
        %3038 = vmatpush2.msra.mxu0 0.0
        %3039 = vmatprep.mubr.f32.mxu0 0.0
        %v3040 = vand.u32 %v338, 4294901760
        %v3041 = vsub.f32 %v338, %v3040
        %v3042 = vand.u32 %v3041, 4294901760
        %v3043 = vsub.f32 %v3041, %v3042
        %v3044 = vand.u32 %v3043, 4294901760
        %3045 = vmatmul.mubr.f32.gmra.mxu0 %v3044
        %v3046 = vpop.f32.mrf.mxu0
        %v3047 = vadd.f32 0.0, %v3046
        %v3048 = vpop.f32.mrf.mxu0
        %3049 = vdwg.mxu0
        %3050 = vmatprep.subr.mxu0 0.0
        %3051 = vmatpush1.msra.mxu0 0.0
        %3052 = vmatprep.subr.mxu0 0.0
        %3053 = vmatpush1.msra.mxu0 0.0
        %3054 = vmatprep.subr.mxu0 0.0
        %3055 = vmatpush1.msra.mxu0 0.0
        %3056 = vmatprep.subr.mxu0 0.0
        %3057 = vmatpush1.msra.mxu0 0.0
        %3058 = vmatprep.subr.mxu0 0.0
        %3059 = vmatpush1.msra.mxu0 0.0
        %3060 = vmatprep.subr.mxu0 0.0
        %3061 = vmatpush1.msra.mxu0 0.0
        %3062 = vmatprep.subr.mxu0 0.0
        %3063 = vmatpush1.msra.mxu0 0.0
        %3064 = vmatprep.subr.mxu0 0.0
        %3065 = vmatpush1.msra.mxu0 0.0
        %3066 = vmatprep.subr.mxu0 0.0
        %3067 = vmatpush1.msra.mxu0 0.0
        %3068 = vmatprep.subr.mxu0 0.0
        %3069 = vmatpush1.msra.mxu0 0.0
        %3070 = vmatprep.subr.mxu0 0.0
        %3071 = vmatpush1.msra.mxu0 0.0
        %3072 = vmatprep.subr.mxu0 0.0
        %3073 = vmatpush1.msra.mxu0 0.0
        %3074 = vmatprep.subr.mxu0 0.0
        %v3075 = vand.u32 %v2970, 4294901760
        %v3076 = vsub.f32 %v2970, %v3075
        %v3077 = vand.u32 %v3076, 4294901760
        %v3078 = vsub.f32 %v3076, %v3077
        %v3079 = vand.u32 %v3078, 4294901760
        %3080 = vmatpush1.msra.mxu0 %v3079
        %3081 = vmatprep.subr.mxu0 0.0
        %v3082 = vand.u32 %v2969, 4294901760
        %v3083 = vsub.f32 %v2969, %v3082
        %v3084 = vand.u32 %v3083, 4294901760
        %v3085 = vsub.f32 %v3083, %v3084
        %v3086 = vand.u32 %v3085, 4294901760
        %3087 = vmatpush1.msra.mxu0 %v3086
        %3088 = vmatprep.subr.mxu0 0.0
        %v3089 = vand.u32 %v2968, 4294901760
        %v3090 = vsub.f32 %v2968, %v3089
        %v3091 = vand.u32 %v3090, 4294901760
        %v3092 = vsub.f32 %v3090, %v3091
        %v3093 = vand.u32 %v3092, 4294901760
        %3094 = vmatpush1.msra.mxu0 %v3093
        %3095 = vmatprep.subr.mxu0 0.0
        %v3096 = vand.u32 %v2967, 4294901760
        %v3097 = vsub.f32 %v2967, %v3096
        %v3098 = vand.u32 %v3097, 4294901760
        %v3099 = vsub.f32 %v3097, %v3098
        %v3100 = vand.u32 %v3099, 4294901760
        %3101 = vmatpush1.msra.mxu0 %v3100
        %3102 = vmatprep.subr.mxu0 0.0
        %3103 = vmatpush2.msra.mxu0 0.0
        %3104 = vmatprep.subr.mxu0 0.0
        %3105 = vmatpush2.msra.mxu0 0.0
        %3106 = vmatprep.subr.mxu0 0.0
        %3107 = vmatpush2.msra.mxu0 0.0
        %3108 = vmatprep.subr.mxu0 0.0
        %3109 = vmatpush2.msra.mxu0 0.0
        %3110 = vmatprep.subr.mxu0 0.0
        %3111 = vmatpush2.msra.mxu0 0.0
        %3112 = vmatprep.subr.mxu0 0.0
        %3113 = vmatpush2.msra.mxu0 0.0
        %3114 = vmatprep.subr.mxu0 0.0
        %3115 = vmatpush2.msra.mxu0 0.0
        %3116 = vmatprep.subr.mxu0 0.0
        %3117 = vmatpush2.msra.mxu0 0.0
        %3118 = vmatprep.subr.mxu0 0.0
        %3119 = vmatpush2.msra.mxu0 0.0
        %3120 = vmatprep.subr.mxu0 0.0
        %3121 = vmatpush2.msra.mxu0 0.0
        %3122 = vmatprep.subr.mxu0 0.0
        %3123 = vmatpush2.msra.mxu0 0.0
        %3124 = vmatprep.subr.mxu0 0.0
        %3125 = vmatpush2.msra.mxu0 0.0
        %3126 = vmatprep.subr.mxu0 0.0
        %3127 = vmatpush2.msra.mxu0 0.0
        %3128 = vmatprep.subr.mxu0 0.0
        %3129 = vmatpush2.msra.mxu0 0.0
        %3130 = vmatprep.subr.mxu0 0.0
        %3131 = vmatpush2.msra.mxu0 0.0
        %3132 = vmatprep.subr.mxu0 0.0
        %3133 = vmatpush2.msra.mxu0 0.0
        %3134 = vmatprep.mubr.f32.mxu0 0.0
        %v3135 = vand.u32 %v338, 4294901760
        %3136 = vmatmul.mubr.f32.gmra.mxu0 %v3135
        %v3137 = vpop.f32.mrf.mxu0
        %v3138 = vadd.f32 %v3047, %v3137
        %v3139 = vpop.f32.mrf.mxu0
        %3140 = vdwg.mxu0
        %3141 = vmatprep.subr.mxu0 0.0
        %3142 = vmatpush1.msra.mxu0 0.0
        %3143 = vmatprep.subr.mxu0 0.0
        %3144 = vmatpush1.msra.mxu0 0.0
        %3145 = vmatprep.subr.mxu0 0.0
        %3146 = vmatpush1.msra.mxu0 0.0
        %3147 = vmatprep.subr.mxu0 0.0
        %3148 = vmatpush1.msra.mxu0 0.0
        %3149 = vmatprep.subr.mxu0 0.0
        %3150 = vmatpush1.msra.mxu0 0.0
        %3151 = vmatprep.subr.mxu0 0.0
        %3152 = vmatpush1.msra.mxu0 0.0
        %3153 = vmatprep.subr.mxu0 0.0
        %3154 = vmatpush1.msra.mxu0 0.0
        %3155 = vmatprep.subr.mxu0 0.0
        %3156 = vmatpush1.msra.mxu0 0.0
        %3157 = vmatprep.subr.mxu0 0.0
        %3158 = vmatpush1.msra.mxu0 0.0
        %3159 = vmatprep.subr.mxu0 0.0
        %3160 = vmatpush1.msra.mxu0 0.0
        %3161 = vmatprep.subr.mxu0 0.0
        %3162 = vmatpush1.msra.mxu0 0.0
        %3163 = vmatprep.subr.mxu0 0.0
        %3164 = vmatpush1.msra.mxu0 0.0
        %3165 = vmatprep.subr.mxu0 0.0
        %v3166 = vand.u32 %v2970, 4294901760
        %v3167 = vsub.f32 %v2970, %v3166
        %3168 = vmatpush1.msra.mxu0 %v3167
        %3169 = vmatprep.subr.mxu0 0.0
        %v3170 = vand.u32 %v2969, 4294901760
        %v3171 = vsub.f32 %v2969, %v3170
        %3172 = vmatpush1.msra.mxu0 %v3171
        %3173 = vmatprep.subr.mxu0 0.0
        %v3174 = vand.u32 %v2968, 4294901760
        %v3175 = vsub.f32 %v2968, %v3174
        %3176 = vmatpush1.msra.mxu0 %v3175
        %3177 = vmatprep.subr.mxu0 0.0
        %v3178 = vand.u32 %v2967, 4294901760
        %v3179 = vsub.f32 %v2967, %v3178
        %3180 = vmatpush1.msra.mxu0 %v3179
        %3181 = vmatprep.subr.mxu0 0.0
        %3182 = vmatpush2.msra.mxu0 0.0
        %3183 = vmatprep.subr.mxu0 0.0
        %3184 = vmatpush2.msra.mxu0 0.0
        %3185 = vmatprep.subr.mxu0 0.0
        %3186 = vmatpush2.msra.mxu0 0.0
        %3187 = vmatprep.subr.mxu0 0.0
        %3188 = vmatpush2.msra.mxu0 0.0
        %3189 = vmatprep.subr.mxu0 0.0
        %3190 = vmatpush2.msra.mxu0 0.0
        %3191 = vmatprep.subr.mxu0 0.0
        %3192 = vmatpush2.msra.mxu0 0.0
        %3193 = vmatprep.subr.mxu0 0.0
        %3194 = vmatpush2.msra.mxu0 0.0
        %3195 = vmatprep.subr.mxu0 0.0
        %3196 = vmatpush2.msra.mxu0 0.0
        %3197 = vmatprep.subr.mxu0 0.0
        %3198 = vmatpush2.msra.mxu0 0.0
        %3199 = vmatprep.subr.mxu0 0.0
        %3200 = vmatpush2.msra.mxu0 0.0
        %3201 = vmatprep.subr.mxu0 0.0
        %3202 = vmatpush2.msra.mxu0 0.0
        %3203 = vmatprep.subr.mxu0 0.0
        %3204 = vmatpush2.msra.mxu0 0.0
        %3205 = vmatprep.subr.mxu0 0.0
        %3206 = vmatpush2.msra.mxu0 0.0
        %3207 = vmatprep.subr.mxu0 0.0
        %3208 = vmatpush2.msra.mxu0 0.0
        %3209 = vmatprep.subr.mxu0 0.0
        %3210 = vmatpush2.msra.mxu0 0.0
        %3211 = vmatprep.subr.mxu0 0.0
        %3212 = vmatpush2.msra.mxu0 0.0
        %3213 = vmatprep.mubr.f32.mxu0 0.0
        %v3214 = vand.u32 %v338, 4294901760
        %v3215 = vsub.f32 %v338, %v3214
        %3216 = vmatmul.mubr.f32.gmra.mxu0 %v3215
        %v3217 = vpop.f32.mrf.mxu0
        %v3218 = vadd.f32 %v3138, %v3217
        %v3219 = vpop.f32.mrf.mxu0
        %3220 = vdwg.mxu0
        %3221 = vmatprep.subr.mxu0 0.0
        %3222 = vmatpush1.msra.mxu0 0.0
        %3223 = vmatprep.subr.mxu0 0.0
        %3224 = vmatpush1.msra.mxu0 0.0
        %3225 = vmatprep.subr.mxu0 0.0
        %3226 = vmatpush1.msra.mxu0 0.0
        %3227 = vmatprep.subr.mxu0 0.0
        %3228 = vmatpush1.msra.mxu0 0.0
        %3229 = vmatprep.subr.mxu0 0.0
        %3230 = vmatpush1.msra.mxu0 0.0
        %3231 = vmatprep.subr.mxu0 0.0
        %3232 = vmatpush1.msra.mxu0 0.0
        %3233 = vmatprep.subr.mxu0 0.0
        %3234 = vmatpush1.msra.mxu0 0.0
        %3235 = vmatprep.subr.mxu0 0.0
        %3236 = vmatpush1.msra.mxu0 0.0
        %3237 = vmatprep.subr.mxu0 0.0
        %3238 = vmatpush1.msra.mxu0 0.0
        %3239 = vmatprep.subr.mxu0 0.0
        %3240 = vmatpush1.msra.mxu0 0.0
        %3241 = vmatprep.subr.mxu0 0.0
        %3242 = vmatpush1.msra.mxu0 0.0
        %3243 = vmatprep.subr.mxu0 0.0
        %3244 = vmatpush1.msra.mxu0 0.0
        %3245 = vmatprep.subr.mxu0 0.0
        %v3246 = vand.u32 %v2970, 4294901760
        %3247 = vmatpush1.msra.mxu0 %v3246
        %3248 = vmatprep.subr.mxu0 0.0
        %v3249 = vand.u32 %v2969, 4294901760
        %3250 = vmatpush1.msra.mxu0 %v3249
        %3251 = vmatprep.subr.mxu0 0.0
        %v3252 = vand.u32 %v2968, 4294901760
        %3253 = vmatpush1.msra.mxu0 %v3252
        %3254 = vmatprep.subr.mxu0 0.0
        %v3255 = vand.u32 %v2967, 4294901760
        %3256 = vmatpush1.msra.mxu0 %v3255
        %3257 = vmatprep.subr.mxu0 0.0
        %3258 = vmatpush2.msra.mxu0 0.0
        %3259 = vmatprep.subr.mxu0 0.0
        %3260 = vmatpush2.msra.mxu0 0.0
        %3261 = vmatprep.subr.mxu0 0.0
        %3262 = vmatpush2.msra.mxu0 0.0
        %3263 = vmatprep.subr.mxu0 0.0
        %3264 = vmatpush2.msra.mxu0 0.0
        %3265 = vmatprep.subr.mxu0 0.0
        %3266 = vmatpush2.msra.mxu0 0.0
        %3267 = vmatprep.subr.mxu0 0.0
        %3268 = vmatpush2.msra.mxu0 0.0
        %3269 = vmatprep.subr.mxu0 0.0
        %3270 = vmatpush2.msra.mxu0 0.0
        %3271 = vmatprep.subr.mxu0 0.0
        %3272 = vmatpush2.msra.mxu0 0.0
        %3273 = vmatprep.subr.mxu0 0.0
        %3274 = vmatpush2.msra.mxu0 0.0
        %3275 = vmatprep.subr.mxu0 0.0
        %3276 = vmatpush2.msra.mxu0 0.0
        %3277 = vmatprep.subr.mxu0 0.0
        %3278 = vmatpush2.msra.mxu0 0.0
        %3279 = vmatprep.subr.mxu0 0.0
        %3280 = vmatpush2.msra.mxu0 0.0
        %3281 = vmatprep.subr.mxu0 0.0
        %3282 = vmatpush2.msra.mxu0 0.0
        %3283 = vmatprep.subr.mxu0 0.0
        %3284 = vmatpush2.msra.mxu0 0.0
        %3285 = vmatprep.subr.mxu0 0.0
        %3286 = vmatpush2.msra.mxu0 0.0
        %3287 = vmatprep.subr.mxu0 0.0
        %3288 = vmatpush2.msra.mxu0 0.0
        %3289 = vmatprep.mubr.f32.mxu0 0.0
        %v3290 = vand.u32 %v338, 4294901760
        %v3291 = vsub.f32 %v338, %v3290
        %v3292 = vand.u32 %v3291, 4294901760
        %3293 = vmatmul.mubr.f32.gmra.mxu0 %v3292
        %v3294 = vpop.f32.mrf.mxu0
        %v3295 = vadd.f32 %v3218, %v3294
        %v3296 = vpop.f32.mrf.mxu0
        %3297 = vdwg.mxu0
        %3298 = vmatprep.subr.mxu0 0.0
        %3299 = vmatpush1.msra.mxu0 0.0
        %3300 = vmatprep.subr.mxu0 0.0
        %3301 = vmatpush1.msra.mxu0 0.0
        %3302 = vmatprep.subr.mxu0 0.0
        %3303 = vmatpush1.msra.mxu0 0.0
        %3304 = vmatprep.subr.mxu0 0.0
        %3305 = vmatpush1.msra.mxu0 0.0
        %3306 = vmatprep.subr.mxu0 0.0
        %3307 = vmatpush1.msra.mxu0 0.0
        %3308 = vmatprep.subr.mxu0 0.0
        %3309 = vmatpush1.msra.mxu0 0.0
        %3310 = vmatprep.subr.mxu0 0.0
        %3311 = vmatpush1.msra.mxu0 0.0
        %3312 = vmatprep.subr.mxu0 0.0
        %3313 = vmatpush1.msra.mxu0 0.0
        %3314 = vmatprep.subr.mxu0 0.0
        %3315 = vmatpush1.msra.mxu0 0.0
        %3316 = vmatprep.subr.mxu0 0.0
        %3317 = vmatpush1.msra.mxu0 0.0
        %3318 = vmatprep.subr.mxu0 0.0
        %3319 = vmatpush1.msra.mxu0 0.0
        %3320 = vmatprep.subr.mxu0 0.0
        %3321 = vmatpush1.msra.mxu0 0.0
        %3322 = vmatprep.subr.mxu0 0.0
        %v3323 = vand.u32 %v2970, 4294901760
        %v3324 = vsub.f32 %v2970, %v3323
        %v3325 = vand.u32 %v3324, 4294901760
        %3326 = vmatpush1.msra.mxu0 %v3325
        %3327 = vmatprep.subr.mxu0 0.0
        %v3328 = vand.u32 %v2969, 4294901760
        %v3329 = vsub.f32 %v2969, %v3328
        %v3330 = vand.u32 %v3329, 4294901760
        %3331 = vmatpush1.msra.mxu0 %v3330
        %3332 = vmatprep.subr.mxu0 0.0
        %v3333 = vand.u32 %v2968, 4294901760
        %v3334 = vsub.f32 %v2968, %v3333
        %v3335 = vand.u32 %v3334, 4294901760
        %3336 = vmatpush1.msra.mxu0 %v3335
        %3337 = vmatprep.subr.mxu0 0.0
        %v3338 = vand.u32 %v2967, 4294901760
        %v3339 = vsub.f32 %v2967, %v3338
        %v3340 = vand.u32 %v3339, 4294901760
        %3341 = vmatpush1.msra.mxu0 %v3340
        %3342 = vmatprep.subr.mxu0 0.0
        %3343 = vmatpush2.msra.mxu0 0.0
        %3344 = vmatprep.subr.mxu0 0.0
        %3345 = vmatpush2.msra.mxu0 0.0
        %3346 = vmatprep.subr.mxu0 0.0
        %3347 = vmatpush2.msra.mxu0 0.0
        %3348 = vmatprep.subr.mxu0 0.0
        %3349 = vmatpush2.msra.mxu0 0.0
        %3350 = vmatprep.subr.mxu0 0.0
        %3351 = vmatpush2.msra.mxu0 0.0
        %3352 = vmatprep.subr.mxu0 0.0
        %3353 = vmatpush2.msra.mxu0 0.0
        %3354 = vmatprep.subr.mxu0 0.0
        %3355 = vmatpush2.msra.mxu0 0.0
        %3356 = vmatprep.subr.mxu0 0.0
        %3357 = vmatpush2.msra.mxu0 0.0
        %3358 = vmatprep.subr.mxu0 0.0
        %3359 = vmatpush2.msra.mxu0 0.0
        %3360 = vmatprep.subr.mxu0 0.0
        %3361 = vmatpush2.msra.mxu0 0.0
        %3362 = vmatprep.subr.mxu0 0.0
        %3363 = vmatpush2.msra.mxu0 0.0
        %3364 = vmatprep.subr.mxu0 0.0
        %3365 = vmatpush2.msra.mxu0 0.0
        %3366 = vmatprep.subr.mxu0 0.0
        %3367 = vmatpush2.msra.mxu0 0.0
        %3368 = vmatprep.subr.mxu0 0.0
        %3369 = vmatpush2.msra.mxu0 0.0
        %3370 = vmatprep.subr.mxu0 0.0
        %3371 = vmatpush2.msra.mxu0 0.0
        %3372 = vmatprep.subr.mxu0 0.0
        %3373 = vmatpush2.msra.mxu0 0.0
        %3374 = vmatprep.mubr.f32.mxu0 0.0
        %v3375 = vand.u32 %v338, 4294901760
        %3376 = vmatmul.mubr.f32.gmra.mxu0 %v3375
        %v3377 = vpop.f32.mrf.mxu0
        %v3378 = vadd.f32 %v3295, %v3377
        %v3379 = vpop.f32.mrf.mxu0
        %3380 = vdwg.mxu0
        %3381 = vmatprep.subr.mxu0 0.0
        %3382 = vmatpush1.msra.mxu0 0.0
        %3383 = vmatprep.subr.mxu0 0.0
        %3384 = vmatpush1.msra.mxu0 0.0
        %3385 = vmatprep.subr.mxu0 0.0
        %3386 = vmatpush1.msra.mxu0 0.0
        %3387 = vmatprep.subr.mxu0 0.0
        %3388 = vmatpush1.msra.mxu0 0.0
        %3389 = vmatprep.subr.mxu0 0.0
        %3390 = vmatpush1.msra.mxu0 0.0
        %3391 = vmatprep.subr.mxu0 0.0
        %3392 = vmatpush1.msra.mxu0 0.0
        %3393 = vmatprep.subr.mxu0 0.0
        %3394 = vmatpush1.msra.mxu0 0.0
        %3395 = vmatprep.subr.mxu0 0.0
        %3396 = vmatpush1.msra.mxu0 0.0
        %3397 = vmatprep.subr.mxu0 0.0
        %3398 = vmatpush1.msra.mxu0 0.0
        %3399 = vmatprep.subr.mxu0 0.0
        %3400 = vmatpush1.msra.mxu0 0.0
        %3401 = vmatprep.subr.mxu0 0.0
        %3402 = vmatpush1.msra.mxu0 0.0
        %3403 = vmatprep.subr.mxu0 0.0
        %3404 = vmatpush1.msra.mxu0 0.0
        %3405 = vmatprep.subr.mxu0 0.0
        %v3406 = vand.u32 %v2970, 4294901760
        %3407 = vmatpush1.msra.mxu0 %v3406
        %3408 = vmatprep.subr.mxu0 0.0
        %v3409 = vand.u32 %v2969, 4294901760
        %3410 = vmatpush1.msra.mxu0 %v3409
        %3411 = vmatprep.subr.mxu0 0.0
        %v3412 = vand.u32 %v2968, 4294901760
        %3413 = vmatpush1.msra.mxu0 %v3412
        %3414 = vmatprep.subr.mxu0 0.0
        %v3415 = vand.u32 %v2967, 4294901760
        %3416 = vmatpush1.msra.mxu0 %v3415
        %3417 = vmatprep.subr.mxu0 0.0
        %3418 = vmatpush2.msra.mxu0 0.0
        %3419 = vmatprep.subr.mxu0 0.0
        %3420 = vmatpush2.msra.mxu0 0.0
        %3421 = vmatprep.subr.mxu0 0.0
        %3422 = vmatpush2.msra.mxu0 0.0
        %3423 = vmatprep.subr.mxu0 0.0
        %3424 = vmatpush2.msra.mxu0 0.0
        %3425 = vmatprep.subr.mxu0 0.0
        %3426 = vmatpush2.msra.mxu0 0.0
        %3427 = vmatprep.subr.mxu0 0.0
        %3428 = vmatpush2.msra.mxu0 0.0
        %3429 = vmatprep.subr.mxu0 0.0
        %3430 = vmatpush2.msra.mxu0 0.0
        %3431 = vmatprep.subr.mxu0 0.0
        %3432 = vmatpush2.msra.mxu0 0.0
        %3433 = vmatprep.subr.mxu0 0.0
        %3434 = vmatpush2.msra.mxu0 0.0
        %3435 = vmatprep.subr.mxu0 0.0
        %3436 = vmatpush2.msra.mxu0 0.0
        %3437 = vmatprep.subr.mxu0 0.0
        %3438 = vmatpush2.msra.mxu0 0.0
        %3439 = vmatprep.subr.mxu0 0.0
        %3440 = vmatpush2.msra.mxu0 0.0
        %3441 = vmatprep.subr.mxu0 0.0
        %3442 = vmatpush2.msra.mxu0 0.0
        %3443 = vmatprep.subr.mxu0 0.0
        %3444 = vmatpush2.msra.mxu0 0.0
        %3445 = vmatprep.subr.mxu0 0.0
        %3446 = vmatpush2.msra.mxu0 0.0
        %3447 = vmatprep.subr.mxu0 0.0
        %3448 = vmatpush2.msra.mxu0 0.0
        %3449 = vmatprep.mubr.f32.mxu0 0.0
        %v3450 = vand.u32 %v338, 4294901760
        %3451 = vmatmul.mubr.f32.gmra.mxu0 %v3450
        %v3452 = vpop.f32.mrf.mxu0
        %v3453 = vadd.f32 %v3378, %v3452
        %v3454 = vpop.f32.mrf.mxu0
        %3455 = vdwg.mxu0
        %v3456 = vmax.f32 %v3453, 0.0
        %v3458 = vsel %vm839, %v3456, 0
        %3460 = vmatprep.subr.mxu0 0.0
        %3461 = vmatpush1.msra.mxu0 0.0
        %3462 = vmatprep.subr.mxu0 0.0
        %3463 = vmatpush1.msra.mxu0 0.0
        %3464 = vmatprep.subr.mxu0 0.0
        %3465 = vmatpush1.msra.mxu0 0.0
        %3466 = vmatprep.subr.mxu0 0.0
        %3467 = vmatpush1.msra.mxu0 0.0
        %3468 = vmatprep.subr.mxu0 0.0
        %3469 = vmatpush1.msra.mxu0 0.0
        %3470 = vmatprep.subr.mxu0 0.0
        %3471 = vmatpush1.msra.mxu0 0.0
        %3472 = vmatprep.subr.mxu0 0.0
        %3473 = vmatpush1.msra.mxu0 0.0
        %3474 = vmatprep.subr.mxu0 0.0
        %3475 = vmatpush1.msra.mxu0 0.0
        %3476 = vmatprep.subr.mxu0 0.0
        %3477 = vmatpush1.msra.mxu0 0.0
        %3478 = vmatprep.subr.mxu0 0.0
        %3479 = vmatpush1.msra.mxu0 0.0
        %3480 = vmatprep.subr.mxu0 0.0
        %3481 = vmatpush1.msra.mxu0 0.0
        %3482 = vmatprep.subr.mxu0 0.0
        %3483 = vmatpush1.msra.mxu0 0.0
        %3484 = vmatprep.subr.mxu0 0.0
        %3485 = vmatpush1.msra.mxu0 0.0
        %3486 = vmatprep.subr.mxu0 0.0
        %3487 = vmatpush1.msra.mxu0 0.0
        %3488 = vmatprep.subr.mxu0 0.0
        %3489 = vmatpush1.msra.mxu0 0.0
        %3490 = vmatprep.subr.mxu0 0.0
        %v3491 = vand.u32 %v3458, 4294901760
        %3492 = vmatpush1.msra.mxu0 %v3491
        %3493 = vmatprep.subr.mxu0 0.0
        %3494 = vmatpush2.msra.mxu0 0.0
        %3495 = vmatprep.subr.mxu0 0.0
        %3496 = vmatpush2.msra.mxu0 0.0
        %3497 = vmatprep.subr.mxu0 0.0
        %3498 = vmatpush2.msra.mxu0 0.0
        %3499 = vmatprep.subr.mxu0 0.0
        %3500 = vmatpush2.msra.mxu0 0.0
        %3501 = vmatprep.subr.mxu0 0.0
        %3502 = vmatpush2.msra.mxu0 0.0
        %3503 = vmatprep.subr.mxu0 0.0
        %3504 = vmatpush2.msra.mxu0 0.0
        %3505 = vmatprep.subr.mxu0 0.0
        %3506 = vmatpush2.msra.mxu0 0.0
        %3507 = vmatprep.subr.mxu0 0.0
        %3508 = vmatpush2.msra.mxu0 0.0
        %3509 = vmatprep.subr.mxu0 0.0
        %3510 = vmatpush2.msra.mxu0 0.0
        %3511 = vmatprep.subr.mxu0 0.0
        %3512 = vmatpush2.msra.mxu0 0.0
        %3513 = vmatprep.subr.mxu0 0.0
        %3514 = vmatpush2.msra.mxu0 0.0
        %3515 = vmatprep.subr.mxu0 0.0
        %3516 = vmatpush2.msra.mxu0 0.0
        %3517 = vmatprep.subr.mxu0 0.0
        %3518 = vmatpush2.msra.mxu0 0.0
        %3519 = vmatprep.subr.mxu0 0.0
        %3520 = vmatpush2.msra.mxu0 0.0
        %3521 = vmatprep.subr.mxu0 0.0
        %3522 = vmatpush2.msra.mxu0 0.0
        %3523 = vmatprep.subr.mxu0 0.0
        %3524 = vmatpush2.msra.mxu0 0.0
        %3525 = vmatprep.mubr.f32.mxu0 0.0
        %v3526 = vand.u32 %v828, 4294901760
        %v3527 = vsub.f32 %v828, %v3526
        %v3528 = vand.u32 %v3527, 4294901760
        %v3529 = vsub.f32 %v3527, %v3528
        %v3530 = vand.u32 %v3529, 4294901760
        %3531 = vmatmul.mubr.f32.gmra.mxu0 %v3530
        %v3532 = vpop.f32.mrf.mxu0
        %v3533 = vadd.f32 0.0, %v3532
        %v3534 = vpop.f32.mrf.mxu0
        %3535 = vmatprep.mubr.f32.mxu0 0.0
        %v3536 = vand.u32 %v831, 4294901760
        %v3537 = vsub.f32 %v831, %v3536
        %v3538 = vand.u32 %v3537, 4294901760
        %v3539 = vsub.f32 %v3537, %v3538
        %v3540 = vand.u32 %v3539, 4294901760
        %3541 = vmatmul.mubr.f32.gmra.mxu0 %v3540
        %v3542 = vpop.f32.mrf.mxu0
        %v3543 = vadd.f32 0.0, %v3542
        %v3544 = vpop.f32.mrf.mxu0
        %3545 = vmatprep.mubr.f32.mxu0 0.0
        %v3546 = vand.u32 %v834, 4294901760
        %v3547 = vsub.f32 %v834, %v3546
        %v3548 = vand.u32 %v3547, 4294901760
        %v3549 = vsub.f32 %v3547, %v3548
        %v3550 = vand.u32 %v3549, 4294901760
        %3551 = vmatmul.mubr.f32.gmra.mxu0 %v3550
        %v3552 = vpop.f32.mrf.mxu0
        %v3553 = vadd.f32 0.0, %v3552
        %v3554 = vpop.f32.mrf.mxu0
        %3555 = vmatprep.mubr.f32.mxu0 0.0
        %v3556 = vand.u32 %v837, 4294901760
        %v3557 = vsub.f32 %v837, %v3556
        %v3558 = vand.u32 %v3557, 4294901760
        %v3559 = vsub.f32 %v3557, %v3558
        %v3560 = vand.u32 %v3559, 4294901760
        %3561 = vmatmul.mubr.f32.gmra.mxu0 %v3560
        %v3562 = vpop.f32.mrf.mxu0
        %v3563 = vadd.f32 0.0, %v3562
        %v3564 = vpop.f32.mrf.mxu0
        %3565 = vdwg.mxu0
        %3566 = vmatprep.subr.mxu0 0.0
        %3567 = vmatpush1.msra.mxu0 0.0
        %3568 = vmatprep.subr.mxu0 0.0
        %3569 = vmatpush1.msra.mxu0 0.0
        %3570 = vmatprep.subr.mxu0 0.0
        %3571 = vmatpush1.msra.mxu0 0.0
        %3572 = vmatprep.subr.mxu0 0.0
        %3573 = vmatpush1.msra.mxu0 0.0
        %3574 = vmatprep.subr.mxu0 0.0
        %3575 = vmatpush1.msra.mxu0 0.0
        %3576 = vmatprep.subr.mxu0 0.0
        %3577 = vmatpush1.msra.mxu0 0.0
        %3578 = vmatprep.subr.mxu0 0.0
        %3579 = vmatpush1.msra.mxu0 0.0
        %3580 = vmatprep.subr.mxu0 0.0
        %3581 = vmatpush1.msra.mxu0 0.0
        %3582 = vmatprep.subr.mxu0 0.0
        %3583 = vmatpush1.msra.mxu0 0.0
        %3584 = vmatprep.subr.mxu0 0.0
        %3585 = vmatpush1.msra.mxu0 0.0
        %3586 = vmatprep.subr.mxu0 0.0
        %3587 = vmatpush1.msra.mxu0 0.0
        %3588 = vmatprep.subr.mxu0 0.0
        %3589 = vmatpush1.msra.mxu0 0.0
        %3590 = vmatprep.subr.mxu0 0.0
        %3591 = vmatpush1.msra.mxu0 0.0
        %3592 = vmatprep.subr.mxu0 0.0
        %3593 = vmatpush1.msra.mxu0 0.0
        %3594 = vmatprep.subr.mxu0 0.0
        %3595 = vmatpush1.msra.mxu0 0.0
        %3596 = vmatprep.subr.mxu0 0.0
        %v3597 = vand.u32 %v3458, 4294901760
        %v3598 = vsub.f32 %v3458, %v3597
        %v3599 = vand.u32 %v3598, 4294901760
        %v3600 = vsub.f32 %v3598, %v3599
        %v3601 = vand.u32 %v3600, 4294901760
        %3602 = vmatpush1.msra.mxu0 %v3601
        %3603 = vmatprep.subr.mxu0 0.0
        %3604 = vmatpush2.msra.mxu0 0.0
        %3605 = vmatprep.subr.mxu0 0.0
        %3606 = vmatpush2.msra.mxu0 0.0
        %3607 = vmatprep.subr.mxu0 0.0
        %3608 = vmatpush2.msra.mxu0 0.0
        %3609 = vmatprep.subr.mxu0 0.0
        %3610 = vmatpush2.msra.mxu0 0.0
        %3611 = vmatprep.subr.mxu0 0.0
        %3612 = vmatpush2.msra.mxu0 0.0
        %3613 = vmatprep.subr.mxu0 0.0
        %3614 = vmatpush2.msra.mxu0 0.0
        %3615 = vmatprep.subr.mxu0 0.0
        %3616 = vmatpush2.msra.mxu0 0.0
        %3617 = vmatprep.subr.mxu0 0.0
        %3618 = vmatpush2.msra.mxu0 0.0
        %3619 = vmatprep.subr.mxu0 0.0
        %3620 = vmatpush2.msra.mxu0 0.0
        %3621 = vmatprep.subr.mxu0 0.0
        %3622 = vmatpush2.msra.mxu0 0.0
        %3623 = vmatprep.subr.mxu0 0.0
        %3624 = vmatpush2.msra.mxu0 0.0
        %3625 = vmatprep.subr.mxu0 0.0
        %3626 = vmatpush2.msra.mxu0 0.0
        %3627 = vmatprep.subr.mxu0 0.0
        %3628 = vmatpush2.msra.mxu0 0.0
        %3629 = vmatprep.subr.mxu0 0.0
        %3630 = vmatpush2.msra.mxu0 0.0
        %3631 = vmatprep.subr.mxu0 0.0
        %3632 = vmatpush2.msra.mxu0 0.0
        %3633 = vmatprep.subr.mxu0 0.0
        %3634 = vmatpush2.msra.mxu0 0.0
        %3635 = vmatprep.mubr.f32.mxu0 0.0
        %v3636 = vand.u32 %v828, 4294901760
        %3637 = vmatmul.mubr.f32.gmra.mxu0 %v3636
        %v3638 = vpop.f32.mrf.mxu0
        %v3639 = vadd.f32 %v3533, %v3638
        %v3640 = vpop.f32.mrf.mxu0
        %3641 = vmatprep.mubr.f32.mxu0 0.0
        %v3642 = vand.u32 %v831, 4294901760
        %3643 = vmatmul.mubr.f32.gmra.mxu0 %v3642
        %v3644 = vpop.f32.mrf.mxu0
        %v3645 = vadd.f32 %v3543, %v3644
        %v3646 = vpop.f32.mrf.mxu0
        %3647 = vmatprep.mubr.f32.mxu0 0.0
        %v3648 = vand.u32 %v834, 4294901760
        %3649 = vmatmul.mubr.f32.gmra.mxu0 %v3648
        %v3650 = vpop.f32.mrf.mxu0
        %v3651 = vadd.f32 %v3553, %v3650
        %v3652 = vpop.f32.mrf.mxu0
        %3653 = vmatprep.mubr.f32.mxu0 0.0
        %v3654 = vand.u32 %v837, 4294901760
        %3655 = vmatmul.mubr.f32.gmra.mxu0 %v3654
        %v3656 = vpop.f32.mrf.mxu0
        %v3657 = vadd.f32 %v3563, %v3656
        %v3658 = vpop.f32.mrf.mxu0
        %3659 = vdwg.mxu0
        %3660 = vmatprep.subr.mxu0 0.0
        %3661 = vmatpush1.msra.mxu0 0.0
        %3662 = vmatprep.subr.mxu0 0.0
        %3663 = vmatpush1.msra.mxu0 0.0
        %3664 = vmatprep.subr.mxu0 0.0
        %3665 = vmatpush1.msra.mxu0 0.0
        %3666 = vmatprep.subr.mxu0 0.0
        %3667 = vmatpush1.msra.mxu0 0.0
        %3668 = vmatprep.subr.mxu0 0.0
        %3669 = vmatpush1.msra.mxu0 0.0
        %3670 = vmatprep.subr.mxu0 0.0
        %3671 = vmatpush1.msra.mxu0 0.0
        %3672 = vmatprep.subr.mxu0 0.0
        %3673 = vmatpush1.msra.mxu0 0.0
        %3674 = vmatprep.subr.mxu0 0.0
        %3675 = vmatpush1.msra.mxu0 0.0
        %3676 = vmatprep.subr.mxu0 0.0
        %3677 = vmatpush1.msra.mxu0 0.0
        %3678 = vmatprep.subr.mxu0 0.0
        %3679 = vmatpush1.msra.mxu0 0.0
        %3680 = vmatprep.subr.mxu0 0.0
        %3681 = vmatpush1.msra.mxu0 0.0
        %3682 = vmatprep.subr.mxu0 0.0
        %3683 = vmatpush1.msra.mxu0 0.0
        %3684 = vmatprep.subr.mxu0 0.0
        %3685 = vmatpush1.msra.mxu0 0.0
        %3686 = vmatprep.subr.mxu0 0.0
        %3687 = vmatpush1.msra.mxu0 0.0
        %3688 = vmatprep.subr.mxu0 0.0
        %3689 = vmatpush1.msra.mxu0 0.0
        %3690 = vmatprep.subr.mxu0 0.0
        %v3691 = vand.u32 %v3458, 4294901760
        %v3692 = vsub.f32 %v3458, %v3691
        %3693 = vmatpush1.msra.mxu0 %v3692
        %3694 = vmatprep.subr.mxu0 0.0
        %3695 = vmatpush2.msra.mxu0 0.0
        %3696 = vmatprep.subr.mxu0 0.0
        %3697 = vmatpush2.msra.mxu0 0.0
        %3698 = vmatprep.subr.mxu0 0.0
        %3699 = vmatpush2.msra.mxu0 0.0
        %3700 = vmatprep.subr.mxu0 0.0
        %3701 = vmatpush2.msra.mxu0 0.0
        %3702 = vmatprep.subr.mxu0 0.0
        %3703 = vmatpush2.msra.mxu0 0.0
        %3704 = vmatprep.subr.mxu0 0.0
        %3705 = vmatpush2.msra.mxu0 0.0
        %3706 = vmatprep.subr.mxu0 0.0
        %3707 = vmatpush2.msra.mxu0 0.0
        %3708 = vmatprep.subr.mxu0 0.0
        %3709 = vmatpush2.msra.mxu0 0.0
        %3710 = vmatprep.subr.mxu0 0.0
        %3711 = vmatpush2.msra.mxu0 0.0
        %3712 = vmatprep.subr.mxu0 0.0
        %3713 = vmatpush2.msra.mxu0 0.0
        %3714 = vmatprep.subr.mxu0 0.0
        %3715 = vmatpush2.msra.mxu0 0.0
        %3716 = vmatprep.subr.mxu0 0.0
        %3717 = vmatpush2.msra.mxu0 0.0
        %3718 = vmatprep.subr.mxu0 0.0
        %3719 = vmatpush2.msra.mxu0 0.0
        %3720 = vmatprep.subr.mxu0 0.0
        %3721 = vmatpush2.msra.mxu0 0.0
        %3722 = vmatprep.subr.mxu0 0.0
        %3723 = vmatpush2.msra.mxu0 0.0
        %3724 = vmatprep.subr.mxu0 0.0
        %3725 = vmatpush2.msra.mxu0 0.0
        %3726 = vmatprep.mubr.f32.mxu0 0.0
        %v3727 = vand.u32 %v828, 4294901760
        %v3728 = vsub.f32 %v828, %v3727
        %3729 = vmatmul.mubr.f32.gmra.mxu0 %v3728
        %v3730 = vpop.f32.mrf.mxu0
        %v3731 = vadd.f32 %v3639, %v3730
        %v3732 = vpop.f32.mrf.mxu0
        %3733 = vmatprep.mubr.f32.mxu0 0.0
        %v3734 = vand.u32 %v831, 4294901760
        %v3735 = vsub.f32 %v831, %v3734
        %3736 = vmatmul.mubr.f32.gmra.mxu0 %v3735
        %v3737 = vpop.f32.mrf.mxu0
        %v3738 = vadd.f32 %v3645, %v3737
        %v3739 = vpop.f32.mrf.mxu0
        %3740 = vmatprep.mubr.f32.mxu0 0.0
        %v3741 = vand.u32 %v834, 4294901760
        %v3742 = vsub.f32 %v834, %v3741
        %3743 = vmatmul.mubr.f32.gmra.mxu0 %v3742
        %v3744 = vpop.f32.mrf.mxu0
        %v3745 = vadd.f32 %v3651, %v3744
        %v3746 = vpop.f32.mrf.mxu0
        %3747 = vmatprep.mubr.f32.mxu0 0.0
        %v3748 = vand.u32 %v837, 4294901760
        %v3749 = vsub.f32 %v837, %v3748
        %3750 = vmatmul.mubr.f32.gmra.mxu0 %v3749
        %v3751 = vpop.f32.mrf.mxu0
        %v3752 = vadd.f32 %v3657, %v3751
        %v3753 = vpop.f32.mrf.mxu0
        %3754 = vdwg.mxu0
        %3755 = vmatprep.subr.mxu0 0.0
        %3756 = vmatpush1.msra.mxu0 0.0
        %3757 = vmatprep.subr.mxu0 0.0
        %3758 = vmatpush1.msra.mxu0 0.0
        %3759 = vmatprep.subr.mxu0 0.0
        %3760 = vmatpush1.msra.mxu0 0.0
        %3761 = vmatprep.subr.mxu0 0.0
        %3762 = vmatpush1.msra.mxu0 0.0
        %3763 = vmatprep.subr.mxu0 0.0
        %3764 = vmatpush1.msra.mxu0 0.0
        %3765 = vmatprep.subr.mxu0 0.0
        %3766 = vmatpush1.msra.mxu0 0.0
        %3767 = vmatprep.subr.mxu0 0.0
        %3768 = vmatpush1.msra.mxu0 0.0
        %3769 = vmatprep.subr.mxu0 0.0
        %3770 = vmatpush1.msra.mxu0 0.0
        %3771 = vmatprep.subr.mxu0 0.0
        %3772 = vmatpush1.msra.mxu0 0.0
        %3773 = vmatprep.subr.mxu0 0.0
        %3774 = vmatpush1.msra.mxu0 0.0
        %3775 = vmatprep.subr.mxu0 0.0
        %3776 = vmatpush1.msra.mxu0 0.0
        %3777 = vmatprep.subr.mxu0 0.0
        %3778 = vmatpush1.msra.mxu0 0.0
        %3779 = vmatprep.subr.mxu0 0.0
        %3780 = vmatpush1.msra.mxu0 0.0
        %3781 = vmatprep.subr.mxu0 0.0
        %3782 = vmatpush1.msra.mxu0 0.0
        %3783 = vmatprep.subr.mxu0 0.0
        %3784 = vmatpush1.msra.mxu0 0.0
        %3785 = vmatprep.subr.mxu0 0.0
        %v3786 = vand.u32 %v3458, 4294901760
        %3787 = vmatpush1.msra.mxu0 %v3786
        %3788 = vmatprep.subr.mxu0 0.0
        %3789 = vmatpush2.msra.mxu0 0.0
        %3790 = vmatprep.subr.mxu0 0.0
        %3791 = vmatpush2.msra.mxu0 0.0
        %3792 = vmatprep.subr.mxu0 0.0
        %3793 = vmatpush2.msra.mxu0 0.0
        %3794 = vmatprep.subr.mxu0 0.0
        %3795 = vmatpush2.msra.mxu0 0.0
        %3796 = vmatprep.subr.mxu0 0.0
        %3797 = vmatpush2.msra.mxu0 0.0
        %3798 = vmatprep.subr.mxu0 0.0
        %3799 = vmatpush2.msra.mxu0 0.0
        %3800 = vmatprep.subr.mxu0 0.0
        %3801 = vmatpush2.msra.mxu0 0.0
        %3802 = vmatprep.subr.mxu0 0.0
        %3803 = vmatpush2.msra.mxu0 0.0
        %3804 = vmatprep.subr.mxu0 0.0
        %3805 = vmatpush2.msra.mxu0 0.0
        %3806 = vmatprep.subr.mxu0 0.0
        %3807 = vmatpush2.msra.mxu0 0.0
        %3808 = vmatprep.subr.mxu0 0.0
        %3809 = vmatpush2.msra.mxu0 0.0
        %3810 = vmatprep.subr.mxu0 0.0
        %3811 = vmatpush2.msra.mxu0 0.0
        %3812 = vmatprep.subr.mxu0 0.0
        %3813 = vmatpush2.msra.mxu0 0.0
        %3814 = vmatprep.subr.mxu0 0.0
        %3815 = vmatpush2.msra.mxu0 0.0
        %3816 = vmatprep.subr.mxu0 0.0
        %3817 = vmatpush2.msra.mxu0 0.0
        %3818 = vmatprep.subr.mxu0 0.0
        %3819 = vmatpush2.msra.mxu0 0.0
        %3820 = vmatprep.mubr.f32.mxu0 0.0
        %v3821 = vand.u32 %v828, 4294901760
        %v3822 = vsub.f32 %v828, %v3821
        %v3823 = vand.u32 %v3822, 4294901760
        %3824 = vmatmul.mubr.f32.gmra.mxu0 %v3823
        %v3825 = vpop.f32.mrf.mxu0
        %v3826 = vadd.f32 %v3731, %v3825
        %v3827 = vpop.f32.mrf.mxu0
        %3828 = vmatprep.mubr.f32.mxu0 0.0
        %v3829 = vand.u32 %v831, 4294901760
        %v3830 = vsub.f32 %v831, %v3829
        %v3831 = vand.u32 %v3830, 4294901760
        %3832 = vmatmul.mubr.f32.gmra.mxu0 %v3831
        %v3833 = vpop.f32.mrf.mxu0
        %v3834 = vadd.f32 %v3738, %v3833
        %v3835 = vpop.f32.mrf.mxu0
        %3836 = vmatprep.mubr.f32.mxu0 0.0
        %v3837 = vand.u32 %v834, 4294901760
        %v3838 = vsub.f32 %v834, %v3837
        %v3839 = vand.u32 %v3838, 4294901760
        %3840 = vmatmul.mubr.f32.gmra.mxu0 %v3839
        %v3841 = vpop.f32.mrf.mxu0
        %v3842 = vadd.f32 %v3745, %v3841
        %v3843 = vpop.f32.mrf.mxu0
        %3844 = vmatprep.mubr.f32.mxu0 0.0
        %v3845 = vand.u32 %v837, 4294901760
        %v3846 = vsub.f32 %v837, %v3845
        %v3847 = vand.u32 %v3846, 4294901760
        %3848 = vmatmul.mubr.f32.gmra.mxu0 %v3847
        %v3849 = vpop.f32.mrf.mxu0
        %v3850 = vadd.f32 %v3752, %v3849
        %v3851 = vpop.f32.mrf.mxu0
        %3852 = vdwg.mxu0
        %3853 = vmatprep.subr.mxu0 0.0
        %3854 = vmatpush1.msra.mxu0 0.0
        %3855 = vmatprep.subr.mxu0 0.0
        %3856 = vmatpush1.msra.mxu0 0.0
        %3857 = vmatprep.subr.mxu0 0.0
        %3858 = vmatpush1.msra.mxu0 0.0
        %3859 = vmatprep.subr.mxu0 0.0
        %3860 = vmatpush1.msra.mxu0 0.0
        %3861 = vmatprep.subr.mxu0 0.0
        %3862 = vmatpush1.msra.mxu0 0.0
        %3863 = vmatprep.subr.mxu0 0.0
        %3864 = vmatpush1.msra.mxu0 0.0
        %3865 = vmatprep.subr.mxu0 0.0
        %3866 = vmatpush1.msra.mxu0 0.0
        %3867 = vmatprep.subr.mxu0 0.0
        %3868 = vmatpush1.msra.mxu0 0.0
        %3869 = vmatprep.subr.mxu0 0.0
        %3870 = vmatpush1.msra.mxu0 0.0
        %3871 = vmatprep.subr.mxu0 0.0
        %3872 = vmatpush1.msra.mxu0 0.0
        %3873 = vmatprep.subr.mxu0 0.0
        %3874 = vmatpush1.msra.mxu0 0.0
        %3875 = vmatprep.subr.mxu0 0.0
        %3876 = vmatpush1.msra.mxu0 0.0
        %3877 = vmatprep.subr.mxu0 0.0
        %3878 = vmatpush1.msra.mxu0 0.0
        %3879 = vmatprep.subr.mxu0 0.0
        %3880 = vmatpush1.msra.mxu0 0.0
        %3881 = vmatprep.subr.mxu0 0.0
        %3882 = vmatpush1.msra.mxu0 0.0
        %3883 = vmatprep.subr.mxu0 0.0
        %v3884 = vand.u32 %v3458, 4294901760
        %v3885 = vsub.f32 %v3458, %v3884
        %v3886 = vand.u32 %v3885, 4294901760
        %3887 = vmatpush1.msra.mxu0 %v3886
        %3888 = vmatprep.subr.mxu0 0.0
        %3889 = vmatpush2.msra.mxu0 0.0
        %3890 = vmatprep.subr.mxu0 0.0
        %3891 = vmatpush2.msra.mxu0 0.0
        %3892 = vmatprep.subr.mxu0 0.0
        %3893 = vmatpush2.msra.mxu0 0.0
        %3894 = vmatprep.subr.mxu0 0.0
        %3895 = vmatpush2.msra.mxu0 0.0
        %3896 = vmatprep.subr.mxu0 0.0
        %3897 = vmatpush2.msra.mxu0 0.0
        %3898 = vmatprep.subr.mxu0 0.0
        %3899 = vmatpush2.msra.mxu0 0.0
        %3900 = vmatprep.subr.mxu0 0.0
        %3901 = vmatpush2.msra.mxu0 0.0
        %3902 = vmatprep.subr.mxu0 0.0
        %3903 = vmatpush2.msra.mxu0 0.0
        %3904 = vmatprep.subr.mxu0 0.0
        %3905 = vmatpush2.msra.mxu0 0.0
        %3906 = vmatprep.subr.mxu0 0.0
        %3907 = vmatpush2.msra.mxu0 0.0
        %3908 = vmatprep.subr.mxu0 0.0
        %3909 = vmatpush2.msra.mxu0 0.0
        %3910 = vmatprep.subr.mxu0 0.0
        %3911 = vmatpush2.msra.mxu0 0.0
        %3912 = vmatprep.subr.mxu0 0.0
        %3913 = vmatpush2.msra.mxu0 0.0
        %3914 = vmatprep.subr.mxu0 0.0
        %3915 = vmatpush2.msra.mxu0 0.0
        %3916 = vmatprep.subr.mxu0 0.0
        %3917 = vmatpush2.msra.mxu0 0.0
        %3918 = vmatprep.subr.mxu0 0.0
        %3919 = vmatpush2.msra.mxu0 0.0
        %3920 = vmatprep.mubr.f32.mxu0 0.0
        %v3921 = vand.u32 %v828, 4294901760
        %3922 = vmatmul.mubr.f32.gmra.mxu0 %v3921
        %v3923 = vpop.f32.mrf.mxu0
        %v3924 = vadd.f32 %v3826, %v3923
        %v3925 = vpop.f32.mrf.mxu0
        %3926 = vmatprep.mubr.f32.mxu0 0.0
        %v3927 = vand.u32 %v831, 4294901760
        %3928 = vmatmul.mubr.f32.gmra.mxu0 %v3927
        %v3929 = vpop.f32.mrf.mxu0
        %v3930 = vadd.f32 %v3834, %v3929
        %v3931 = vpop.f32.mrf.mxu0
        %3932 = vmatprep.mubr.f32.mxu0 0.0
        %v3933 = vand.u32 %v834, 4294901760
        %3934 = vmatmul.mubr.f32.gmra.mxu0 %v3933
        %v3935 = vpop.f32.mrf.mxu0
        %v3936 = vadd.f32 %v3842, %v3935
        %v3937 = vpop.f32.mrf.mxu0
        %3938 = vmatprep.mubr.f32.mxu0 0.0
        %v3939 = vand.u32 %v837, 4294901760
        %3940 = vmatmul.mubr.f32.gmra.mxu0 %v3939
        %v3941 = vpop.f32.mrf.mxu0
        %v3942 = vadd.f32 %v3850, %v3941
        %v3943 = vpop.f32.mrf.mxu0
        %3944 = vdwg.mxu0
        %3945 = vmatprep.subr.mxu0 0.0
        %3946 = vmatpush1.msra.mxu0 0.0
        %3947 = vmatprep.subr.mxu0 0.0
        %3948 = vmatpush1.msra.mxu0 0.0
        %3949 = vmatprep.subr.mxu0 0.0
        %3950 = vmatpush1.msra.mxu0 0.0
        %3951 = vmatprep.subr.mxu0 0.0
        %3952 = vmatpush1.msra.mxu0 0.0
        %3953 = vmatprep.subr.mxu0 0.0
        %3954 = vmatpush1.msra.mxu0 0.0
        %3955 = vmatprep.subr.mxu0 0.0
        %3956 = vmatpush1.msra.mxu0 0.0
        %3957 = vmatprep.subr.mxu0 0.0
        %3958 = vmatpush1.msra.mxu0 0.0
        %3959 = vmatprep.subr.mxu0 0.0
        %3960 = vmatpush1.msra.mxu0 0.0
        %3961 = vmatprep.subr.mxu0 0.0
        %3962 = vmatpush1.msra.mxu0 0.0
        %3963 = vmatprep.subr.mxu0 0.0
        %3964 = vmatpush1.msra.mxu0 0.0
        %3965 = vmatprep.subr.mxu0 0.0
        %3966 = vmatpush1.msra.mxu0 0.0
        %3967 = vmatprep.subr.mxu0 0.0
        %3968 = vmatpush1.msra.mxu0 0.0
        %3969 = vmatprep.subr.mxu0 0.0
        %3970 = vmatpush1.msra.mxu0 0.0
        %3971 = vmatprep.subr.mxu0 0.0
        %3972 = vmatpush1.msra.mxu0 0.0
        %3973 = vmatprep.subr.mxu0 0.0
        %3974 = vmatpush1.msra.mxu0 0.0
        %3975 = vmatprep.subr.mxu0 0.0
        %v3976 = vand.u32 %v3458, 4294901760
        %3977 = vmatpush1.msra.mxu0 %v3976
        %3978 = vmatprep.subr.mxu0 0.0
        %3979 = vmatpush2.msra.mxu0 0.0
        %3980 = vmatprep.subr.mxu0 0.0
        %3981 = vmatpush2.msra.mxu0 0.0
        %3982 = vmatprep.subr.mxu0 0.0
        %3983 = vmatpush2.msra.mxu0 0.0
        %3984 = vmatprep.subr.mxu0 0.0
        %3985 = vmatpush2.msra.mxu0 0.0
        %3986 = vmatprep.subr.mxu0 0.0
        %3987 = vmatpush2.msra.mxu0 0.0
        %3988 = vmatprep.subr.mxu0 0.0
        %3989 = vmatpush2.msra.mxu0 0.0
        %3990 = vmatprep.subr.mxu0 0.0
        %3991 = vmatpush2.msra.mxu0 0.0
        %3992 = vmatprep.subr.mxu0 0.0
        %3993 = vmatpush2.msra.mxu0 0.0
        %3994 = vmatprep.subr.mxu0 0.0
        %3995 = vmatpush2.msra.mxu0 0.0
        %3996 = vmatprep.subr.mxu0 0.0
        %3997 = vmatpush2.msra.mxu0 0.0
        %3998 = vmatprep.subr.mxu0 0.0
        %3999 = vmatpush2.msra.mxu0 0.0
        %4000 = vmatprep.subr.mxu0 0.0
        %4001 = vmatpush2.msra.mxu0 0.0
        %4002 = vmatprep.subr.mxu0 0.0
        %4003 = vmatpush2.msra.mxu0 0.0
        %4004 = vmatprep.subr.mxu0 0.0
        %4005 = vmatpush2.msra.mxu0 0.0
        %4006 = vmatprep.subr.mxu0 0.0
        %4007 = vmatpush2.msra.mxu0 0.0
        %4008 = vmatprep.subr.mxu0 0.0
        %4009 = vmatpush2.msra.mxu0 0.0
        %4010 = vmatprep.mubr.f32.mxu0 0.0
        %v4011 = vand.u32 %v828, 4294901760
        %4012 = vmatmul.mubr.f32.gmra.mxu0 %v4011
        %v4013 = vpop.f32.mrf.mxu0
        %v4014 = vadd.f32 %v3924, %v4013
        %v4015 = vpop.f32.mrf.mxu0
        %4016 = vmatprep.mubr.f32.mxu0 0.0
        %v4017 = vand.u32 %v831, 4294901760
        %4018 = vmatmul.mubr.f32.gmra.mxu0 %v4017
        %v4019 = vpop.f32.mrf.mxu0
        %v4020 = vadd.f32 %v3930, %v4019
        %v4021 = vpop.f32.mrf.mxu0
        %4022 = vmatprep.mubr.f32.mxu0 0.0
        %v4023 = vand.u32 %v834, 4294901760
        %4024 = vmatmul.mubr.f32.gmra.mxu0 %v4023
        %v4025 = vpop.f32.mrf.mxu0
        %v4026 = vadd.f32 %v3936, %v4025
        %v4027 = vpop.f32.mrf.mxu0
        %4028 = vmatprep.mubr.f32.mxu0 0.0
        %v4029 = vand.u32 %v837, 4294901760
        %4030 = vmatmul.mubr.f32.gmra.mxu0 %v4029
        %v4031 = vpop.f32.mrf.mxu0
        %v4032 = vadd.f32 %v3942, %v4031
        %v4033 = vpop.f32.mrf.mxu0
        %4034 = vdwg.mxu0
        %4039 = vrot.lane.b32.xlu0 %v4014, 127
        %v4040 = vpop.permute.xlu0 %4039
        %4041 = vrot.lane.b32.xlu0 %v4020, 127
        %v4042 = vpop.permute.xlu0 %4041
        %4043 = vrot.lane.b32.xlu0 %v4026, 127
        %v4044 = vpop.permute.xlu0 %4043
        %4045 = vrot.lane.b32.xlu0 %v4032, 127
        %v4046 = vpop.permute.xlu0 %4045
        %v4051 = vadd.f32 %v4014, %v4040
        %v4052 = vadd.f32 %v4020, %v4042
        %v4053 = vadd.f32 %v4026, %v4044
        %v4054 = vadd.f32 %v4032, %v4046
        %v4055 = vxor.u32 %v4051, 2147483648
        %v4056 = vxor.u32 %v4052, 2147483648
        %v4057 = vxor.u32 %v4053, 2147483648
        %v4058 = vxor.u32 %v4054, 2147483648
        %v4059 = vmul.f32 %v4055, 1.442695
        %v4060 = vpow.pop %v4059
        %v4061 = vmul.f32 %v4056, 1.442695
        %v4062 = vpow.pop %v4061
        %v4063 = vmul.f32 %v4057, 1.442695
        %v4064 = vpow.pop %v4063
        %v4065 = vmul.f32 %v4058, 1.442695
        %v4066 = vpow.pop %v4065
        %v4067 = vadd.f32 %v4060, 1.0
        %v4068 = vadd.f32 %v4062, 1.0
        %v4069 = vadd.f32 %v4064, 1.0
        %v4070 = vadd.f32 %v4066, 1.0
        %v4071 = vrcp.pop %v4067
        %v4072 = vmul.f32 1.0, %v4071
        %v4073 = vrcp.pop %v4068
        %v4074 = vmul.f32 1.0, %v4073
        %v4075 = vrcp.pop %v4069
        %v4076 = vmul.f32 1.0, %v4075
        %v4077 = vrcp.pop %v4070
        %v4078 = vmul.f32 1.0, %v4077
        %4080 = vset.pattern.permute.xlu0 0
        %4081 = vperm.xlu0 %4080, %v4072
        %v4082 = vpop.permute.xlu0 %4081
        %4085 = vset.pattern.permute.xlu0 0
        %4086 = vperm.xlu0 %4085, %v4074
        %v4087 = vpop.permute.xlu0 %4086
        %4090 = vset.pattern.permute.xlu0 0
        %4091 = vperm.xlu0 %4090, %v4076
        %v4092 = vpop.permute.xlu0 %4091
        %4095 = vset.pattern.permute.xlu0 0
        %4096 = vperm.xlu0 %4095, %v4078
        %v4097 = vpop.permute.xlu0 %4096
        %v4099 = vmul.f32 %v2931, %v4082
        %v4100 = vmul.f32 %v2932, %v4082
        %v4101 = vmul.f32 %v2933, %v4087
        %v4102 = vmul.f32 %v2934, %v4087
        %v4103 = vmul.f32 %v2935, %v4092
        %v4104 = vmul.f32 %v2936, %v4092
        %v4105 = vmul.f32 %v2937, %v4097
        %v4106 = vmul.f32 %v2938, %v4097
        %v4107 = vadd.f32 %v4099, %v4101
        %v4108 = vadd.f32 %v4107, %v4103
        %v4109 = vadd.f32 %v4108, %v4105
        %v4110 = vrot.slane %v4109, 4
        %v4111 = vadd.f32 %v4109, %v4110
        %v4112 = vrot.slane %v4111, 2
        %v4113 = vadd.f32 %v4111, %v4112
        %v4114 = vrot.slane %v4113, 1
        %v4115 = vadd.f32 %v4113, %v4114
        %v4116 = vadd.f32 %v4100, %v4102
        %v4117 = vadd.f32 %v4116, %v4104
        %v4118 = vadd.f32 %v4117, %v4106
        %v4119 = vrot.slane %v4118, 4
        %v4120 = vadd.f32 %v4118, %v4119
        %v4121 = vrot.slane %v4120, 2
        %v4122 = vadd.f32 %v4120, %v4121
        %v4123 = vrot.slane %v4122, 1
        %v4124 = vadd.f32 %v4122, %v4123
        %v4125 = vmul.f32 %v4115, 0.03125
        %v4126 = vmul.f32 %v4124, 0.03125
        %v4127 = vmax.f32 %v4099, %v4103
        %v4128 = vmax.f32 %v4101, %v4105
        %v4129 = vmax.f32 %v4127, %v4128
        %v4130 = vrot.slane %v4129, 4
        %v4131 = vmax.f32 %v4129, %v4130
        %v4132 = vrot.slane %v4131, 2
        %v4133 = vmax.f32 %v4131, %v4132
        %v4134 = vrot.slane %v4133, 1
        %v4135 = vmax.f32 %v4133, %v4134
        %v4136 = vmax.f32 %v4100, %v4104
        %v4137 = vmax.f32 %v4102, %v4106
        %v4138 = vmax.f32 %v4136, %v4137
        %v4139 = vrot.slane %v4138, 4
        %v4140 = vmax.f32 %v4138, %v4139
        %v4141 = vrot.slane %v4140, 2
        %v4142 = vmax.f32 %v4140, %v4141
        %v4143 = vrot.slane %v4142, 1
        %v4144 = vmax.f32 %v4142, %v4143
        %v4145 = vsel %vm1528, %v4125, %v4135
        %v4146 = vsel %vm1528, %v4126, %v4144
        %v4147 = vmul.f32 %v1534, %v4145
        %v4148 = vmul.f32 %v1534, %v4146
        %v4149 = vmul.f32 %v1541, %v4145
        %v4150 = vmul.f32 %v1541, %v4146
        %4153 = vrot.lane.b32.xlu0 %v4149, 112
        %v4154 = vpop.permute.xlu0 %4153
        %4155 = vrot.lane.b32.xlu0 %v4150, 112
        %v4156 = vpop.permute.xlu0 %4155
        %v4157 = vsel %vm1555, %v1550, %v4154
        %v4158 = vsel %vm1555, %v4154, %v4156
        %v4162 = vadd.f32 %v1536, %v4157
        %v4163 = vadd.f32 %v4147, %v4158
        %v4164 = vadd.f32 %v4148, %v4156
        %v4165 = vmul.f32 %v1566, %v4145
        %v4166 = vmul.f32 %v1566, %v4146
        %4169 = vrot.lane.b32.xlu0 %v4165, 96
        %v4170 = vpop.permute.xlu0 %4169
        %4171 = vrot.lane.b32.xlu0 %v4166, 96
        %v4172 = vpop.permute.xlu0 %4171
        %v4173 = vsel %vm1580, %v1575, %v4170
        %v4174 = vsel %vm1580, %v4170, %v4172
        %v4178 = vadd.f32 %v4162, %v4173
        %v4179 = vadd.f32 %v4163, %v4174
        %v4180 = vadd.f32 %v4164, %v4172
        %v4181 = vmul.f32 %v1591, %v4145
        %v4182 = vmul.f32 %v1591, %v4146
        %4185 = vrot.lane.b32.xlu0 %v4181, 80
        %v4186 = vpop.permute.xlu0 %4185
        %4187 = vrot.lane.b32.xlu0 %v4182, 80
        %v4188 = vpop.permute.xlu0 %4187
        %v4189 = vsel %vm1605, %v1600, %v4186
        %v4190 = vsel %vm1605, %v4186, %v4188
        %v4194 = vadd.f32 %v4178, %v4189
        %v4195 = vadd.f32 %v4179, %v4190
        %v4196 = vadd.f32 %v4180, %v4188
        %v4197 = vmul.f32 %v1616, %v4145
        %v4198 = vmul.f32 %v1616, %v4146
        %4201 = vrot.lane.b32.xlu0 %v4197, 64
        %v4202 = vpop.permute.xlu0 %4201
        %4203 = vrot.lane.b32.xlu0 %v4198, 64
        %v4204 = vpop.permute.xlu0 %4203
        %v4205 = vsel %vm1630, %v4202, %v4204
        %v4206 = vsel %vm1630, %v4204, %v1629
        %v4210 = vadd.f32 %v4194, %v4202
        %v4211 = vadd.f32 %v4195, %v4205
        %v4212 = vadd.f32 %v4196, %v4206
        %v4213 = vmul.f32 %v1641, %v4145
        %v4214 = vmul.f32 %v1641, %v4146
        %4217 = vrot.lane.b32.xlu0 %v4213, 48
        %v4218 = vpop.permute.xlu0 %4217
        %4219 = vrot.lane.b32.xlu0 %v4214, 48
        %v4220 = vpop.permute.xlu0 %4219
        %v4221 = vsel %vm1655, %v4218, %v4220
        %v4222 = vsel %vm1655, %v4220, %v1654
        %v4226 = vadd.f32 %v4210, %v4218
        %v4227 = vadd.f32 %v4211, %v4221
        %v4228 = vadd.f32 %v4212, %v4222
        %v4229 = vmul.f32 %v1666, %v4145
        %v4230 = vmul.f32 %v1666, %v4146
        %4233 = vrot.lane.b32.xlu0 %v4229, 32
        %v4234 = vpop.permute.xlu0 %4233
        %4235 = vrot.lane.b32.xlu0 %v4230, 32
        %v4236 = vpop.permute.xlu0 %4235
        %v4237 = vsel %vm336, %v4234, %v4236
        %v4238 = vsel %vm336, %v4236, %v1679
        %v4242 = vadd.f32 %v4226, %v4234
        %v4243 = vadd.f32 %v4227, %v4237
        %v4244 = vadd.f32 %v4228, %v4238
        %v4245 = vld [vmem:[%s4] ss:$8 sm:$0x3]
        %v4247 = vlaneseq
        %v4248 = vshrl.u32 %v4247, 7
        %v4249 = vsub.s32 0, %v4248
        %v4250 = vrot.slane %v4245, %v4249
        %v4251 = vlaneseq
        %v4252 = vshrl.u32 %v4251, 7
        %v4253 = vsub.s32 1, %v4252
        %v4254 = vrot.slane %v4245, %v4253
        %4255 = vrot.lane.b32.xlu0 %v4250, 77
        %v4256 = vpop.permute.xlu0 %4255
        %4257 = vrot.lane.b32.xlu0 %v4254, 77
        %v4258 = vpop.permute.xlu0 %4257
        %v4259 = vsel %vm1702, %v4256, %v4258
        %v4263 = vmul.f32 %v4242, %v4256
        %v4264 = vmul.f32 %v4243, %v4259
        %v4265 = vmul.f32 %v4244, %v4258
        %v4266 = vadd.f32 %v4263, 0.0
        %v4267 = vadd.f32 %v4264, 0.0
        %v4268 = vadd.f32 %v4265, 0.0
        %v4269 = vmul.f32 %v1715, %v4145
        %v4270 = vmul.f32 %v1715, %v4146
        %v4271 = vmul.f32 %v1722, %v4145
        %v4272 = vmul.f32 %v1722, %v4146
        %4275 = vrot.lane.b32.xlu0 %v4271, 112
        %v4276 = vpop.permute.xlu0 %4275
        %4277 = vrot.lane.b32.xlu0 %v4272, 112
        %v4278 = vpop.permute.xlu0 %4277
        %v4279 = vsel %vm1555, %v1731, %v4276
        %v4280 = vsel %vm1555, %v4276, %v4278
        %v4284 = vadd.f32 %v1717, %v4279
        %v4285 = vadd.f32 %v4269, %v4280
        %v4286 = vadd.f32 %v4270, %v4278
        %v4287 = vmul.f32 %v1746, %v4145
        %v4288 = vmul.f32 %v1746, %v4146
        %4291 = vrot.lane.b32.xlu0 %v4287, 96
        %v4292 = vpop.permute.xlu0 %4291
        %4293 = vrot.lane.b32.xlu0 %v4288, 96
        %v4294 = vpop.permute.xlu0 %4293
        %v4295 = vsel %vm1580, %v1755, %v4292
        %v4296 = vsel %vm1580, %v4292, %v4294
        %v4300 = vadd.f32 %v4284, %v4295
        %v4301 = vadd.f32 %v4285, %v4296
        %v4302 = vadd.f32 %v4286, %v4294
        %v4303 = vmul.f32 %v1770, %v4145
        %v4304 = vmul.f32 %v1770, %v4146
        %4307 = vrot.lane.b32.xlu0 %v4303, 80
        %v4308 = vpop.permute.xlu0 %4307
        %4309 = vrot.lane.b32.xlu0 %v4304, 80
        %v4310 = vpop.permute.xlu0 %4309
        %v4311 = vsel %vm1605, %v1779, %v4308
        %v4312 = vsel %vm1605, %v4308, %v4310
        %v4316 = vadd.f32 %v4300, %v4311
        %v4317 = vadd.f32 %v4301, %v4312
        %v4318 = vadd.f32 %v4302, %v4310
        %v4319 = vmul.f32 %v1794, %v4145
        %v4320 = vmul.f32 %v1794, %v4146
        %4323 = vrot.lane.b32.xlu0 %v4319, 64
        %v4324 = vpop.permute.xlu0 %4323
        %4325 = vrot.lane.b32.xlu0 %v4320, 64
        %v4326 = vpop.permute.xlu0 %4325
        %v4327 = vsel %vm1630, %v4324, %v4326
        %v4328 = vsel %vm1630, %v4326, %v1807
        %v4332 = vadd.f32 %v4316, %v4324
        %v4333 = vadd.f32 %v4317, %v4327
        %v4334 = vadd.f32 %v4318, %v4328
        %v4335 = vmul.f32 %v1818, %v4145
        %v4336 = vmul.f32 %v1818, %v4146
        %4339 = vrot.lane.b32.xlu0 %v4335, 48
        %v4340 = vpop.permute.xlu0 %4339
        %4341 = vrot.lane.b32.xlu0 %v4336, 48
        %v4342 = vpop.permute.xlu0 %4341
        %v4343 = vsel %vm1655, %v4340, %v4342
        %v4344 = vsel %vm1655, %v4342, %v1831
        %v4348 = vadd.f32 %v4332, %v4340
        %v4349 = vadd.f32 %v4333, %v4343
        %v4350 = vadd.f32 %v4334, %v4344
        %v4351 = vmul.f32 %v1842, %v4145
        %v4352 = vmul.f32 %v1842, %v4146
        %4355 = vrot.lane.b32.xlu0 %v4351, 32
        %v4356 = vpop.permute.xlu0 %4355
        %4357 = vrot.lane.b32.xlu0 %v4352, 32
        %v4358 = vpop.permute.xlu0 %4357
        %v4359 = vsel %vm336, %v4356, %v4358
        %v4360 = vsel %vm336, %v4358, %v1855
        %v4364 = vadd.f32 %v4348, %v4356
        %v4365 = vadd.f32 %v4349, %v4359
        %v4366 = vadd.f32 %v4350, %v4360
        %v4367 = vld [vmem:[%s1864] ss:$8 sm:$0x3]
        %v4369 = vlaneseq
        %v4370 = vshrl.u32 %v4369, 7
        %v4371 = vsub.s32 0, %v4370
        %v4372 = vrot.slane %v4367, %v4371
        %v4373 = vlaneseq
        %v4374 = vshrl.u32 %v4373, 7
        %v4375 = vsub.s32 1, %v4374
        %v4376 = vrot.slane %v4367, %v4375
        %4377 = vrot.lane.b32.xlu0 %v4372, 78
        %v4378 = vpop.permute.xlu0 %4377
        %4379 = vrot.lane.b32.xlu0 %v4376, 78
        %v4380 = vpop.permute.xlu0 %4379
        %v4381 = vsel %vm1879, %v4378, %v4380
        %v4385 = vmul.f32 %v4364, %v4378
        %v4386 = vmul.f32 %v4365, %v4381
        %v4387 = vmul.f32 %v4366, %v4380
        %v4388 = vadd.f32 %v4385, 0.0
        %v4389 = vadd.f32 %v4386, 0.0
        %v4390 = vadd.f32 %v4387, 0.0
        %v4391 = vmul.f32 %v1892, %v4145
        %v4392 = vmul.f32 %v1892, %v4146
        %v4393 = vmul.f32 %v1899, %v4145
        %v4394 = vmul.f32 %v1899, %v4146
        %4397 = vrot.lane.b32.xlu0 %v4393, 112
        %v4398 = vpop.permute.xlu0 %4397
        %4399 = vrot.lane.b32.xlu0 %v4394, 112
        %v4400 = vpop.permute.xlu0 %4399
        %v4401 = vsel %vm1555, %v1908, %v4398
        %v4402 = vsel %vm1555, %v4398, %v4400
        %v4406 = vadd.f32 %v1894, %v4401
        %v4407 = vadd.f32 %v4391, %v4402
        %v4408 = vadd.f32 %v4392, %v4400
        %v4409 = vmul.f32 %v1923, %v4145
        %v4410 = vmul.f32 %v1923, %v4146
        %4413 = vrot.lane.b32.xlu0 %v4409, 96
        %v4414 = vpop.permute.xlu0 %4413
        %4415 = vrot.lane.b32.xlu0 %v4410, 96
        %v4416 = vpop.permute.xlu0 %4415
        %v4417 = vsel %vm1580, %v1932, %v4414
        %v4418 = vsel %vm1580, %v4414, %v4416
        %v4422 = vadd.f32 %v4406, %v4417
        %v4423 = vadd.f32 %v4407, %v4418
        %v4424 = vadd.f32 %v4408, %v4416
        %v4425 = vmul.f32 %v1947, %v4145
        %v4426 = vmul.f32 %v1947, %v4146
        %4429 = vrot.lane.b32.xlu0 %v4425, 80
        %v4430 = vpop.permute.xlu0 %4429
        %4431 = vrot.lane.b32.xlu0 %v4426, 80
        %v4432 = vpop.permute.xlu0 %4431
        %v4433 = vsel %vm1605, %v1956, %v4430
        %v4434 = vsel %vm1605, %v4430, %v4432
        %v4438 = vadd.f32 %v4422, %v4433
        %v4439 = vadd.f32 %v4423, %v4434
        %v4440 = vadd.f32 %v4424, %v4432
        %v4441 = vmul.f32 %v1971, %v4145
        %v4442 = vmul.f32 %v1971, %v4146
        %4445 = vrot.lane.b32.xlu0 %v4441, 64
        %v4446 = vpop.permute.xlu0 %4445
        %4447 = vrot.lane.b32.xlu0 %v4442, 64
        %v4448 = vpop.permute.xlu0 %4447
        %v4449 = vsel %vm1630, %v4446, %v4448
        %v4450 = vsel %vm1630, %v4448, %v1984
        %v4454 = vadd.f32 %v4438, %v4446
        %v4455 = vadd.f32 %v4439, %v4449
        %v4456 = vadd.f32 %v4440, %v4450
        %v4457 = vmul.f32 %v1995, %v4145
        %v4458 = vmul.f32 %v1995, %v4146
        %4461 = vrot.lane.b32.xlu0 %v4457, 48
        %v4462 = vpop.permute.xlu0 %4461
        %4463 = vrot.lane.b32.xlu0 %v4458, 48
        %v4464 = vpop.permute.xlu0 %4463
        %v4465 = vsel %vm1655, %v4462, %v4464
        %v4466 = vsel %vm1655, %v4464, %v2008
        %v4470 = vadd.f32 %v4454, %v4462
        %v4471 = vadd.f32 %v4455, %v4465
        %v4472 = vadd.f32 %v4456, %v4466
        %v4473 = vmul.f32 %v2019, %v4145
        %v4474 = vmul.f32 %v2019, %v4146
        %4477 = vrot.lane.b32.xlu0 %v4473, 32
        %v4478 = vpop.permute.xlu0 %4477
        %4479 = vrot.lane.b32.xlu0 %v4474, 32
        %v4480 = vpop.permute.xlu0 %4479
        %v4481 = vsel %vm336, %v4478, %v4480
        %v4482 = vsel %vm336, %v4480, %v2032
        %v4486 = vadd.f32 %v4470, %v4478
        %v4487 = vadd.f32 %v4471, %v4481
        %v4488 = vadd.f32 %v4472, %v4482
        %v4489 = vld [vmem:[%s2041] ss:$8 sm:$0x3]
        %v4491 = vlaneseq
        %v4492 = vshrl.u32 %v4491, 7
        %v4493 = vsub.s32 0, %v4492
        %v4494 = vrot.slane %v4489, %v4493
        %v4495 = vlaneseq
        %v4496 = vshrl.u32 %v4495, 7
        %v4497 = vsub.s32 1, %v4496
        %v4498 = vrot.slane %v4489, %v4497
        %4499 = vrot.lane.b32.xlu0 %v4494, 79
        %v4500 = vpop.permute.xlu0 %4499
        %4501 = vrot.lane.b32.xlu0 %v4498, 79
        %v4502 = vpop.permute.xlu0 %4501
        %v4503 = vsel %vm2056, %v4500, %v4502
        %v4507 = vmul.f32 %v4486, %v4500
        %v4508 = vmul.f32 %v4487, %v4503
        %v4509 = vmul.f32 %v4488, %v4502
        %4513 = vrot.lane.b32.xlu0 %v4507, 126
        %v4514 = vpop.permute.xlu0 %4513
        %4515 = vrot.lane.b32.xlu0 %v4508, 126
        %v4516 = vpop.permute.xlu0 %4515
        %4517 = vrot.lane.b32.xlu0 %v4509, 126
        %v4518 = vpop.permute.xlu0 %4517
        %v4519 = vsel %vm2073, %v4514, %v4516
        %v4520 = vsel %vm2073, %v4516, %v4518
        %v4524 = vadd.f32 %v4266, %v4519
        %v4525 = vadd.f32 %v4267, %v4520
        %v4526 = vadd.f32 %v4268, %v4518
        %v4527 = vmul.f32 %v2084, %v4145
        %v4528 = vmul.f32 %v2084, %v4146
        %v4529 = vmul.f32 %v2091, %v4145
        %v4530 = vmul.f32 %v2091, %v4146
        %4533 = vrot.lane.b32.xlu0 %v4529, 112
        %v4534 = vpop.permute.xlu0 %4533
        %4535 = vrot.lane.b32.xlu0 %v4530, 112
        %v4536 = vpop.permute.xlu0 %4535
        %v4537 = vsel %vm1555, %v2100, %v4534
        %v4538 = vsel %vm1555, %v4534, %v4536
        %v4542 = vadd.f32 %v2086, %v4537
        %v4543 = vadd.f32 %v4527, %v4538
        %v4544 = vadd.f32 %v4528, %v4536
        %v4545 = vmul.f32 %v2115, %v4145
        %v4546 = vmul.f32 %v2115, %v4146
        %4549 = vrot.lane.b32.xlu0 %v4545, 96
        %v4550 = vpop.permute.xlu0 %4549
        %4551 = vrot.lane.b32.xlu0 %v4546, 96
        %v4552 = vpop.permute.xlu0 %4551
        %v4553 = vsel %vm1580, %v2124, %v4550
        %v4554 = vsel %vm1580, %v4550, %v4552
        %v4558 = vadd.f32 %v4542, %v4553
        %v4559 = vadd.f32 %v4543, %v4554
        %v4560 = vadd.f32 %v4544, %v4552
        %v4561 = vmul.f32 %v2139, %v4145
        %v4562 = vmul.f32 %v2139, %v4146
        %4565 = vrot.lane.b32.xlu0 %v4561, 80
        %v4566 = vpop.permute.xlu0 %4565
        %4567 = vrot.lane.b32.xlu0 %v4562, 80
        %v4568 = vpop.permute.xlu0 %4567
        %v4569 = vsel %vm1605, %v4566, %v4568
        %v4573 = vadd.f32 %v4558, %v4566
        %v4574 = vadd.f32 %v4559, %v4569
        %v4575 = vadd.f32 %v4560, %v4568
        %v4576 = vmul.f32 %v2158, %v4145
        %v4577 = vmul.f32 %v2158, %v4146
        %4580 = vrot.lane.b32.xlu0 %v4576, 64
        %v4581 = vpop.permute.xlu0 %4580
        %4582 = vrot.lane.b32.xlu0 %v4577, 64
        %v4583 = vpop.permute.xlu0 %4582
        %v4584 = vsel %vm1630, %v4581, %v4583
        %v4585 = vsel %vm1630, %v4583, %v2171
        %v4589 = vadd.f32 %v4573, %v4581
        %v4590 = vadd.f32 %v4574, %v4584
        %v4591 = vadd.f32 %v4575, %v4585
        %v4592 = vmul.f32 %v2182, %v4145
        %v4593 = vmul.f32 %v2182, %v4146
        %4596 = vrot.lane.b32.xlu0 %v4592, 48
        %v4597 = vpop.permute.xlu0 %4596
        %4598 = vrot.lane.b32.xlu0 %v4593, 48
        %v4599 = vpop.permute.xlu0 %4598
        %v4600 = vsel %vm1655, %v4597, %v4599
        %v4601 = vsel %vm1655, %v4599, %v2195
        %v4605 = vadd.f32 %v4589, %v4597
        %v4606 = vadd.f32 %v4590, %v4600
        %v4607 = vadd.f32 %v4591, %v4601
        %v4608 = vmul.f32 %v2206, %v4145
        %v4609 = vmul.f32 %v2206, %v4146
        %4612 = vrot.lane.b32.xlu0 %v4608, 32
        %v4613 = vpop.permute.xlu0 %4612
        %4614 = vrot.lane.b32.xlu0 %v4609, 32
        %v4615 = vpop.permute.xlu0 %4614
        %v4616 = vsel %vm336, %v4613, %v4615
        %v4617 = vsel %vm336, %v4615, %v2219
        %v4621 = vadd.f32 %v4605, %v4613
        %v4622 = vadd.f32 %v4606, %v4616
        %v4623 = vadd.f32 %v4607, %v4617
        %4627 = vrot.lane.b32.xlu0 %v4621, 126
        %v4628 = vpop.permute.xlu0 %4627
        %4629 = vrot.lane.b32.xlu0 %v4622, 126
        %v4630 = vpop.permute.xlu0 %4629
        %4631 = vrot.lane.b32.xlu0 %v4623, 126
        %v4632 = vpop.permute.xlu0 %4631
        %v4633 = vsel %vm2073, %v4628, %v4630
        %v4634 = vsel %vm2073, %v4630, %v4632
        %v4638 = vadd.f32 %v4388, %v4633
        %v4639 = vadd.f32 %v4389, %v4634
        %v4640 = vadd.f32 %v4390, %v4632
        %v4641 = vmul.f32 %v2247, %v4145
        %v4642 = vmul.f32 %v2247, %v4146
        %v4643 = vmul.f32 %v2254, %v4145
        %v4644 = vmul.f32 %v2254, %v4146
        %4647 = vrot.lane.b32.xlu0 %v4643, 112
        %v4648 = vpop.permute.xlu0 %4647
        %4649 = vrot.lane.b32.xlu0 %v4644, 112
        %v4650 = vpop.permute.xlu0 %4649
        %v4651 = vsel %vm1555, %v2263, %v4648
        %v4652 = vsel %vm1555, %v4648, %v4650
        %v4656 = vadd.f32 %v2249, %v4651
        %v4657 = vadd.f32 %v4641, %v4652
        %v4658 = vadd.f32 %v4642, %v4650
        %v4659 = vmul.f32 %v2278, %v4145
        %v4660 = vmul.f32 %v2278, %v4146
        %4663 = vrot.lane.b32.xlu0 %v4659, 96
        %v4664 = vpop.permute.xlu0 %4663
        %4665 = vrot.lane.b32.xlu0 %v4660, 96
        %v4666 = vpop.permute.xlu0 %4665
        %v4667 = vsel %vm1580, %v2287, %v4664
        %v4668 = vsel %vm1580, %v4664, %v4666
        %v4672 = vadd.f32 %v4656, %v4667
        %v4673 = vadd.f32 %v4657, %v4668
        %v4674 = vadd.f32 %v4658, %v4666
        %v4675 = vmul.f32 %v2302, %v4145
        %v4676 = vmul.f32 %v2302, %v4146
        %4679 = vrot.lane.b32.xlu0 %v4675, 80
        %v4680 = vpop.permute.xlu0 %4679
        %4681 = vrot.lane.b32.xlu0 %v4676, 80
        %v4682 = vpop.permute.xlu0 %4681
        %v4683 = vsel %vm1605, %v4680, %v4682
        %v4684 = vsel %vm1605, %v4682, %v2315
        %v4688 = vadd.f32 %v4672, %v4680
        %v4689 = vadd.f32 %v4673, %v4683
        %v4690 = vadd.f32 %v4674, %v4684
        %v4691 = vmul.f32 %v2326, %v4145
        %v4692 = vmul.f32 %v2326, %v4146
        %4695 = vrot.lane.b32.xlu0 %v4691, 64
        %v4696 = vpop.permute.xlu0 %4695
        %4697 = vrot.lane.b32.xlu0 %v4692, 64
        %v4698 = vpop.permute.xlu0 %4697
        %v4699 = vsel %vm1630, %v4696, %v4698
        %v4700 = vsel %vm1630, %v4698, %v2339
        %v4704 = vadd.f32 %v4688, %v4696
        %v4705 = vadd.f32 %v4689, %v4699
        %v4706 = vadd.f32 %v4690, %v4700
        %v4707 = vmul.f32 %v2350, %v4145
        %v4708 = vmul.f32 %v2350, %v4146
        %4711 = vrot.lane.b32.xlu0 %v4707, 48
        %v4712 = vpop.permute.xlu0 %4711
        %4713 = vrot.lane.b32.xlu0 %v4708, 48
        %v4714 = vpop.permute.xlu0 %4713
        %v4715 = vsel %vm1655, %v4712, %v4714
        %v4716 = vsel %vm1655, %v4714, %v2363
        %v4720 = vadd.f32 %v4704, %v4712
        %v4721 = vadd.f32 %v4705, %v4715
        %v4722 = vadd.f32 %v4706, %v4716
        %v4723 = vmul.f32 %v2374, %v4145
        %v4724 = vmul.f32 %v2374, %v4146
        %4727 = vrot.lane.b32.xlu0 %v4723, 32
        %v4728 = vpop.permute.xlu0 %4727
        %4729 = vrot.lane.b32.xlu0 %v4724, 32
        %v4730 = vpop.permute.xlu0 %4729
        %v4731 = vsel %vm336, %v4728, %v4730
        %v4732 = vsel %vm336, %v4730, %v2387
        %v4736 = vadd.f32 %v4720, %v4728
        %v4737 = vadd.f32 %v4721, %v4731
        %v4738 = vadd.f32 %v4722, %v4732
        %v4739 = vld [vmem:[%s2396] ss:$8 sm:$0x3]
        %v4741 = vlaneseq
        %v4742 = vshrl.u32 %v4741, 7
        %v4743 = vsub.s32 0, %v4742
        %v4744 = vrot.slane %v4739, %v4743
        %v4745 = vlaneseq
        %v4746 = vshrl.u32 %v4745, 7
        %v4747 = vsub.s32 1, %v4746
        %v4748 = vrot.slane %v4739, %v4747
        %4749 = vrot.lane.b32.xlu0 %v4744, 81
        %v4750 = vpop.permute.xlu0 %4749
        %4751 = vrot.lane.b32.xlu0 %v4748, 81
        %v4752 = vpop.permute.xlu0 %4751
        %v4753 = vsel %vm2411, %v4750, %v4752
        %v4757 = vmul.f32 %v4736, %v4750
        %v4758 = vmul.f32 %v4737, %v4753
        %v4759 = vmul.f32 %v4738, %v4752
        %4763 = vrot.lane.b32.xlu0 %v4757, 124
        %v4764 = vpop.permute.xlu0 %4763
        %4765 = vrot.lane.b32.xlu0 %v4758, 124
        %v4766 = vpop.permute.xlu0 %4765
        %4767 = vrot.lane.b32.xlu0 %v4759, 124
        %v4768 = vpop.permute.xlu0 %4767
        %v4769 = vsel %vm2428, %v4764, %v4766
        %v4770 = vsel %vm2428, %v4766, %v4768
        %v4774 = vadd.f32 %v4524, %v4769
        %v4775 = vadd.f32 %v4525, %v4770
        %v4776 = vadd.f32 %v4526, %v4768
        %v4777 = vmul.f32 %v2439, %v4145
        %v4778 = vmul.f32 %v2439, %v4146
        %v4779 = vmul.f32 %v2446, %v4145
        %v4780 = vmul.f32 %v2446, %v4146
        %4783 = vrot.lane.b32.xlu0 %v4779, 112
        %v4784 = vpop.permute.xlu0 %4783
        %4785 = vrot.lane.b32.xlu0 %v4780, 112
        %v4786 = vpop.permute.xlu0 %4785
        %v4787 = vsel %vm1555, %v2455, %v4784
        %v4788 = vsel %vm1555, %v4784, %v4786
        %v4792 = vadd.f32 %v2441, %v4787
        %v4793 = vadd.f32 %v4777, %v4788
        %v4794 = vadd.f32 %v4778, %v4786
        %v4795 = vmul.f32 %v2470, %v4145
        %v4796 = vmul.f32 %v2470, %v4146
        %4799 = vrot.lane.b32.xlu0 %v4795, 96
        %v4800 = vpop.permute.xlu0 %4799
        %4801 = vrot.lane.b32.xlu0 %v4796, 96
        %v4802 = vpop.permute.xlu0 %4801
        %v4803 = vsel %vm1580, %v2479, %v4800
        %v4804 = vsel %vm1580, %v4800, %v4802
        %v4808 = vadd.f32 %v4792, %v4803
        %v4809 = vadd.f32 %v4793, %v4804
        %v4810 = vadd.f32 %v4794, %v4802
        %v4811 = vmul.f32 %v2494, %v4145
        %v4812 = vmul.f32 %v2494, %v4146
        %4815 = vrot.lane.b32.xlu0 %v4811, 80
        %v4816 = vpop.permute.xlu0 %4815
        %4817 = vrot.lane.b32.xlu0 %v4812, 80
        %v4818 = vpop.permute.xlu0 %4817
        %v4819 = vsel %vm1605, %v4816, %v4818
        %v4820 = vsel %vm1605, %v4818, %v2507
        %v4824 = vadd.f32 %v4808, %v4816
        %v4825 = vadd.f32 %v4809, %v4819
        %v4826 = vadd.f32 %v4810, %v4820
        %v4827 = vmul.f32 %v2518, %v4145
        %v4828 = vmul.f32 %v2518, %v4146
        %4831 = vrot.lane.b32.xlu0 %v4827, 64
        %v4832 = vpop.permute.xlu0 %4831
        %4833 = vrot.lane.b32.xlu0 %v4828, 64
        %v4834 = vpop.permute.xlu0 %4833
        %v4835 = vsel %vm1630, %v4832, %v4834
        %v4836 = vsel %vm1630, %v4834, %v2531
        %v4840 = vadd.f32 %v4824, %v4832
        %v4841 = vadd.f32 %v4825, %v4835
        %v4842 = vadd.f32 %v4826, %v4836
        %v4843 = vmul.f32 %v2542, %v4145
        %v4844 = vmul.f32 %v2542, %v4146
        %4847 = vrot.lane.b32.xlu0 %v4843, 48
        %v4848 = vpop.permute.xlu0 %4847
        %4849 = vrot.lane.b32.xlu0 %v4844, 48
        %v4850 = vpop.permute.xlu0 %4849
        %v4851 = vsel %vm1655, %v4848, %v4850
        %v4852 = vsel %vm1655, %v4850, %v2555
        %v4856 = vadd.f32 %v4840, %v4848
        %v4857 = vadd.f32 %v4841, %v4851
        %v4858 = vadd.f32 %v4842, %v4852
        %v4859 = vmul.f32 %v2566, %v4145
        %v4860 = vmul.f32 %v2566, %v4146
        %4863 = vrot.lane.b32.xlu0 %v4859, 32
        %v4864 = vpop.permute.xlu0 %4863
        %4865 = vrot.lane.b32.xlu0 %v4860, 32
        %v4866 = vpop.permute.xlu0 %4865
        %v4867 = vsel %vm336, %v4864, %v4866
        %v4868 = vsel %vm336, %v4866, %v2579
        %v4872 = vadd.f32 %v4856, %v4864
        %v4873 = vadd.f32 %v4857, %v4867
        %v4874 = vadd.f32 %v4858, %v4868
        %v4875 = vld [vmem:[%s2588] ss:$8 sm:$0x3]
        %v4877 = vlaneseq
        %v4878 = vshrl.u32 %v4877, 7
        %v4879 = vsub.s32 0, %v4878
        %v4880 = vrot.slane %v4875, %v4879
        %v4881 = vlaneseq
        %v4882 = vshrl.u32 %v4881, 7
        %v4883 = vsub.s32 1, %v4882
        %v4884 = vrot.slane %v4875, %v4883
        %4885 = vrot.lane.b32.xlu0 %v4880, 82
        %v4886 = vpop.permute.xlu0 %4885
        %4887 = vrot.lane.b32.xlu0 %v4884, 82
        %v4888 = vpop.permute.xlu0 %4887
        %v4889 = vsel %vm2603, %v4886, %v4888
        %v4893 = vmul.f32 %v4872, %v4886
        %v4894 = vmul.f32 %v4873, %v4889
        %v4895 = vmul.f32 %v4874, %v4888
        %4899 = vrot.lane.b32.xlu0 %v4893, 124
        %v4900 = vpop.permute.xlu0 %4899
        %4901 = vrot.lane.b32.xlu0 %v4894, 124
        %v4902 = vpop.permute.xlu0 %4901
        %4903 = vrot.lane.b32.xlu0 %v4895, 124
        %v4904 = vpop.permute.xlu0 %4903
        %v4905 = vsel %vm2428, %v4900, %v4902
        %v4906 = vsel %vm2428, %v4902, %v4904
        %v4910 = vadd.f32 %v4638, %v4905
        %v4911 = vadd.f32 %v4639, %v4906
        %v4912 = vadd.f32 %v4640, %v4904
        %v4913 = vmul.f32 %v2630, %v4145
        %v4914 = vmul.f32 %v2630, %v4146
        %v4915 = vmul.f32 %v2637, %v4145
        %v4916 = vmul.f32 %v2637, %v4146
        %4919 = vrot.lane.b32.xlu0 %v4915, 112
        %v4920 = vpop.permute.xlu0 %4919
        %4921 = vrot.lane.b32.xlu0 %v4916, 112
        %v4922 = vpop.permute.xlu0 %4921
        %v4923 = vsel %vm1555, %v2646, %v4920
        %v4924 = vsel %vm1555, %v4920, %v4922
        %v4928 = vadd.f32 %v2632, %v4923
        %v4929 = vadd.f32 %v4913, %v4924
        %v4930 = vadd.f32 %v4914, %v4922
        %v4931 = vmul.f32 %v2661, %v4145
        %v4932 = vmul.f32 %v2661, %v4146
        %4935 = vrot.lane.b32.xlu0 %v4931, 96
        %v4936 = vpop.permute.xlu0 %4935
        %4937 = vrot.lane.b32.xlu0 %v4932, 96
        %v4938 = vpop.permute.xlu0 %4937
        %v4939 = vsel %vm1580, %v2670, %v4936
        %v4940 = vsel %vm1580, %v4936, %v4938
        %v4944 = vadd.f32 %v4928, %v4939
        %v4945 = vadd.f32 %v4929, %v4940
        %v4946 = vadd.f32 %v4930, %v4938
        %v4947 = vmul.f32 %v2685, %v4145
        %v4948 = vmul.f32 %v2685, %v4146
        %4951 = vrot.lane.b32.xlu0 %v4947, 80
        %v4952 = vpop.permute.xlu0 %4951
        %4953 = vrot.lane.b32.xlu0 %v4948, 80
        %v4954 = vpop.permute.xlu0 %4953
        %v4955 = vsel %vm1605, %v4952, %v4954
        %v4956 = vsel %vm1605, %v4954, %v2698
        %v4960 = vadd.f32 %v4944, %v4952
        %v4961 = vadd.f32 %v4945, %v4955
        %v4962 = vadd.f32 %v4946, %v4956
        %v4963 = vmul.f32 %v2709, %v4145
        %v4964 = vmul.f32 %v2709, %v4146
        %4967 = vrot.lane.b32.xlu0 %v4963, 64
        %v4968 = vpop.permute.xlu0 %4967
        %4969 = vrot.lane.b32.xlu0 %v4964, 64
        %v4970 = vpop.permute.xlu0 %4969
        %v4971 = vsel %vm1630, %v4968, %v4970
        %v4972 = vsel %vm1630, %v4970, %v2722
        %v4976 = vadd.f32 %v4960, %v4968
        %v4977 = vadd.f32 %v4961, %v4971
        %v4978 = vadd.f32 %v4962, %v4972
        %v4979 = vmul.f32 %v2733, %v4145
        %v4980 = vmul.f32 %v2733, %v4146
        %4983 = vrot.lane.b32.xlu0 %v4979, 48
        %v4984 = vpop.permute.xlu0 %4983
        %4985 = vrot.lane.b32.xlu0 %v4980, 48
        %v4986 = vpop.permute.xlu0 %4985
        %v4987 = vsel %vm1655, %v4984, %v4986
        %v4988 = vsel %vm1655, %v4986, %v2746
        %v4992 = vadd.f32 %v4976, %v4984
        %v4993 = vadd.f32 %v4977, %v4987
        %v4994 = vadd.f32 %v4978, %v4988
        %v4995 = vmul.f32 %v2757, %v4145
        %v4996 = vmul.f32 %v2757, %v4146
        %4999 = vrot.lane.b32.xlu0 %v4995, 32
        %v5000 = vpop.permute.xlu0 %4999
        %5001 = vrot.lane.b32.xlu0 %v4996, 32
        %v5002 = vpop.permute.xlu0 %5001
        %v5003 = vsel %vm336, %v5000, %v5002
        %v5004 = vsel %vm336, %v5002, %v2770
        %v5008 = vadd.f32 %v4992, %v5000
        %v5009 = vadd.f32 %v4993, %v5003
        %v5010 = vadd.f32 %v4994, %v5004
        %v5011 = vld [vmem:[%s2779] ss:$8 sm:$0x3]
        %v5013 = vlaneseq
        %v5014 = vshrl.u32 %v5013, 7
        %v5015 = vsub.s32 0, %v5014
        %v5016 = vrot.slane %v5011, %v5015
        %v5017 = vlaneseq
        %v5018 = vshrl.u32 %v5017, 7
        %v5019 = vsub.s32 1, %v5018
        %v5020 = vrot.slane %v5011, %v5019
        %5021 = vrot.lane.b32.xlu0 %v5016, 83
        %v5022 = vpop.permute.xlu0 %5021
        %5023 = vrot.lane.b32.xlu0 %v5020, 83
        %v5024 = vpop.permute.xlu0 %5023
        %v5025 = vsel %vm2794, %v5022, %v5024
        %v5029 = vmul.f32 %v5008, %v5022
        %v5030 = vmul.f32 %v5009, %v5025
        %v5031 = vmul.f32 %v5010, %v5024
        %5035 = vrot.lane.b32.xlu0 %v5029, 122
        %v5036 = vpop.permute.xlu0 %5035
        %5037 = vrot.lane.b32.xlu0 %v5030, 122
        %v5038 = vpop.permute.xlu0 %5037
        %5039 = vrot.lane.b32.xlu0 %v5031, 122
        %v5040 = vpop.permute.xlu0 %5039
        %v5041 = vsel %vm2811, %v5036, %v5038
        %v5042 = vsel %vm2811, %v5038, %v5040
        %v5046 = vadd.f32 %v4774, %v5041
        %v5047 = vadd.f32 %v4775, %v5042
        %v5048 = vadd.f32 %v4776, %v5040
        %5052 = vrot.lane.b32.xlu0 %v4910, 127
        %v5053 = vpop.permute.xlu0 %5052
        %5054 = vrot.lane.b32.xlu0 %v4911, 127
        %v5055 = vpop.permute.xlu0 %5054
        %5056 = vrot.lane.b32.xlu0 %v4912, 127
        %v5057 = vpop.permute.xlu0 %5056
        %v5058 = vsel %vm2829, %v5053, %v5055
        %v5059 = vsel %vm2829, %v5055, %v5057
        %v5063 = vadd.f32 %v5046, %v5058
        %v5064 = vadd.f32 %v5047, %v5059
        %v5065 = vadd.f32 %v5048, %v5057
        %v5069 = vrot.slane %v5063, 1
        %v5070 = vrot.slane %v5064, 1
        %v5071 = vrot.slane %v5065, 1
        %v5075 = vadd.f32 %v5063, %v5069
        %v5076 = vadd.f32 %v5064, %v5070
        %v5077 = vadd.f32 %v5065, %v5071
        %v5078 = vxor.u32 %v5075, 2147483648
        %v5079 = vxor.u32 %v5076, 2147483648
        %v5080 = vxor.u32 %v5077, 2147483648
        %v5081 = vmul.f32 %v5078, 1.442695
        %v5082 = vpow.pop %v5081
        %v5083 = vmul.f32 %v5079, 1.442695
        %v5084 = vpow.pop %v5083
        %v5085 = vmul.f32 %v5080, 1.442695
        %v5086 = vpow.pop %v5085
        %v5087 = vadd.f32 %v5082, 1.0
        %v5088 = vadd.f32 %v5084, 1.0
        %v5089 = vadd.f32 %v5086, 1.0
        %v5090 = vrcp.pop %v5087
        %v5091 = vmul.f32 1.0, %v5090
        %v5092 = vrcp.pop %v5088
        %v5093 = vmul.f32 1.0, %v5092
        %v5094 = vrcp.pop %v5089
        %v5095 = vmul.f32 1.0, %v5094
        %v5096 = vlaneseq
        %v5097 = vshrl.u32 %v5096, 7
        %v5098 = vsub.s32 0, %v5097
        %v5099 = vrot.slane %v5091, %v5098
        %v5100 = vlaneseq
        %v5101 = vshrl.u32 %v5100, 7
        %v5102 = vsub.s32 0, %v5101
        %v5103 = vrot.slane %v5093, %v5102
        %v5104 = vlaneseq
        %v5105 = vshrl.u32 %v5104, 7
        %v5106 = vsub.s32 0, %v5105
        %v5107 = vrot.slane %v5095, %v5106
        %5111 = vrot.lane.b32.xlu0 %v5099, 51
        %v5112 = vpop.permute.xlu0 %5111
        %5113 = vrot.lane.b32.xlu0 %v5103, 51
        %v5114 = vpop.permute.xlu0 %5113
        %5115 = vrot.lane.b32.xlu0 %v5107, 51
        %v5116 = vpop.permute.xlu0 %5115
        %v5117 = vsel %vm2889, %v5112, %v5114
        %v5118 = vsel %vm2889, %v5114, %v5116
        %v5121 = vmul.f32 %v4099, %v5117
        %v5122 = vmul.f32 %v4100, %v5118
        %v5123 = vmul.f32 %v4101, %v5117
        %v5124 = vmul.f32 %v4102, %v5118
        %v5125 = vmul.f32 %v4103, %v5117
        %v5126 = vmul.f32 %v4104, %v5118
        %v5127 = vmul.f32 %v4105, %v5117
        %v5128 = vmul.f32 %v4106, %v5118
        %s5129 = scalar_lea.vmem %s271, 64 [#allocation5]
        %5130 = vst [vmem:[%s5129] sm:$0xff] %v5121
        %5131 = vst [vmem:[%s5129 + $0x8] sm:$0xff] %v5122
        %5132 = vst [vmem:[%s5129 + $0x10] sm:$0xff] %v5123
        %5133 = vst [vmem:[%s5129 + $0x18] sm:$0xff] %v5124
        %5134 = vst [vmem:[%s5129 + $0x20] sm:$0xff] %v5125
        %5135 = vst [vmem:[%s5129 + $0x28] sm:$0xff] %v5126
        %5136 = vst [vmem:[%s5129 + $0x30] sm:$0xff] %v5127
        %5137 = vst [vmem:[%s5129 + $0x38] sm:$0xff] %v5128
        %v5138 = vadd.f32 %v5121, %v5122
        %5139 = vadd.xlane.f32.xlu0 %v5138
        %v5140 = vpop.xlane.xlu0 %5139
        %v5141 = vadd.f32 %v5123, %v5124
        %5142 = vadd.xlane.f32.xlu0 %v5141
        %v5143 = vpop.xlane.xlu0 %5142
        %v5144 = vadd.f32 %v5125, %v5126
        %5145 = vadd.xlane.f32.xlu0 %v5144
        %v5146 = vpop.xlane.xlu0 %5145
        %v5147 = vadd.f32 %v5127, %v5128
        %5148 = vadd.xlane.f32.xlu0 %v5147
        %v5149 = vpop.xlane.xlu0 %5148
        %v5150 = vmul.f32 %v5140, 0.00390625
        %v5151 = vmul.f32 %v5143, 0.00390625
        %v5152 = vmul.f32 %v5146, 0.00390625
        %v5153 = vmul.f32 %v5149, 0.00390625
        %s5154 = scalar_lea.vmem %s287, 32
        %5155 = vst.msk [vmem:[%s5154] sm:$0xff] %vm331, %v5150
        %5156 = vst.msk [vmem:[%s5154 + $0x8] sm:$0xff] %vm331, %v5151
        %5157 = vst.msk [vmem:[%s5154 + $0x10] sm:$0xff] %vm331, %v5152
        %5158 = vst.msk [vmem:[%s5154 + $0x18] sm:$0xff] %vm331, %v5153
        %s5159 = sand.u32 %s142, 1
        %s5160 = scalar_lea.sflag [#allocation4], %s5159
        %s5161 = sand.u32 %s142, 1
        %s5162 = smul.addr %s5161, 128
        %s5163 = scalar_lea.vmem [#allocation5], %s5162
        %s5164 = smul.u32 2, %s24
        %p5165 = scmp.lt.s32.totalorder %s5164, 3
        %s5166 = scalar_select %p5165, %s5164, 3
        %s5167 = smul.addr %s5166, 4
        %s5168 = smul.addr %s5167, 8
        %s5169 = scalar_lea.vmem %s6, %s5168
        // Predicated region
        $region45: #{tpu_custom_call.1} parent=39 // pred_check
          %p5170 = pneg %p152
        $region46: #{tpu_custom_call.1} parent=39 // pred_check_branch
          %5172 = sbr.rel (%p5170) target = $region48
        $region47: #{tpu_custom_call.1} parent=39 // pred_region
          %s5173 = smul.u32 2, %s24
          %s5175 = ssub.s32 2048, 2048
          %5176 = vsyncadd %s5160, %s5175
          %s5177 = smul.addr %s5173, 8
          %s5178 = smul.addr %s5177, 128
          %s5179 = scalar_lea.hbm %s5, %s5178
          %s5180 = sshll.u32 %s5163, 4
          %s5181 = int_to_ptr.vmem [resolvable:$true] %s5180
          %5186 = dma.vmem_to_hbm [thread:$0]  %s5181, 2048, %s5179, %s5160, 256, 256, 16
        $region48: #{tpu_custom_call.1} parent=39 // pred_fallthru
          _
        // Predicated region
        $region49: #{tpu_custom_call.1} parent=39 // pred_check
          %p5187 = pneg %p178
        $region50: #{tpu_custom_call.1} parent=39 // pred_check_branch
          %5189 = sbr.rel (%p5187) target = $region52
        $region51: #{tpu_custom_call.1} parent=39 // pred_region
          %s5190 = smul.u32 2, %s24
        $region52: #{tpu_custom_call.1} parent=39 // pred_fallthru
          _
      $region40: #{tpu_custom_call.1} parent=5 // pred_fallthru
        _
      %p5191 = scmp.le.s32.totalorder 2, %s19
      // Predicated region
      $region53: #{tpu_custom_call.1} parent=5 // pred_check
        %p5192 = pneg %p5191
      $region54: #{tpu_custom_call.1} parent=5 // pred_check_branch
        %5194 = sbr.rel (%p5192) target = $region56
      $region55: #{tpu_custom_call.1} parent=5 // pred_region
        %s5195 = ssub.s32 %s19, 2
        // Predicated region
        $region57: #{tpu_custom_call.1} parent=55 // pred_check
          %p5196 = pneg %p158
        $region58: #{tpu_custom_call.1} parent=55 // pred_check_branch
          %5198 = sbr.rel (%p5196) target = $region60
        $region59: #{tpu_custom_call.1} parent=55 // pred_region
          %s5199 = sand.u32 %s143, 1
          %s5200 = scalar_lea.sflag [#allocation4], %s5199
          %s5201 = sand.u32 %s143, 1
          %s5202 = smul.addr %s5201, 128
          %s5203 = scalar_lea.vmem [#allocation5], %s5202
          %5204 = dma.done %s5200, 2048
        $region60: #{tpu_custom_call.1} parent=55 // pred_fallthru
          _
        // Predicated region
        $region61: #{tpu_custom_call.1} parent=55 // pred_check
          %p5205 = pneg %p184
        $region62: #{tpu_custom_call.1} parent=55 // pred_check_branch
          %5207 = sbr.rel (%p5205) target = $region64
        $region63: #{tpu_custom_call.1} parent=55 // pred_region
          %s5208 = smul.u32 2, %s25
          %p5209 = scmp.lt.s32.totalorder %s5208, 3
          %s5210 = scalar_select %p5209, %s5208, 3
          %s5211 = smul.addr %s5210, 4
          %s5212 = smul.addr %s5211, 8
          %s5213 = scalar_lea.vmem %s6, %s5212
        $region64: #{tpu_custom_call.1} parent=55 // pred_fallthru
          _
      $region56: #{tpu_custom_call.1} parent=5 // pred_fallthru
        _
    $region6: #{tpu_custom_call.1} parent=1 // loop_footer
      %s23 = sadd.s32 1, %s19
    $region7: #{tpu_custom_call.1} parent=1 // loop_footer_branch
      %18 = sbr.rel target = $region3
    $region8: #{tpu_custom_call.1} parent=1 // loop_exit
      _
    %5214 = vsyncpa [#allocation3], 1
    %s5215 = scalar_lea.sflag [#allocation3], 1
    %5216 = vsyncpa %s5215, 1
    %5217 = vsyncpa [#allocation4], 1
    %s5218 = scalar_lea.sflag [#allocation4], 1
    %5219 = vsyncpa %s5218, 1

</llo_original>
